<compile_context>
chip_gen: v7x
topology: tpu7x:2x2x1
jax: 0.10.0
libtpu: 0.0.40
codegen_flags: <defaults>
</compile_context>

<pallas_src>
import functools
import numpy as np
import jax
import jax.numpy as jnp
from jax.experimental import pallas as pl
from jax.experimental.pallas import tpu as pltpu  # noqa: F401


# ----------------------------------------------------------------------------
# Single fused kernel: conv1 -> GNormBatchNorm -> FourierELU -> folded (inv-FT + conv2 + mean)
# ----------------------------------------------------------------------------
def fused_escnn_kernel(pm_ref, w1_ref, tmask_ref, gmat_ref, bigAT_ref, wfold_ref,
                       o_ref, *, batch, npos):
    f32 = jnp.float32
    P = pm_ref.shape[0]
    inv_p = 1.0 / P
    eps = 1e-5

    # ---- R2Conv #1: one lane-dense bf16 MXU matmul (im2col done in the wrapper) ----
    y1 = jnp.dot(pm_ref[...], w1_ref[...], preferred_element_type=f32)      # (P, Cmid)

    # ---- GNormBatchNorm (training-mode batch stats, weight=1, bias=0) ----
    mean_ch = jnp.sum(y1, axis=0, keepdims=True) * inv_p                    # (1, Cmid)
    xc = y1 - mean_ch * tmask_ref[...]                                      # center trivial channels only
    sq = jnp.sum(xc * xc, axis=0, keepdims=True) * inv_p                    # (1, Cmid)
    var_ch = jnp.dot(sq, gmat_ref[...], preferred_element_type=f32)         # per-irrep averaged variance
    xn = xc * jax.lax.rsqrt(var_ch + eps)

    # ---- FourierELU forward transform, kept P-major (no transpose) ----
    s = jnp.dot(xn.astype(jnp.bfloat16), bigAT_ref[...],
                preferred_element_type=f32)                                 # (P, Fld*N)
    # ELU(alpha=1); clamp before exp so large positives never reach the EUP.
    act = jnp.where(s > 0, s, jnp.exp(jnp.minimum(s, 0.0)) - 1.0)

    # ---- inverse Fourier + R2Conv #2 + spatial mean, folded host-side into wfold ----
    #   out[b, co] = sum_{pos, g} act[b*npos + pos, g] * wfold[co, pos, g]
    act3 = act.reshape(batch, npos, act.shape[-1])                          # free sublane split
    cols = []
    for co in range(wfold_ref.shape[0]):                                    # static unroll (4)
        t = act3 * wfold_ref[co]                                            # VPU multiply (B, npos, G)
        t = jnp.sum(t, axis=2)                                              # (B, npos)
        cols.append(jnp.sum(t, axis=1, keepdims=True))                      # (B, 1)
    o_ref[...] = jnp.concatenate(cols, axis=1).astype(o_ref.dtype)          # (B, 4)


# ----------------------------------------------------------------------------
# Parameter setup (deterministic, synthetic)
# ----------------------------------------------------------------------------
def make_params(in_channels, out_channels, kernel_size, h1, w1s, key):
    Fld, D, N = out_channels, 9, 16
    Cmid = Fld * D
    K = kernel_size
    kdepth = K * K * in_channels
    kdepth_pad = ((kdepth + 127) // 128) * 128

    k1, k2 = jax.random.split(key)
    # w1 rows are in (channel, ky, kx) order to match conv_general_dilated_patches;
    # padded contraction rows are zero (match the zero-padded patch columns).
    w1 = np.zeros((kdepth_pad, Cmid), np.float32)
    w1[:kdepth] = np.asarray(jax.random.normal(k1, (kdepth, Cmid), jnp.float32)) / np.sqrt(kdepth)
    w2 = np.asarray(jax.random.normal(k2, (K, K, Cmid, 4), jnp.float32)) / np.sqrt(K * K * Cmid)

    # Real Fourier basis over N=16 samples: A[n] = [1, sqrt(2)cos(k t_n), sqrt(2)sin(k t_n)]
    theta = 2.0 * np.pi * np.arange(N) / N
    cols = [np.ones(N)]
    for k in range(1, 5):
        cols.append(np.sqrt(2.0) * np.cos(k * theta))
        cols.append(np.sqrt(2.0) * np.sin(k * theta))
    A = np.stack(cols, axis=1)                                     # (N, D), A^T A = N I

    # Block-diagonal (per-field) forward / inverse Fourier matrices.
    bigA = np.zeros((Fld * N, Cmid), np.float32)
    bigAinv = np.zeros((Cmid, Fld * N), np.float32)
    for f in range(Fld):
        bigA[f * N:(f + 1) * N, f * D:(f + 1) * D] = A
        bigAinv[f * D:(f + 1) * D, f * N:(f + 1) * N] = A.T / N

    # GNormBatchNorm helpers: trivial-channel mask + irrep-block averaging matrix.
    tmask = np.zeros((1, Cmid), np.float32)
    tmask[0, ::D] = 1.0
    irrep = np.array([(d + 1) // 2 for d in range(D)])
    dims = np.where(irrep == 0, 1.0, 2.0)
    gmat = np.zeros((Cmid, Cmid), np.float32)
    for f in range(Fld):
        for d1 in range(D):
            for d2 in range(D):
                if irrep[d1] == irrep[d2]:
                    gmat[f * D + d1, f * D + d2] = 1.0 / dims[d1]

    # Effective weight for conv2(valid) followed by spatial mean:
    #   out[b,co] = sum_{h,w,c} y[b,h,w,c] * Weff[c,h,w,co]
    H2, W2 = h1 - K + 1, w1s - K + 1
    weff4 = np.zeros((Cmid, h1, w1s, 4), np.float32)
    for ky in range(K):
        for kx in range(K):
            weff4[:, ky:ky + H2, kx:kx + W2, :] += w2[ky, kx][:, None, None, :]
    weff4 /= float(H2 * W2)
    weff3 = weff4.reshape(Cmid, h1 * w1s, 4)                        # (Cmid, npos, 4)

    # Fold the inverse Fourier transform into the effective conv2 weight:
    #   wfold[g, pos, co] = sum_c bigAinv[c, g] * weff3[c, pos, co]
    wfold = np.einsum('cg,cpo->gpo', bigAinv, weff3)                # (Fld*N, npos, 4)
    wfold_k = np.ascontiguousarray(np.transpose(wfold, (2, 1, 0)))  # (4, npos, Fld*N)

    return dict(
        w1=jnp.asarray(w1, jnp.bfloat16),
        tmask=jnp.asarray(tmask, jnp.float32),
        gmat=jnp.asarray(gmat, jnp.float32),
        bigAT=jnp.asarray(bigA.T, jnp.bfloat16),                    # (Cmid, Fld*N)
        wfold=jnp.asarray(wfold_k, jnp.float32),
    )


# ----------------------------------------------------------------------------
# Forward wrapper (im2col hoisted here; single pallas_call for everything else)
# ----------------------------------------------------------------------------
@functools.partial(jax.jit, static_argnames=("kernel_size",))
def escnn_steerable_forward(x_nchw, params, kernel_size):
    K = kernel_size
    B, Cin, H, W = x_nchw.shape
    Ho, Wo = H - K + 1, W - K + 1
    npos = Ho * Wo
    kdepth = K * K * Cin
    kdepth_pad = params["w1"].shape[0]

    # im2col as one XLA op on bf16 input -> lane-dense (P, kdepth_pad) patch matrix.
    patches = jax.lax.conv_general_dilated_patches(
        x_nchw.astype(jnp.bfloat16), filter_shape=(K, K),
        window_strides=(1, 1), padding='VALID')                     # (B, Cin*K*K, Ho, Wo)
    pm = jnp.transpose(patches, (0, 2, 3, 1)).reshape(B * npos, kdepth)
    pm = jnp.pad(pm, ((0, 0), (0, kdepth_pad - kdepth)))            # (P, kdepth_pad) bf16

    out = pl.pallas_call(
        functools.partial(fused_escnn_kernel, batch=B, npos=npos),
        out_shape=jax.ShapeDtypeStruct((B, 4), jnp.float32),
    )(pm, params["w1"], params["tmask"], params["gmat"],
      params["bigAT"], params["wfold"])

    return out.reshape(B, 2, 2)


if __name__ == "__main__":
    B, Cin, H, W = 2, 3, 24, 24        # two 9x9 valid convs: 24 -> 16 -> 8
    out_channels, kernel_size = 4, 9

    key = jax.random.PRNGKey(0)
    key_x, key_p = jax.random.split(key)
    x = jax.random.normal(key_x, (B, Cin, H, W), dtype=jnp.float32)  # PyTorch NCHW input

    H1 = H - kernel_size + 1
    W1 = W - kernel_size + 1
    params = make_params(Cin, out_channels, kernel_size, H1, W1, key_p)

    out = escnn_steerable_forward(x, params, kernel_size=kernel_size)
    out = jax.block_until_ready(out)
    assert out.shape == (B, 2, 2), out.shape
    assert bool(jnp.all(jnp.isfinite(out)))
    print("KERNEL_OK")
</pallas_src>

<mosaic_0001>
module attributes {stable_mosaic.version = 11 : i64} {
  func.func @fused_escnn_kernel(%arg0: memref<512x256xbf16, #tpu.memory_space<vmem>>, %arg1: memref<256x36xbf16, #tpu.memory_space<vmem>>, %arg2: memref<1x36xf32, #tpu.memory_space<vmem>>, %arg3: memref<36x36xf32, #tpu.memory_space<vmem>>, %arg4: memref<36x64xbf16, #tpu.memory_space<vmem>>, %arg5: memref<4x256x64xf32, #tpu.memory_space<vmem>>, %arg6: memref<2x4xf32, #tpu.memory_space<vmem>>) attributes {dimension_semantics = [], scalar_prefetch = 0 : i64, scratch_operands = 0 : i64, tpu.core_type = #tpu.core_type<tc>} {
    %c0 = arith.constant 0 : index
    %c0_0 = arith.constant 0 : index
    %0 = vector.load %arg0[%c0, %c0_0] : memref<512x256xbf16, #tpu.memory_space<vmem>>, vector<512x256xbf16>
    %c0_1 = arith.constant 0 : index
    %c0_2 = arith.constant 0 : index
    %1 = vector.load %arg1[%c0_1, %c0_2] : memref<256x36xbf16, #tpu.memory_space<vmem>>, vector<256x36xbf16>
    %cst = arith.constant dense<0.000000e+00> : vector<512x36xf32>
    %2 = tpu.matmul %0, %1, %cst {dimension_numbers = #tpu.dot_dimension_numbers<[1], [0], [0], [1], [0, 0, 1, 1], [], []>} : vector<512x256xbf16>, vector<256x36xbf16>, vector<512x36xf32> -> vector<512x36xf32>
    %cst_3 = arith.constant dense<0.000000e+00> : vector<36xf32>
    %3 = vector.multi_reduction <add>, %2, %cst_3 [0] : vector<512x36xf32> to vector<36xf32>
    %4 = vector.shape_cast %3 : vector<36xf32> to vector<1x36xf32>
    %cst_4 = arith.constant 0.001953125 : f32
    %5 = vector.broadcast %cst_4 : f32 to vector<1x36xf32>
    %6 = arith.mulf %4, %5 : vector<1x36xf32>
    %c0_5 = arith.constant 0 : index
    %c0_6 = arith.constant 0 : index
    %7 = vector.load %arg2[%c0_5, %c0_6] : memref<1x36xf32, #tpu.memory_space<vmem>>, vector<1x36xf32>
    %8 = arith.mulf %6, %7 : vector<1x36xf32>
    %9 = vector.broadcast %8 : vector<1x36xf32> to vector<512x36xf32>
    %10 = arith.subf %2, %9 : vector<512x36xf32>
    %11 = arith.mulf %10, %10 : vector<512x36xf32>
    %cst_7 = arith.constant dense<0.000000e+00> : vector<36xf32>
    %12 = vector.multi_reduction <add>, %11, %cst_7 [0] : vector<512x36xf32> to vector<36xf32>
    %13 = vector.shape_cast %12 : vector<36xf32> to vector<1x36xf32>
    %cst_8 = arith.constant 0.001953125 : f32
    %14 = vector.broadcast %cst_8 : f32 to vector<1x36xf32>
    %15 = arith.mulf %13, %14 : vector<1x36xf32>
    %c0_9 = arith.constant 0 : index
    %c0_10 = arith.constant 0 : index
    %16 = vector.load %arg3[%c0_9, %c0_10] : memref<36x36xf32, #tpu.memory_space<vmem>>, vector<36x36xf32>
    %cst_11 = arith.constant dense<0.000000e+00> : vector<1x36xf32>
    %17 = tpu.matmul %15, %16, %cst_11 {dimension_numbers = #tpu.dot_dimension_numbers<[1], [0], [0], [1], [0, 0, 1, 1], [], []>} : vector<1x36xf32>, vector<36x36xf32>, vector<1x36xf32> -> vector<1x36xf32>
    %cst_12 = arith.constant 9.99999974E-6 : f32
    %18 = vector.broadcast %cst_12 : f32 to vector<1x36xf32>
    %19 = arith.addf %17, %18 : vector<1x36xf32>
    %20 = math.rsqrt %19 : vector<1x36xf32>
    %21 = vector.broadcast %20 : vector<1x36xf32> to vector<512x36xf32>
    %22 = arith.mulf %10, %21 : vector<512x36xf32>
    %23 = arith.truncf %22 : vector<512x36xf32> to vector<512x36xbf16>
    %c0_13 = arith.constant 0 : index
    %c0_14 = arith.constant 0 : index
    %24 = vector.load %arg4[%c0_13, %c0_14] : memref<36x64xbf16, #tpu.memory_space<vmem>>, vector<36x64xbf16>
    %cst_15 = arith.constant dense<0.000000e+00> : vector<512x64xf32>
    %25 = tpu.matmul %23, %24, %cst_15 {dimension_numbers = #tpu.dot_dimension_numbers<[1], [0], [0], [1], [0, 0, 1, 1], [], []>} : vector<512x36xbf16>, vector<36x64xbf16>, vector<512x64xf32> -> vector<512x64xf32>
    %cst_16 = arith.constant 0.000000e+00 : f32
    %26 = vector.broadcast %cst_16 : f32 to vector<512x64xf32>
    %27 = arith.cmpf ogt, %25, %26 : vector<512x64xf32>
    %cst_17 = arith.constant 0.000000e+00 : f32
    %28 = vector.broadcast %cst_17 : f32 to vector<512x64xf32>
    %29 = arith.minimumf %25, %28 : vector<512x64xf32>
    %30 = math.exp %29 : vector<512x64xf32>
    %cst_18 = arith.constant 1.000000e+00 : f32
    %31 = vector.broadcast %cst_18 : f32 to vector<512x64xf32>
    %32 = arith.subf %30, %31 : vector<512x64xf32>
    %33 = arith.select %27, %25, %32 : vector<512x64xi1>, vector<512x64xf32>
    %34 = vector.shape_cast %33 : vector<512x64xf32> to vector<2x256x64xf32>
    %c0_19 = arith.constant 0 : index
    %c0_20 = arith.constant 0 : index
    %c0_21 = arith.constant 0 : index
    %35 = vector.load %arg5[%c0_19, %c0_20, %c0_21] : memref<4x256x64xf32, #tpu.memory_space<vmem>>, vector<1x256x64xf32>
    %36 = vector.shape_cast %35 : vector<1x256x64xf32> to vector<256x64xf32>
    %37 = vector.shape_cast %36 : vector<256x64xf32> to vector<1x256x64xf32>
    %38 = vector.broadcast %37 : vector<1x256x64xf32> to vector<2x256x64xf32>
    %39 = arith.mulf %34, %38 : vector<2x256x64xf32>
    %cst_22 = arith.constant dense<0.000000e+00> : vector<2x256xf32>
    %40 = vector.multi_reduction <add>, %39, %cst_22 [2] : vector<2x256x64xf32> to vector<2x256xf32>
    %cst_23 = arith.constant dense<0.000000e+00> : vector<2xf32>
    %41 = vector.multi_reduction <add>, %40, %cst_23 [1] : vector<2x256xf32> to vector<2xf32>
    %42 = vector.shape_cast %41 : vector<2xf32> to vector<2x1xf32>
    %c1 = arith.constant 1 : index
    %c0_24 = arith.constant 0 : index
    %c0_25 = arith.constant 0 : index
    %43 = vector.load %arg5[%c1, %c0_24, %c0_25] : memref<4x256x64xf32, #tpu.memory_space<vmem>>, vector<1x256x64xf32>
    %44 = vector.shape_cast %43 : vector<1x256x64xf32> to vector<256x64xf32>
    %45 = vector.shape_cast %44 : vector<256x64xf32> to vector<1x256x64xf32>
    %46 = vector.broadcast %45 : vector<1x256x64xf32> to vector<2x256x64xf32>
    %47 = arith.mulf %34, %46 : vector<2x256x64xf32>
    %cst_26 = arith.constant dense<0.000000e+00> : vector<2x256xf32>
    %48 = vector.multi_reduction <add>, %47, %cst_26 [2] : vector<2x256x64xf32> to vector<2x256xf32>
    %cst_27 = arith.constant dense<0.000000e+00> : vector<2xf32>
    %49 = vector.multi_reduction <add>, %48, %cst_27 [1] : vector<2x256xf32> to vector<2xf32>
    %50 = vector.shape_cast %49 : vector<2xf32> to vector<2x1xf32>
    %c2 = arith.constant 2 : index
    %c0_28 = arith.constant 0 : index
    %c0_29 = arith.constant 0 : index
    %51 = vector.load %arg5[%c2, %c0_28, %c0_29] : memref<4x256x64xf32, #tpu.memory_space<vmem>>, vector<1x256x64xf32>
    %52 = vector.shape_cast %51 : vector<1x256x64xf32> to vector<256x64xf32>
    %53 = vector.shape_cast %52 : vector<256x64xf32> to vector<1x256x64xf32>
    %54 = vector.broadcast %53 : vector<1x256x64xf32> to vector<2x256x64xf32>
    %55 = arith.mulf %34, %54 : vector<2x256x64xf32>
    %cst_30 = arith.constant dense<0.000000e+00> : vector<2x256xf32>
    %56 = vector.multi_reduction <add>, %55, %cst_30 [2] : vector<2x256x64xf32> to vector<2x256xf32>
    %cst_31 = arith.constant dense<0.000000e+00> : vector<2xf32>
    %57 = vector.multi_reduction <add>, %56, %cst_31 [1] : vector<2x256xf32> to vector<2xf32>
    %58 = vector.shape_cast %57 : vector<2xf32> to vector<2x1xf32>
    %c3 = arith.constant 3 : index
    %c0_32 = arith.constant 0 : index
    %c0_33 = arith.constant 0 : index
    %59 = vector.load %arg5[%c3, %c0_32, %c0_33] : memref<4x256x64xf32, #tpu.memory_space<vmem>>, vector<1x256x64xf32>
    %60 = vector.shape_cast %59 : vector<1x256x64xf32> to vector<256x64xf32>
    %61 = vector.shape_cast %60 : vector<256x64xf32> to vector<1x256x64xf32>
    %62 = vector.broadcast %61 : vector<1x256x64xf32> to vector<2x256x64xf32>
    %63 = arith.mulf %34, %62 : vector<2x256x64xf32>
    %cst_34 = arith.constant dense<0.000000e+00> : vector<2x256xf32>
    %64 = vector.multi_reduction <add>, %63, %cst_34 [2] : vector<2x256x64xf32> to vector<2x256xf32>
    %cst_35 = arith.constant dense<0.000000e+00> : vector<2xf32>
    %65 = vector.multi_reduction <add>, %64, %cst_35 [1] : vector<2x256xf32> to vector<2xf32>
    %66 = vector.shape_cast %65 : vector<2xf32> to vector<2x1xf32>
    %67 = tpu.concatenate %42, %50, %58, %66 in 1 : vector<2x1xf32>, vector<2x1xf32>, vector<2x1xf32>, vector<2x1xf32> -> vector<2x4xf32>
    %c0_36 = arith.constant 0 : index
    %c0_37 = arith.constant 0 : index
    %68 = vector.load %arg6[%c0_36, %c0_37] : memref<2x4xf32, #tpu.memory_space<vmem>>, vector<2x4xf32>
    tpu.vector_store %arg6[%c0_36, %c0_37], %67 {strides = array<i32>} : memref<2x4xf32, #tpu.memory_space<vmem>>, vector<2x4xf32>,
    return
  }
}

</mosaic_0001>

<llo_original>
// kernel: escnn_steerable_forward.1
$region0: #{escnn_steerable_forward.1}
  #allocation0 [shape = 'u32[]', space=smem, size = 0x4, offset = 0x4, fixed_abs, tag = 'smem constant byte address 0x4 - core index']
  #allocation1 [shape = 'u32[144,128]{1,0:T(1,128)}', space=vmem, size = 0x12000, scoped, tag = 'internal scratch']
  %s0 = inlined_call_operand.vmem [shape: bf16[512,256], index: 0, kind: input, shape index: {}]
  %s1 = inlined_call_operand.vmem [shape: bf16[256,36], index: 1, kind: input, shape index: {}]
  %s2 = inlined_call_operand.vmem [shape: f32[1,36], index: 2, kind: input, shape index: {}]
  %s3 = inlined_call_operand.vmem [shape: f32[36,36], index: 3, kind: input, shape index: {}]
  %s4 = inlined_call_operand.vmem [shape: bf16[36,64], index: 4, kind: input, shape index: {}]
  %s5 = inlined_call_operand.vmem [shape: f32[4,256,64], index: 5, kind: input, shape index: {}]
  %s6 = inlined_call_operand.vmem [shape: f32[2,4], index: 6, kind: output, shape index: {}]
  %s7 = sld [smem:[#allocation0]]
  $region34: #{escnn_steerable_forward.1} parent=0
    _
  %s9 = ssub.s32 1, %s7
  %s10 = scalar_select 0, %s9, %s7
  // Predicated region
  $region2: #{escnn_steerable_forward.1} parent=0 // pred_check
    _
  $region3: #{escnn_steerable_forward.1} parent=0 // pred_check_branch
    %12 = sbr.rel (0) target = $region5
  $region4: #{escnn_steerable_forward.1} parent=0 // pred_region
    _
  $region5: #{escnn_steerable_forward.1} parent=0 // pred_fallthru
    _
  // Predicated region
  $region6: #{escnn_steerable_forward.1} parent=0 // pred_check
    _
  $region7: #{escnn_steerable_forward.1} parent=0 // pred_check_branch
    %14 = sbr.rel (0) target = $region9
  $region8: #{escnn_steerable_forward.1} parent=0 // pred_region
    _
  $region9: #{escnn_steerable_forward.1} parent=0 // pred_fallthru
    _
  // Predicated region
  $region10: #{escnn_steerable_forward.1} parent=0 // pred_check
    _
  $region11: #{escnn_steerable_forward.1} parent=0 // pred_check_branch
    %16 = sbr.rel (0) target = $region13
  $region12: #{escnn_steerable_forward.1} parent=0 // pred_region
    _
  $region13: #{escnn_steerable_forward.1} parent=0 // pred_fallthru
    _
  // Predicated region
  $region14: #{escnn_steerable_forward.1} parent=0 // pred_check
    _
  $region15: #{escnn_steerable_forward.1} parent=0 // pred_check_branch
    %18 = sbr.rel (0) target = $region17
  $region16: #{escnn_steerable_forward.1} parent=0 // pred_region
    _
  $region17: #{escnn_steerable_forward.1} parent=0 // pred_fallthru
    _
  // Predicated region
  $region18: #{escnn_steerable_forward.1} parent=0 // pred_check
    _
  $region19: #{escnn_steerable_forward.1} parent=0 // pred_check_branch
    %20 = sbr.rel (0) target = $region21
  $region20: #{escnn_steerable_forward.1} parent=0 // pred_region
    _
  $region21: #{escnn_steerable_forward.1} parent=0 // pred_fallthru
    _
  // Predicated region
  $region22: #{escnn_steerable_forward.1} parent=0 // pred_check
    _
  $region23: #{escnn_steerable_forward.1} parent=0 // pred_check_branch
    %22 = sbr.rel (0) target = $region25
  $region24: #{escnn_steerable_forward.1} parent=0 // pred_region
    _
  $region25: #{escnn_steerable_forward.1} parent=0 // pred_fallthru
    _
  %v24 = vld [vmem:[%s0] sm:$0xff]
  %v25 = vld [vmem:[%s0 + $0x8] sm:$0xff]
  %v26 = vld [vmem:[%s0 + $0x10] sm:$0xff]
  %v27 = vld [vmem:[%s0 + $0x18] sm:$0xff]
  %v28 = vld [vmem:[%s0 + $0x20] sm:$0xff]
  %v29 = vld [vmem:[%s0 + $0x28] sm:$0xff]
  %v30 = vld [vmem:[%s0 + $0x30] sm:$0xff]
  %v31 = vld [vmem:[%s0 + $0x38] sm:$0xff]
  %v32 = vld [vmem:[%s0 + $0x40] sm:$0xff]
  %v33 = vld [vmem:[%s0 + $0x48] sm:$0xff]
  %v34 = vld [vmem:[%s0 + $0x50] sm:$0xff]
  %v35 = vld [vmem:[%s0 + $0x58] sm:$0xff]
  %v36 = vld [vmem:[%s0 + $0x60] sm:$0xff]
  %v37 = vld [vmem:[%s0 + $0x68] sm:$0xff]
  %v38 = vld [vmem:[%s0 + $0x70] sm:$0xff]
  %v39 = vld [vmem:[%s0 + $0x78] sm:$0xff]
  %v40 = vld [vmem:[%s0 + $0x80] sm:$0xff]
  %v41 = vld [vmem:[%s0 + $0x88] sm:$0xff]
  %v42 = vld [vmem:[%s0 + $0x90] sm:$0xff]
  %v43 = vld [vmem:[%s0 + $0x98] sm:$0xff]
  %v44 = vld [vmem:[%s0 + $0xa0] sm:$0xff]
  %v45 = vld [vmem:[%s0 + $0xa8] sm:$0xff]
  %v46 = vld [vmem:[%s0 + $0xb0] sm:$0xff]
  %v47 = vld [vmem:[%s0 + $0xb8] sm:$0xff]
  %v48 = vld [vmem:[%s0 + $0xc0] sm:$0xff]
  %v49 = vld [vmem:[%s0 + $0xc8] sm:$0xff]
  %v50 = vld [vmem:[%s0 + $0xd0] sm:$0xff]
  %v51 = vld [vmem:[%s0 + $0xd8] sm:$0xff]
  %v52 = vld [vmem:[%s0 + $0xe0] sm:$0xff]
  %v53 = vld [vmem:[%s0 + $0xe8] sm:$0xff]
  %v54 = vld [vmem:[%s0 + $0xf0] sm:$0xff]
  %v55 = vld [vmem:[%s0 + $0xf8] sm:$0xff]
  %v56 = vld [vmem:[%s0 + $0x100] sm:$0xff]
  %v57 = vld [vmem:[%s0 + $0x108] sm:$0xff]
  %v58 = vld [vmem:[%s0 + $0x110] sm:$0xff]
  %v59 = vld [vmem:[%s0 + $0x118] sm:$0xff]
  %v60 = vld [vmem:[%s0 + $0x120] sm:$0xff]
  %v61 = vld [vmem:[%s0 + $0x128] sm:$0xff]
  %v62 = vld [vmem:[%s0 + $0x130] sm:$0xff]
  %v63 = vld [vmem:[%s0 + $0x138] sm:$0xff]
  %v64 = vld [vmem:[%s0 + $0x140] sm:$0xff]
  %v65 = vld [vmem:[%s0 + $0x148] sm:$0xff]
  %v66 = vld [vmem:[%s0 + $0x150] sm:$0xff]
  %v67 = vld [vmem:[%s0 + $0x158] sm:$0xff]
  %v68 = vld [vmem:[%s0 + $0x160] sm:$0xff]
  %v69 = vld [vmem:[%s0 + $0x168] sm:$0xff]
  %v70 = vld [vmem:[%s0 + $0x170] sm:$0xff]
  %v71 = vld [vmem:[%s0 + $0x178] sm:$0xff]
  %v72 = vld [vmem:[%s0 + $0x180] sm:$0xff]
  %v73 = vld [vmem:[%s0 + $0x188] sm:$0xff]
  %v74 = vld [vmem:[%s0 + $0x190] sm:$0xff]
  %v75 = vld [vmem:[%s0 + $0x198] sm:$0xff]
  %v76 = vld [vmem:[%s0 + $0x1a0] sm:$0xff]
  %v77 = vld [vmem:[%s0 + $0x1a8] sm:$0xff]
  %v78 = vld [vmem:[%s0 + $0x1b0] sm:$0xff]
  %v79 = vld [vmem:[%s0 + $0x1b8] sm:$0xff]
  %v80 = vld [vmem:[%s0 + $0x1c0] sm:$0xff]
  %v81 = vld [vmem:[%s0 + $0x1c8] sm:$0xff]
  %v82 = vld [vmem:[%s0 + $0x1d0] sm:$0xff]
  %v83 = vld [vmem:[%s0 + $0x1d8] sm:$0xff]
  %v84 = vld [vmem:[%s0 + $0x1e0] sm:$0xff]
  %v85 = vld [vmem:[%s0 + $0x1e8] sm:$0xff]
  %v86 = vld [vmem:[%s0 + $0x1f0] sm:$0xff]
  %v87 = vld [vmem:[%s0 + $0x1f8] sm:$0xff]
  %v88 = vld [vmem:[%s1] sm:$0xf]
  %v89 = vld [vmem:[%s1 + $0x4] sm:$0xf]
  %v90 = vld [vmem:[%s1 + $0x8] sm:$0xf]
  %v91 = vld [vmem:[%s1 + $0xc] sm:$0xf]
  %v92 = vld [vmem:[%s1 + $0x10] sm:$0xf]
  %v93 = vld [vmem:[%s1 + $0x14] sm:$0xf]
  %v94 = vld [vmem:[%s1 + $0x18] sm:$0xf]
  %v95 = vld [vmem:[%s1 + $0x1c] sm:$0xf]
  %v96 = vld [vmem:[%s1 + $0x20] sm:$0xf]
  %v97 = vld [vmem:[%s1 + $0x24] sm:$0xf]
  %v98 = vld [vmem:[%s1 + $0x28] sm:$0xf]
  %v99 = vld [vmem:[%s1 + $0x2c] sm:$0xf]
  %v100 = vld [vmem:[%s1 + $0x30] sm:$0xf]
  %v101 = vld [vmem:[%s1 + $0x34] sm:$0xf]
  %v102 = vld [vmem:[%s1 + $0x38] sm:$0xf]
  %v103 = vld [vmem:[%s1 + $0x3c] sm:$0xf]
  %v104 = vld [vmem:[%s1 + $0x40] sm:$0xf]
  %v105 = vld [vmem:[%s1 + $0x44] sm:$0xf]
  %v106 = vld [vmem:[%s1 + $0x48] sm:$0xf]
  %v107 = vld [vmem:[%s1 + $0x4c] sm:$0xf]
  %v108 = vld [vmem:[%s1 + $0x50] sm:$0xf]
  %v109 = vld [vmem:[%s1 + $0x54] sm:$0xf]
  %v110 = vld [vmem:[%s1 + $0x58] sm:$0xf]
  %v111 = vld [vmem:[%s1 + $0x5c] sm:$0xf]
  %v112 = vld [vmem:[%s1 + $0x60] sm:$0xf]
  %v113 = vld [vmem:[%s1 + $0x64] sm:$0xf]
  %v114 = vld [vmem:[%s1 + $0x68] sm:$0xf]
  %v115 = vld [vmem:[%s1 + $0x6c] sm:$0xf]
  %v116 = vld [vmem:[%s1 + $0x70] sm:$0xf]
  %v117 = vld [vmem:[%s1 + $0x74] sm:$0xf]
  %v118 = vld [vmem:[%s1 + $0x78] sm:$0xf]
  %v119 = vld [vmem:[%s1 + $0x7c] sm:$0xf]
  %v184 = vunpack.c.l.b16 %v24
  %v185 = vunpack.c.h.b16 %v24
  %v186 = vunpack.c.l.b16 %v25
  %v187 = vunpack.c.h.b16 %v25
  %v188 = vunpack.c.l.b16 %v26
  %v189 = vunpack.c.h.b16 %v26
  %v190 = vunpack.c.l.b16 %v27
  %v191 = vunpack.c.h.b16 %v27
  %v192 = vunpack.c.l.b16 %v28
  %v193 = vunpack.c.h.b16 %v28
  %v194 = vunpack.c.l.b16 %v29
  %v195 = vunpack.c.h.b16 %v29
  %v196 = vunpack.c.l.b16 %v30
  %v197 = vunpack.c.h.b16 %v30
  %v198 = vunpack.c.l.b16 %v31
  %v199 = vunpack.c.h.b16 %v31
  %v200 = vunpack.c.l.b16 %v32
  %v201 = vunpack.c.h.b16 %v32
  %v202 = vunpack.c.l.b16 %v33
  %v203 = vunpack.c.h.b16 %v33
  %v204 = vunpack.c.l.b16 %v34
  %v205 = vunpack.c.h.b16 %v34
  %v206 = vunpack.c.l.b16 %v35
  %v207 = vunpack.c.h.b16 %v35
  %v208 = vunpack.c.l.b16 %v36
  %v209 = vunpack.c.h.b16 %v36
  %v210 = vunpack.c.l.b16 %v37
  %v211 = vunpack.c.h.b16 %v37
  %v212 = vunpack.c.l.b16 %v38
  %v213 = vunpack.c.h.b16 %v38
  %v214 = vunpack.c.l.b16 %v39
  %v215 = vunpack.c.h.b16 %v39
  %v216 = vunpack.c.l.b16 %v40
  %v217 = vunpack.c.h.b16 %v40
  %v218 = vunpack.c.l.b16 %v41
  %v219 = vunpack.c.h.b16 %v41
  %v220 = vunpack.c.l.b16 %v42
  %v221 = vunpack.c.h.b16 %v42
  %v222 = vunpack.c.l.b16 %v43
  %v223 = vunpack.c.h.b16 %v43
  %v224 = vunpack.c.l.b16 %v44
  %v225 = vunpack.c.h.b16 %v44
  %v226 = vunpack.c.l.b16 %v45
  %v227 = vunpack.c.h.b16 %v45
  %v228 = vunpack.c.l.b16 %v46
  %v229 = vunpack.c.h.b16 %v46
  %v230 = vunpack.c.l.b16 %v47
  %v231 = vunpack.c.h.b16 %v47
  %v232 = vunpack.c.l.b16 %v48
  %v233 = vunpack.c.h.b16 %v48
  %v234 = vunpack.c.l.b16 %v49
  %v235 = vunpack.c.h.b16 %v49
  %v236 = vunpack.c.l.b16 %v50
  %v237 = vunpack.c.h.b16 %v50
  %v238 = vunpack.c.l.b16 %v51
  %v239 = vunpack.c.h.b16 %v51
  %v240 = vunpack.c.l.b16 %v52
  %v241 = vunpack.c.h.b16 %v52
  %v242 = vunpack.c.l.b16 %v53
  %v243 = vunpack.c.h.b16 %v53
  %v244 = vunpack.c.l.b16 %v54
  %v245 = vunpack.c.h.b16 %v54
  %v246 = vunpack.c.l.b16 %v55
  %v247 = vunpack.c.h.b16 %v55
  %v248 = vunpack.c.l.b16 %v56
  %v249 = vunpack.c.h.b16 %v56
  %v250 = vunpack.c.l.b16 %v57
  %v251 = vunpack.c.h.b16 %v57
  %v252 = vunpack.c.l.b16 %v58
  %v253 = vunpack.c.h.b16 %v58
  %v254 = vunpack.c.l.b16 %v59
  %v255 = vunpack.c.h.b16 %v59
  %v256 = vunpack.c.l.b16 %v60
  %v257 = vunpack.c.h.b16 %v60
  %v258 = vunpack.c.l.b16 %v61
  %v259 = vunpack.c.h.b16 %v61
  %v260 = vunpack.c.l.b16 %v62
  %v261 = vunpack.c.h.b16 %v62
  %v262 = vunpack.c.l.b16 %v63
  %v263 = vunpack.c.h.b16 %v63
  %v264 = vunpack.c.l.b16 %v64
  %v265 = vunpack.c.h.b16 %v64
  %v266 = vunpack.c.l.b16 %v65
  %v267 = vunpack.c.h.b16 %v65
  %v268 = vunpack.c.l.b16 %v66
  %v269 = vunpack.c.h.b16 %v66
  %v270 = vunpack.c.l.b16 %v67
  %v271 = vunpack.c.h.b16 %v67
  %v272 = vunpack.c.l.b16 %v68
  %v273 = vunpack.c.h.b16 %v68
  %v274 = vunpack.c.l.b16 %v69
  %v275 = vunpack.c.h.b16 %v69
  %v276 = vunpack.c.l.b16 %v70
  %v277 = vunpack.c.h.b16 %v70
  %v278 = vunpack.c.l.b16 %v71
  %v279 = vunpack.c.h.b16 %v71
  %v280 = vunpack.c.l.b16 %v72
  %v281 = vunpack.c.h.b16 %v72
  %v282 = vunpack.c.l.b16 %v73
  %v283 = vunpack.c.h.b16 %v73
  %v284 = vunpack.c.l.b16 %v74
  %v285 = vunpack.c.h.b16 %v74
  %v286 = vunpack.c.l.b16 %v75
  %v287 = vunpack.c.h.b16 %v75
  %v288 = vunpack.c.l.b16 %v76
  %v289 = vunpack.c.h.b16 %v76
  %v290 = vunpack.c.l.b16 %v77
  %v291 = vunpack.c.h.b16 %v77
  %v292 = vunpack.c.l.b16 %v78
  %v293 = vunpack.c.h.b16 %v78
  %v294 = vunpack.c.l.b16 %v79
  %v295 = vunpack.c.h.b16 %v79
  %v296 = vunpack.c.l.b16 %v80
  %v297 = vunpack.c.h.b16 %v80
  %v298 = vunpack.c.l.b16 %v81
  %v299 = vunpack.c.h.b16 %v81
  %v300 = vunpack.c.l.b16 %v82
  %v301 = vunpack.c.h.b16 %v82
  %v302 = vunpack.c.l.b16 %v83
  %v303 = vunpack.c.h.b16 %v83
  %v304 = vunpack.c.l.b16 %v84
  %v305 = vunpack.c.h.b16 %v84
  %v306 = vunpack.c.l.b16 %v85
  %v307 = vunpack.c.h.b16 %v85
  %v308 = vunpack.c.l.b16 %v86
  %v309 = vunpack.c.h.b16 %v86
  %v310 = vunpack.c.l.b16 %v87
  %v311 = vunpack.c.h.b16 %v87
  %v312 = vpack.c.b16 %v186, %v184
  %v313 = vpack.c.b16 %v187, %v185
  %v314 = vpack.c.b16 %v190, %v188
  %v315 = vpack.c.b16 %v191, %v189
  %v316 = vpack.c.b16 %v194, %v192
  %v317 = vpack.c.b16 %v195, %v193
  %v318 = vpack.c.b16 %v198, %v196
  %v319 = vpack.c.b16 %v199, %v197
  %v320 = vpack.c.b16 %v202, %v200
  %v321 = vpack.c.b16 %v203, %v201
  %v322 = vpack.c.b16 %v206, %v204
  %v323 = vpack.c.b16 %v207, %v205
  %v324 = vpack.c.b16 %v210, %v208
  %v325 = vpack.c.b16 %v211, %v209
  %v326 = vpack.c.b16 %v214, %v212
  %v327 = vpack.c.b16 %v215, %v213
  %v328 = vpack.c.b16 %v218, %v216
  %v329 = vpack.c.b16 %v219, %v217
  %v330 = vpack.c.b16 %v222, %v220
  %v331 = vpack.c.b16 %v223, %v221
  %v332 = vpack.c.b16 %v226, %v224
  %v333 = vpack.c.b16 %v227, %v225
  %v334 = vpack.c.b16 %v230, %v228
  %v335 = vpack.c.b16 %v231, %v229
  %v336 = vpack.c.b16 %v234, %v232
  %v337 = vpack.c.b16 %v235, %v233
  %v338 = vpack.c.b16 %v238, %v236
  %v339 = vpack.c.b16 %v239, %v237
  %v340 = vpack.c.b16 %v242, %v240
  %v341 = vpack.c.b16 %v243, %v241
  %v342 = vpack.c.b16 %v246, %v244
  %v343 = vpack.c.b16 %v247, %v245
  %v344 = vpack.c.b16 %v250, %v248
  %v345 = vpack.c.b16 %v251, %v249
  %v346 = vpack.c.b16 %v254, %v252
  %v347 = vpack.c.b16 %v255, %v253
  %v348 = vpack.c.b16 %v258, %v256
  %v349 = vpack.c.b16 %v259, %v257
  %v350 = vpack.c.b16 %v262, %v260
  %v351 = vpack.c.b16 %v263, %v261
  %v352 = vpack.c.b16 %v266, %v264
  %v353 = vpack.c.b16 %v267, %v265
  %v354 = vpack.c.b16 %v270, %v268
  %v355 = vpack.c.b16 %v271, %v269
  %v356 = vpack.c.b16 %v274, %v272
  %v357 = vpack.c.b16 %v275, %v273
  %v358 = vpack.c.b16 %v278, %v276
  %v359 = vpack.c.b16 %v279, %v277
  %v360 = vpack.c.b16 %v282, %v280
  %v361 = vpack.c.b16 %v283, %v281
  %v362 = vpack.c.b16 %v286, %v284
  %v363 = vpack.c.b16 %v287, %v285
  %v364 = vpack.c.b16 %v290, %v288
  %v365 = vpack.c.b16 %v291, %v289
  %v366 = vpack.c.b16 %v294, %v292
  %v367 = vpack.c.b16 %v295, %v293
  %v368 = vpack.c.b16 %v298, %v296
  %v369 = vpack.c.b16 %v299, %v297
  %v370 = vpack.c.b16 %v302, %v300
  %v371 = vpack.c.b16 %v303, %v301
  %v372 = vpack.c.b16 %v306, %v304
  %v373 = vpack.c.b16 %v307, %v305
  %v374 = vpack.c.b16 %v310, %v308
  %v375 = vpack.c.b16 %v311, %v309
  %v472 = vunpack.c.l.b16 %v88
  %v473 = vunpack.c.l.b16 %v89
  %v474 = vunpack.c.l.b16 %v90
  %v475 = vunpack.c.l.b16 %v91
  %v476 = vunpack.c.l.b16 %v92
  %v477 = vunpack.c.l.b16 %v93
  %v478 = vunpack.c.l.b16 %v94
  %v479 = vunpack.c.l.b16 %v95
  %v480 = vunpack.c.l.b16 %v96
  %v481 = vunpack.c.l.b16 %v97
  %v482 = vunpack.c.l.b16 %v98
  %v483 = vunpack.c.l.b16 %v99
  %v484 = vunpack.c.l.b16 %v100
  %v485 = vunpack.c.l.b16 %v101
  %v486 = vunpack.c.l.b16 %v102
  %v487 = vunpack.c.l.b16 %v103
  %v488 = vunpack.c.l.b16 %v104
  %v489 = vunpack.c.l.b16 %v105
  %v490 = vunpack.c.l.b16 %v106
  %v491 = vunpack.c.l.b16 %v107
  %v492 = vunpack.c.l.b16 %v108
  %v493 = vunpack.c.l.b16 %v109
  %v494 = vunpack.c.l.b16 %v110
  %v495 = vunpack.c.l.b16 %v111
  %v496 = vunpack.c.l.b16 %v112
  %v497 = vunpack.c.l.b16 %v113
  %v498 = vunpack.c.l.b16 %v114
  %v499 = vunpack.c.l.b16 %v115
  %v500 = vunpack.c.l.b16 %v116
  %v501 = vunpack.c.l.b16 %v117
  %v502 = vunpack.c.l.b16 %v118
  %v503 = vunpack.c.l.b16 %v119
  %v504 = vpack.c.b16 %v473, %v472
  %v505 = vpack.c.b16 %v475, %v474
  %v506 = vpack.c.b16 %v477, %v476
  %v507 = vpack.c.b16 %v479, %v478
  %v508 = vpack.c.b16 %v481, %v480
  %v509 = vpack.c.b16 %v483, %v482
  %v510 = vpack.c.b16 %v485, %v484
  %v511 = vpack.c.b16 %v487, %v486
  %v512 = vpack.c.b16 %v489, %v488
  %v513 = vpack.c.b16 %v491, %v490
  %v514 = vpack.c.b16 %v493, %v492
  %v515 = vpack.c.b16 %v495, %v494
  %v516 = vpack.c.b16 %v497, %v496
  %v517 = vpack.c.b16 %v499, %v498
  %v518 = vpack.c.b16 %v501, %v500
  %v519 = vpack.c.b16 %v503, %v502
  %536 = vmatprep.subr.bf16.mxu0 0
  %537 = vmatpush1.bf16.msra.mxu0 %v504
  %538 = vmatprep.subr.bf16.mxu0 0
  %539 = vmatpush1.bf16.msra.mxu0 %v505
  %540 = vmatprep.subr.bf16.mxu0 0
  %541 = vmatpush1.bf16.msra.mxu0 %v506
  %542 = vmatprep.subr.bf16.mxu0 0
  %543 = vmatpush1.bf16.msra.mxu0 %v507
  %544 = vmatprep.subr.bf16.mxu0 0
  %545 = vmatpush1.bf16.msra.mxu0 %v508
  %546 = vmatprep.subr.bf16.mxu0 0
  %547 = vmatpush1.bf16.msra.mxu0 %v509
  %548 = vmatprep.subr.bf16.mxu0 0
  %549 = vmatpush1.bf16.msra.mxu0 %v510
  %550 = vmatprep.subr.bf16.mxu0 0
  %551 = vmatpush1.bf16.msra.mxu0 %v511
  %552 = vmatprep.subr.bf16.mxu0 0
  %553 = vmatpush1.bf16.msra.mxu0 %v512
  %554 = vmatprep.subr.bf16.mxu0 0
  %555 = vmatpush1.bf16.msra.mxu0 %v513
  %556 = vmatprep.subr.bf16.mxu0 0
  %557 = vmatpush1.bf16.msra.mxu0 %v514
  %558 = vmatprep.subr.bf16.mxu0 0
  %559 = vmatpush1.bf16.msra.mxu0 %v515
  %560 = vmatprep.subr.bf16.mxu0 0
  %561 = vmatpush1.bf16.msra.mxu0 %v516
  %562 = vmatprep.subr.bf16.mxu0 0
  %563 = vmatpush1.bf16.msra.mxu0 %v517
  %564 = vmatprep.subr.bf16.mxu0 0
  %565 = vmatpush1.bf16.msra.mxu0 %v518
  %566 = vmatprep.subr.bf16.mxu0 0
  %567 = vmatpush1.bf16.msra.mxu0 %v519
  %568 = vmatprep.mubr.bf16.mxu0 %v313
  %569 = vmatmul.mubr.bf16.gmra.mrb[0].mxu0 %v312
  %v570 = vpop.f32.mrb[0].mxu0
  %v571 = vadd.f32 0.0, %v570
  %v572 = vpop.f32.mrb[0].mxu0
  %v573 = vpop.f32.mrb[0].mxu0
  %v574 = vadd.f32 0.0, %v573
  %v575 = vpop.f32.mrb[0].mxu0
  %576 = vmatprep.mubr.bf16.mxu0 %v315
  %577 = vmatmul.mubr.bf16.gmra.mrb[0].mxu0 %v314
  %v578 = vpop.f32.mrb[0].mxu0
  %v579 = vadd.f32 0.0, %v578
  %v580 = vpop.f32.mrb[0].mxu0
  %v581 = vpop.f32.mrb[0].mxu0
  %v582 = vadd.f32 0.0, %v581
  %v583 = vpop.f32.mrb[0].mxu0
  %584 = vmatprep.mubr.bf16.mxu0 %v317
  %585 = vmatmul.mubr.bf16.gmra.mrb[0].mxu0 %v316
  %v586 = vpop.f32.mrb[0].mxu0
  %v587 = vadd.f32 0.0, %v586
  %v588 = vpop.f32.mrb[0].mxu0
  %v589 = vpop.f32.mrb[0].mxu0
  %v590 = vadd.f32 0.0, %v589
  %v591 = vpop.f32.mrb[0].mxu0
  %592 = vmatprep.mubr.bf16.mxu0 %v319
  %593 = vmatmul.mubr.bf16.gmra.mrb[0].mxu0 %v318
  %v594 = vpop.f32.mrb[0].mxu0
  %v595 = vadd.f32 0.0, %v594
  %v596 = vpop.f32.mrb[0].mxu0
  %v597 = vpop.f32.mrb[0].mxu0
  %v598 = vadd.f32 0.0, %v597
  %v599 = vpop.f32.mrb[0].mxu0
  %600 = vmatprep.mubr.bf16.mxu0 %v321
  %601 = vmatmul.mubr.bf16.gmra.mrb[0].mxu0 %v320
  %v602 = vpop.f32.mrb[0].mxu0
  %v603 = vadd.f32 0.0, %v602
  %v604 = vpop.f32.mrb[0].mxu0
  %v605 = vpop.f32.mrb[0].mxu0
  %v606 = vadd.f32 0.0, %v605
  %v607 = vpop.f32.mrb[0].mxu0
  %608 = vmatprep.mubr.bf16.mxu0 %v323
  %609 = vmatmul.mubr.bf16.gmra.mrb[0].mxu0 %v322
  %v610 = vpop.f32.mrb[0].mxu0
  %v611 = vadd.f32 0.0, %v610
  %v612 = vpop.f32.mrb[0].mxu0
  %v613 = vpop.f32.mrb[0].mxu0
  %v614 = vadd.f32 0.0, %v613
  %v615 = vpop.f32.mrb[0].mxu0
  %616 = vmatprep.mubr.bf16.mxu0 %v325
  %617 = vmatmul.mubr.bf16.gmra.mrb[0].mxu0 %v324
  %v618 = vpop.f32.mrb[0].mxu0
  %v619 = vadd.f32 0.0, %v618
  %v620 = vpop.f32.mrb[0].mxu0
  %v621 = vpop.f32.mrb[0].mxu0
  %v622 = vadd.f32 0.0, %v621
  %v623 = vpop.f32.mrb[0].mxu0
  %624 = vmatprep.mubr.bf16.mxu0 %v327
  %625 = vmatmul.mubr.bf16.gmra.mrb[0].mxu0 %v326
  %v626 = vpop.f32.mrb[0].mxu0
  %v627 = vadd.f32 0.0, %v626
  %v628 = vpop.f32.mrb[0].mxu0
  %v629 = vpop.f32.mrb[0].mxu0
  %v630 = vadd.f32 0.0, %v629
  %v631 = vpop.f32.mrb[0].mxu0
  %632 = vmatprep.mubr.bf16.mxu0 %v329
  %633 = vmatmul.mubr.bf16.gmra.mrb[0].mxu0 %v328
  %v634 = vpop.f32.mrb[0].mxu0
  %v635 = vadd.f32 0.0, %v634
  %v636 = vpop.f32.mrb[0].mxu0
  %v637 = vpop.f32.mrb[0].mxu0
  %v638 = vadd.f32 0.0, %v637
  %v639 = vpop.f32.mrb[0].mxu0
  %640 = vmatprep.mubr.bf16.mxu0 %v331
  %641 = vmatmul.mubr.bf16.gmra.mrb[0].mxu0 %v330
  %v642 = vpop.f32.mrb[0].mxu0
  %v643 = vadd.f32 0.0, %v642
  %v644 = vpop.f32.mrb[0].mxu0
  %v645 = vpop.f32.mrb[0].mxu0
  %v646 = vadd.f32 0.0, %v645
  %v647 = vpop.f32.mrb[0].mxu0
  %648 = vmatprep.mubr.bf16.mxu0 %v333
  %649 = vmatmul.mubr.bf16.gmra.mrb[0].mxu0 %v332
  %v650 = vpop.f32.mrb[0].mxu0
  %v651 = vadd.f32 0.0, %v650
  %v652 = vpop.f32.mrb[0].mxu0
  %v653 = vpop.f32.mrb[0].mxu0
  %v654 = vadd.f32 0.0, %v653
  %v655 = vpop.f32.mrb[0].mxu0
  %656 = vmatprep.mubr.bf16.mxu0 %v335
  %657 = vmatmul.mubr.bf16.gmra.mrb[0].mxu0 %v334
  %v658 = vpop.f32.mrb[0].mxu0
  %v659 = vadd.f32 0.0, %v658
  %v660 = vpop.f32.mrb[0].mxu0
  %v661 = vpop.f32.mrb[0].mxu0
  %v662 = vadd.f32 0.0, %v661
  %v663 = vpop.f32.mrb[0].mxu0
  %664 = vmatprep.mubr.bf16.mxu0 %v337
  %665 = vmatmul.mubr.bf16.gmra.mrb[0].mxu0 %v336
  %v666 = vpop.f32.mrb[0].mxu0
  %v667 = vadd.f32 0.0, %v666
  %v668 = vpop.f32.mrb[0].mxu0
  %v669 = vpop.f32.mrb[0].mxu0
  %v670 = vadd.f32 0.0, %v669
  %v671 = vpop.f32.mrb[0].mxu0
  %672 = vmatprep.mubr.bf16.mxu0 %v339
  %673 = vmatmul.mubr.bf16.gmra.mrb[0].mxu0 %v338
  %v674 = vpop.f32.mrb[0].mxu0
  %v675 = vadd.f32 0.0, %v674
  %v676 = vpop.f32.mrb[0].mxu0
  %v677 = vpop.f32.mrb[0].mxu0
  %v678 = vadd.f32 0.0, %v677
  %v679 = vpop.f32.mrb[0].mxu0
  %680 = vmatprep.mubr.bf16.mxu0 %v341
  %681 = vmatmul.mubr.bf16.gmra.mrb[0].mxu0 %v340
  %v682 = vpop.f32.mrb[0].mxu0
  %v683 = vadd.f32 0.0, %v682
  %v684 = vpop.f32.mrb[0].mxu0
  %v685 = vpop.f32.mrb[0].mxu0
  %v686 = vadd.f32 0.0, %v685
  %v687 = vpop.f32.mrb[0].mxu0
  %688 = vmatprep.mubr.bf16.mxu0 %v343
  %689 = vmatmul.mubr.bf16.gmra.mrb[0].mxu0 %v342
  %v690 = vpop.f32.mrb[0].mxu0
  %v691 = vadd.f32 0.0, %v690
  %v692 = vpop.f32.mrb[0].mxu0
  %v693 = vpop.f32.mrb[0].mxu0
  %v694 = vadd.f32 0.0, %v693
  %v695 = vpop.f32.mrb[0].mxu0
  %696 = vmatprep.mubr.bf16.mxu0 %v345
  %697 = vmatmul.mubr.bf16.gmra.mrb[0].mxu0 %v344
  %v698 = vpop.f32.mrb[0].mxu0
  %v699 = vadd.f32 0.0, %v698
  %v700 = vpop.f32.mrb[0].mxu0
  %v701 = vpop.f32.mrb[0].mxu0
  %v702 = vadd.f32 0.0, %v701
  %v703 = vpop.f32.mrb[0].mxu0
  %704 = vmatprep.mubr.bf16.mxu0 %v347
  %705 = vmatmul.mubr.bf16.gmra.mrb[0].mxu0 %v346
  %v706 = vpop.f32.mrb[0].mxu0
  %v707 = vadd.f32 0.0, %v706
  %v708 = vpop.f32.mrb[0].mxu0
  %v709 = vpop.f32.mrb[0].mxu0
  %v710 = vadd.f32 0.0, %v709
  %v711 = vpop.f32.mrb[0].mxu0
  %712 = vmatprep.mubr.bf16.mxu0 %v349
  %713 = vmatmul.mubr.bf16.gmra.mrb[0].mxu0 %v348
  %v714 = vpop.f32.mrb[0].mxu0
  %v715 = vadd.f32 0.0, %v714
  %v716 = vpop.f32.mrb[0].mxu0
  %v717 = vpop.f32.mrb[0].mxu0
  %v718 = vadd.f32 0.0, %v717
  %v719 = vpop.f32.mrb[0].mxu0
  %720 = vmatprep.mubr.bf16.mxu0 %v351
  %721 = vmatmul.mubr.bf16.gmra.mrb[0].mxu0 %v350
  %v722 = vpop.f32.mrb[0].mxu0
  %v723 = vadd.f32 0.0, %v722
  %v724 = vpop.f32.mrb[0].mxu0
  %v725 = vpop.f32.mrb[0].mxu0
  %v726 = vadd.f32 0.0, %v725
  %v727 = vpop.f32.mrb[0].mxu0
  %728 = vmatprep.mubr.bf16.mxu0 %v353
  %729 = vmatmul.mubr.bf16.gmra.mrb[0].mxu0 %v352
  %v730 = vpop.f32.mrb[0].mxu0
  %v731 = vadd.f32 0.0, %v730
  %v732 = vpop.f32.mrb[0].mxu0
  %v733 = vpop.f32.mrb[0].mxu0
  %v734 = vadd.f32 0.0, %v733
  %v735 = vpop.f32.mrb[0].mxu0
  %736 = vmatprep.mubr.bf16.mxu0 %v355
  %737 = vmatmul.mubr.bf16.gmra.mrb[0].mxu0 %v354
  %v738 = vpop.f32.mrb[0].mxu0
  %v739 = vadd.f32 0.0, %v738
  %v740 = vpop.f32.mrb[0].mxu0
  %v741 = vpop.f32.mrb[0].mxu0
  %v742 = vadd.f32 0.0, %v741
  %v743 = vpop.f32.mrb[0].mxu0
  %744 = vmatprep.mubr.bf16.mxu0 %v357
  %745 = vmatmul.mubr.bf16.gmra.mrb[0].mxu0 %v356
  %v746 = vpop.f32.mrb[0].mxu0
  %v747 = vadd.f32 0.0, %v746
  %v748 = vpop.f32.mrb[0].mxu0
  %v749 = vpop.f32.mrb[0].mxu0
  %v750 = vadd.f32 0.0, %v749
  %v751 = vpop.f32.mrb[0].mxu0
  %752 = vmatprep.mubr.bf16.mxu0 %v359
  %753 = vmatmul.mubr.bf16.gmra.mrb[0].mxu0 %v358
  %v754 = vpop.f32.mrb[0].mxu0
  %v755 = vadd.f32 0.0, %v754
  %v756 = vpop.f32.mrb[0].mxu0
  %v757 = vpop.f32.mrb[0].mxu0
  %v758 = vadd.f32 0.0, %v757
  %v759 = vpop.f32.mrb[0].mxu0
  %760 = vmatprep.mubr.bf16.mxu0 %v361
  %761 = vmatmul.mubr.bf16.gmra.mrb[0].mxu0 %v360
  %v762 = vpop.f32.mrb[0].mxu0
  %v763 = vadd.f32 0.0, %v762
  %v764 = vpop.f32.mrb[0].mxu0
  %v765 = vpop.f32.mrb[0].mxu0
  %v766 = vadd.f32 0.0, %v765
  %v767 = vpop.f32.mrb[0].mxu0
  %768 = vmatprep.mubr.bf16.mxu0 %v363
  %769 = vmatmul.mubr.bf16.gmra.mrb[0].mxu0 %v362
  %v770 = vpop.f32.mrb[0].mxu0
  %v771 = vadd.f32 0.0, %v770
  %v772 = vpop.f32.mrb[0].mxu0
  %v773 = vpop.f32.mrb[0].mxu0
  %v774 = vadd.f32 0.0, %v773
  %v775 = vpop.f32.mrb[0].mxu0
  %776 = vmatprep.mubr.bf16.mxu0 %v365
  %777 = vmatmul.mubr.bf16.gmra.mrb[0].mxu0 %v364
  %v778 = vpop.f32.mrb[0].mxu0
  %v779 = vadd.f32 0.0, %v778
  %v780 = vpop.f32.mrb[0].mxu0
  %v781 = vpop.f32.mrb[0].mxu0
  %v782 = vadd.f32 0.0, %v781
  %v783 = vpop.f32.mrb[0].mxu0
  %784 = vmatprep.mubr.bf16.mxu0 %v367
  %785 = vmatmul.mubr.bf16.gmra.mrb[0].mxu0 %v366
  %v786 = vpop.f32.mrb[0].mxu0
  %v787 = vadd.f32 0.0, %v786
  %v788 = vpop.f32.mrb[0].mxu0
  %v789 = vpop.f32.mrb[0].mxu0
  %v790 = vadd.f32 0.0, %v789
  %v791 = vpop.f32.mrb[0].mxu0
  %792 = vmatprep.mubr.bf16.mxu0 %v369
  %793 = vmatmul.mubr.bf16.gmra.mrb[0].mxu0 %v368
  %v794 = vpop.f32.mrb[0].mxu0
  %v795 = vadd.f32 0.0, %v794
  %v796 = vpop.f32.mrb[0].mxu0
  %v797 = vpop.f32.mrb[0].mxu0
  %v798 = vadd.f32 0.0, %v797
  %v799 = vpop.f32.mrb[0].mxu0
  %800 = vmatprep.mubr.bf16.mxu0 %v371
  %801 = vmatmul.mubr.bf16.gmra.mrb[0].mxu0 %v370
  %v802 = vpop.f32.mrb[0].mxu0
  %v803 = vadd.f32 0.0, %v802
  %v804 = vpop.f32.mrb[0].mxu0
  %v805 = vpop.f32.mrb[0].mxu0
  %v806 = vadd.f32 0.0, %v805
  %v807 = vpop.f32.mrb[0].mxu0
  %808 = vmatprep.mubr.bf16.mxu0 %v373
  %809 = vmatmul.mubr.bf16.gmra.mrb[0].mxu0 %v372
  %v810 = vpop.f32.mrb[0].mxu0
  %v811 = vadd.f32 0.0, %v810
  %v812 = vpop.f32.mrb[0].mxu0
  %v813 = vpop.f32.mrb[0].mxu0
  %v814 = vadd.f32 0.0, %v813
  %v815 = vpop.f32.mrb[0].mxu0
  %816 = vmatprep.mubr.bf16.mxu0 %v375
  %817 = vmatmul.mubr.bf16.gmra.mrb[0].mxu0 %v374
  %v818 = vpop.f32.mrb[0].mxu0
  %v819 = vadd.f32 0.0, %v818
  %v820 = vpop.f32.mrb[0].mxu0
  %v821 = vpop.f32.mrb[0].mxu0
  %v822 = vadd.f32 0.0, %v821
  %v823 = vpop.f32.mrb[0].mxu0
  %824 = vdwg.mxu0
  %vm825 = vcmask 293888
  %v826 = vsel %vm825, %v571, 0.0
  %v827 = vsel %vm825, %v574, 0.0
  %v828 = vadd.f32 %v826, %v827
  %v829 = vsel %vm825, %v579, 0.0
  %v830 = vadd.f32 %v828, %v829
  %v831 = vsel %vm825, %v582, 0.0
  %v832 = vadd.f32 %v830, %v831
  %v833 = vsel %vm825, %v587, 0.0
  %v834 = vadd.f32 %v832, %v833
  %v835 = vsel %vm825, %v590, 0.0
  %v836 = vadd.f32 %v834, %v835
  %v837 = vsel %vm825, %v595, 0.0
  %v838 = vadd.f32 %v836, %v837
  %v839 = vsel %vm825, %v598, 0.0
  %v840 = vadd.f32 %v838, %v839
  %v841 = vsel %vm825, %v603, 0.0
  %v842 = vadd.f32 %v840, %v841
  %v843 = vsel %vm825, %v606, 0.0
  %v844 = vadd.f32 %v842, %v843
  %v845 = vsel %vm825, %v611, 0.0
  %v846 = vadd.f32 %v844, %v845
  %v847 = vsel %vm825, %v614, 0.0
  %v848 = vadd.f32 %v846, %v847
  %v849 = vsel %vm825, %v619, 0.0
  %v850 = vadd.f32 %v848, %v849
  %v851 = vsel %vm825, %v622, 0.0
  %v852 = vadd.f32 %v850, %v851
  %v853 = vsel %vm825, %v627, 0.0
  %v854 = vadd.f32 %v852, %v853
  %v855 = vsel %vm825, %v630, 0.0
  %v856 = vadd.f32 %v854, %v855
  %v857 = vsel %vm825, %v635, 0.0
  %v858 = vadd.f32 %v856, %v857
  %v859 = vsel %vm825, %v638, 0.0
  %v860 = vadd.f32 %v858, %v859
  %v861 = vsel %vm825, %v643, 0.0
  %v862 = vadd.f32 %v860, %v861
  %v863 = vsel %vm825, %v646, 0.0
  %v864 = vadd.f32 %v862, %v863
  %v865 = vsel %vm825, %v651, 0.0
  %v866 = vadd.f32 %v864, %v865
  %v867 = vsel %vm825, %v654, 0.0
  %v868 = vadd.f32 %v866, %v867
  %v869 = vsel %vm825, %v659, 0.0
  %v870 = vadd.f32 %v868, %v869
  %v871 = vsel %vm825, %v662, 0.0
  %v872 = vadd.f32 %v870, %v871
  %v873 = vsel %vm825, %v667, 0.0
  %v874 = vadd.f32 %v872, %v873
  %v875 = vsel %vm825, %v670, 0.0
  %v876 = vadd.f32 %v874, %v875
  %v877 = vsel %vm825, %v675, 0.0
  %v878 = vadd.f32 %v876, %v877
  %v879 = vsel %vm825, %v678, 0.0
  %v880 = vadd.f32 %v878, %v879
  %v881 = vsel %vm825, %v683, 0.0
  %v882 = vadd.f32 %v880, %v881
  %v883 = vsel %vm825, %v686, 0.0
  %v884 = vadd.f32 %v882, %v883
  %v885 = vsel %vm825, %v691, 0.0
  %v886 = vadd.f32 %v884, %v885
  %v887 = vsel %vm825, %v694, 0.0
  %v888 = vadd.f32 %v886, %v887
  %v889 = vsel %vm825, %v699, 0.0
  %v890 = vadd.f32 %v888, %v889
  %v891 = vsel %vm825, %v702, 0.0
  %v892 = vadd.f32 %v890, %v891
  %v893 = vsel %vm825, %v707, 0.0
  %v894 = vadd.f32 %v892, %v893
  %v895 = vsel %vm825, %v710, 0.0
  %v896 = vadd.f32 %v894, %v895
  %v897 = vsel %vm825, %v715, 0.0
  %v898 = vadd.f32 %v896, %v897
  %v899 = vsel %vm825, %v718, 0.0
  %v900 = vadd.f32 %v898, %v899
  %v901 = vsel %vm825, %v723, 0.0
  %v902 = vadd.f32 %v900, %v901
  %v903 = vsel %vm825, %v726, 0.0
  %v904 = vadd.f32 %v902, %v903
  %v905 = vsel %vm825, %v731, 0.0
  %v906 = vadd.f32 %v904, %v905
  %v907 = vsel %vm825, %v734, 0.0
  %v908 = vadd.f32 %v906, %v907
  %v909 = vsel %vm825, %v739, 0.0
  %v910 = vadd.f32 %v908, %v909
  %v911 = vsel %vm825, %v742, 0.0
  %v912 = vadd.f32 %v910, %v911
  %v913 = vsel %vm825, %v747, 0.0
  %v914 = vadd.f32 %v912, %v913
  %v915 = vsel %vm825, %v750, 0.0
  %v916 = vadd.f32 %v914, %v915
  %v917 = vsel %vm825, %v755, 0.0
  %v918 = vadd.f32 %v916, %v917
  %v919 = vsel %vm825, %v758, 0.0
  %v920 = vadd.f32 %v918, %v919
  %v921 = vsel %vm825, %v763, 0.0
  %v922 = vadd.f32 %v920, %v921
  %v923 = vsel %vm825, %v766, 0.0
  %v924 = vadd.f32 %v922, %v923
  %v925 = vsel %vm825, %v771, 0.0
  %v926 = vadd.f32 %v924, %v925
  %v927 = vsel %vm825, %v774, 0.0
  %v928 = vadd.f32 %v926, %v927
  %v929 = vsel %vm825, %v779, 0.0
  %v930 = vadd.f32 %v928, %v929
  %v931 = vsel %vm825, %v782, 0.0
  %v932 = vadd.f32 %v930, %v931
  %v933 = vsel %vm825, %v787, 0.0
  %v934 = vadd.f32 %v932, %v933
  %v935 = vsel %vm825, %v790, 0.0
  %v936 = vadd.f32 %v934, %v935
  %v937 = vsel %vm825, %v795, 0.0
  %v938 = vadd.f32 %v936, %v937
  %v939 = vsel %vm825, %v798, 0.0
  %v940 = vadd.f32 %v938, %v939
  %v941 = vsel %vm825, %v803, 0.0
  %v942 = vadd.f32 %v940, %v941
  %v943 = vsel %vm825, %v806, 0.0
  %v944 = vadd.f32 %v942, %v943
  %v945 = vsel %vm825, %v811, 0.0
  %v946 = vadd.f32 %v944, %v945
  %v947 = vsel %vm825, %v814, 0.0
  %v948 = vadd.f32 %v946, %v947
  %v949 = vsel %vm825, %v819, 0.0
  %v950 = vadd.f32 %v948, %v949
  %v951 = vsel %vm825, %v822, 0.0
  %v952 = vadd.f32 %v950, %v951
  %v953 = vrot.slane %v952, 4
  %v954 = vadd.f32 %v952, %v953
  %v955 = vrot.slane %v954, 2
  %v956 = vadd.f32 %v954, %v955
  %v957 = vrot.slane %v956, 1
  %v958 = vadd.f32 %v956, %v957
  %v959 = vmul.f32 %v958, 0.001953125
  %v960 = vld [vmem:[%s2] sm:$0x1]
  %v961 = vmul.f32 %v959, %v960
  %v962 = vlaneseq
  %v963 = vshrl.u32 %v962, 7
  %v964 = vsub.s32 0, %v963
  %v965 = vrot.slane %v961, %v964
  %v966 = vsub.f32 %v571, %v965
  %v967 = vsub.f32 %v574, %v965
  %v968 = vsub.f32 %v579, %v965
  %v969 = vsub.f32 %v582, %v965
  %v970 = vsub.f32 %v587, %v965
  %v971 = vsub.f32 %v590, %v965
  %v972 = vsub.f32 %v595, %v965
  %v973 = vsub.f32 %v598, %v965
  %v974 = vsub.f32 %v603, %v965
  %v975 = vsub.f32 %v606, %v965
  %v976 = vsub.f32 %v611, %v965
  %v977 = vsub.f32 %v614, %v965
  %v978 = vsub.f32 %v619, %v965
  %v979 = vsub.f32 %v622, %v965
  %v980 = vsub.f32 %v627, %v965
  %v981 = vsub.f32 %v630, %v965
  %v982 = vsub.f32 %v635, %v965
  %v983 = vsub.f32 %v638, %v965
  %v984 = vsub.f32 %v643, %v965
  %v985 = vsub.f32 %v646, %v965
  %v986 = vsub.f32 %v651, %v965
  %v987 = vsub.f32 %v654, %v965
  %v988 = vsub.f32 %v659, %v965
  %v989 = vsub.f32 %v662, %v965
  %v990 = vsub.f32 %v667, %v965
  %v991 = vsub.f32 %v670, %v965
  %v992 = vsub.f32 %v675, %v965
  %v993 = vsub.f32 %v678, %v965
  %v994 = vsub.f32 %v683, %v965
  %v995 = vsub.f32 %v686, %v965
  %v996 = vsub.f32 %v691, %v965
  %v997 = vsub.f32 %v694, %v965
  %v998 = vsub.f32 %v699, %v965
  %v999 = vsub.f32 %v702, %v965
  %v1000 = vsub.f32 %v707, %v965
  %v1001 = vsub.f32 %v710, %v965
  %v1002 = vsub.f32 %v715, %v965
  %v1003 = vsub.f32 %v718, %v965
  %v1004 = vsub.f32 %v723, %v965
  %v1005 = vsub.f32 %v726, %v965
  %v1006 = vsub.f32 %v731, %v965
  %v1007 = vsub.f32 %v734, %v965
  %v1008 = vsub.f32 %v739, %v965
  %v1009 = vsub.f32 %v742, %v965
  %v1010 = vsub.f32 %v747, %v965
  %v1011 = vsub.f32 %v750, %v965
  %v1012 = vsub.f32 %v755, %v965
  %v1013 = vsub.f32 %v758, %v965
  %v1014 = vsub.f32 %v763, %v965
  %v1015 = vsub.f32 %v766, %v965
  %v1016 = vsub.f32 %v771, %v965
  %v1017 = vsub.f32 %v774, %v965
  %v1018 = vsub.f32 %v779, %v965
  %v1019 = vsub.f32 %v782, %v965
  %v1020 = vsub.f32 %v787, %v965
  %v1021 = vsub.f32 %v790, %v965
  %v1022 = vsub.f32 %v795, %v965
  %v1023 = vsub.f32 %v798, %v965
  %v1024 = vsub.f32 %v803, %v965
  %v1025 = vsub.f32 %v806, %v965
  %v1026 = vsub.f32 %v811, %v965
  %v1027 = vsub.f32 %v814, %v965
  %v1028 = vsub.f32 %v819, %v965
  %v1029 = vsub.f32 %v822, %v965
  %v1030 = vmul.f32 %v966, %v966
  %v1031 = vmul.f32 %v967, %v967
  %v1032 = vmul.f32 %v968, %v968
  %v1033 = vmul.f32 %v969, %v969
  %v1034 = vmul.f32 %v970, %v970
  %v1035 = vmul.f32 %v971, %v971
  %v1036 = vmul.f32 %v972, %v972
  %v1037 = vmul.f32 %v973, %v973
  %v1038 = vmul.f32 %v974, %v974
  %v1039 = vmul.f32 %v975, %v975
  %v1040 = vmul.f32 %v976, %v976
  %v1041 = vmul.f32 %v977, %v977
  %v1042 = vmul.f32 %v978, %v978
  %v1043 = vmul.f32 %v979, %v979
  %v1044 = vmul.f32 %v980, %v980
  %v1045 = vmul.f32 %v981, %v981
  %v1046 = vmul.f32 %v982, %v982
  %v1047 = vmul.f32 %v983, %v983
  %v1048 = vmul.f32 %v984, %v984
  %v1049 = vmul.f32 %v985, %v985
  %v1050 = vmul.f32 %v986, %v986
  %v1051 = vmul.f32 %v987, %v987
  %v1052 = vmul.f32 %v988, %v988
  %v1053 = vmul.f32 %v989, %v989
  %v1054 = vmul.f32 %v990, %v990
  %v1055 = vmul.f32 %v991, %v991
  %v1056 = vmul.f32 %v992, %v992
  %v1057 = vmul.f32 %v993, %v993
  %v1058 = vmul.f32 %v994, %v994
  %v1059 = vmul.f32 %v995, %v995
  %v1060 = vmul.f32 %v996, %v996
  %v1061 = vmul.f32 %v997, %v997
  %v1062 = vmul.f32 %v998, %v998
  %v1063 = vmul.f32 %v999, %v999
  %v1064 = vmul.f32 %v1000, %v1000
  %v1065 = vmul.f32 %v1001, %v1001
  %v1066 = vmul.f32 %v1002, %v1002
  %v1067 = vmul.f32 %v1003, %v1003
  %v1068 = vmul.f32 %v1004, %v1004
  %v1069 = vmul.f32 %v1005, %v1005
  %v1070 = vmul.f32 %v1006, %v1006
  %v1071 = vmul.f32 %v1007, %v1007
  %v1072 = vmul.f32 %v1008, %v1008
  %v1073 = vmul.f32 %v1009, %v1009
  %v1074 = vmul.f32 %v1010, %v1010
  %v1075 = vmul.f32 %v1011, %v1011
  %v1076 = vmul.f32 %v1012, %v1012
  %v1077 = vmul.f32 %v1013, %v1013
  %v1078 = vmul.f32 %v1014, %v1014
  %v1079 = vmul.f32 %v1015, %v1015
  %v1080 = vmul.f32 %v1016, %v1016
  %v1081 = vmul.f32 %v1017, %v1017
  %v1082 = vmul.f32 %v1018, %v1018
  %v1083 = vmul.f32 %v1019, %v1019
  %v1084 = vmul.f32 %v1020, %v1020
  %v1085 = vmul.f32 %v1021, %v1021
  %v1086 = vmul.f32 %v1022, %v1022
  %v1087 = vmul.f32 %v1023, %v1023
  %v1088 = vmul.f32 %v1024, %v1024
  %v1089 = vmul.f32 %v1025, %v1025
  %v1090 = vmul.f32 %v1026, %v1026
  %v1091 = vmul.f32 %v1027, %v1027
  %v1092 = vmul.f32 %v1028, %v1028
  %v1093 = vmul.f32 %v1029, %v1029
  %v1094 = vsel %vm825, %v1030, 0.0
  %v1095 = vsel %vm825, %v1031, 0.0
  %v1096 = vadd.f32 %v1094, %v1095
  %v1097 = vsel %vm825, %v1032, 0.0
  %v1098 = vadd.f32 %v1096, %v1097
  %v1099 = vsel %vm825, %v1033, 0.0
  %v1100 = vadd.f32 %v1098, %v1099
  %v1101 = vsel %vm825, %v1034, 0.0
  %v1102 = vadd.f32 %v1100, %v1101
  %v1103 = vsel %vm825, %v1035, 0.0
  %v1104 = vadd.f32 %v1102, %v1103
  %v1105 = vsel %vm825, %v1036, 0.0
  %v1106 = vadd.f32 %v1104, %v1105
  %v1107 = vsel %vm825, %v1037, 0.0
  %v1108 = vadd.f32 %v1106, %v1107
  %v1109 = vsel %vm825, %v1038, 0.0
  %v1110 = vadd.f32 %v1108, %v1109
  %v1111 = vsel %vm825, %v1039, 0.0
  %v1112 = vadd.f32 %v1110, %v1111
  %v1113 = vsel %vm825, %v1040, 0.0
  %v1114 = vadd.f32 %v1112, %v1113
  %v1115 = vsel %vm825, %v1041, 0.0
  %v1116 = vadd.f32 %v1114, %v1115
  %v1117 = vsel %vm825, %v1042, 0.0
  %v1118 = vadd.f32 %v1116, %v1117
  %v1119 = vsel %vm825, %v1043, 0.0
  %v1120 = vadd.f32 %v1118, %v1119
  %v1121 = vsel %vm825, %v1044, 0.0
  %v1122 = vadd.f32 %v1120, %v1121
  %v1123 = vsel %vm825, %v1045, 0.0
  %v1124 = vadd.f32 %v1122, %v1123
  %v1125 = vsel %vm825, %v1046, 0.0
  %v1126 = vadd.f32 %v1124, %v1125
  %v1127 = vsel %vm825, %v1047, 0.0
  %v1128 = vadd.f32 %v1126, %v1127
  %v1129 = vsel %vm825, %v1048, 0.0
  %v1130 = vadd.f32 %v1128, %v1129
  %v1131 = vsel %vm825, %v1049, 0.0
  %v1132 = vadd.f32 %v1130, %v1131
  %v1133 = vsel %vm825, %v1050, 0.0
  %v1134 = vadd.f32 %v1132, %v1133
  %v1135 = vsel %vm825, %v1051, 0.0
  %v1136 = vadd.f32 %v1134, %v1135
  %v1137 = vsel %vm825, %v1052, 0.0
  %v1138 = vadd.f32 %v1136, %v1137
  %v1139 = vsel %vm825, %v1053, 0.0
  %v1140 = vadd.f32 %v1138, %v1139
  %v1141 = vsel %vm825, %v1054, 0.0
  %v1142 = vadd.f32 %v1140, %v1141
  %v1143 = vsel %vm825, %v1055, 0.0
  %v1144 = vadd.f32 %v1142, %v1143
  %v1145 = vsel %vm825, %v1056, 0.0
  %v1146 = vadd.f32 %v1144, %v1145
  %v1147 = vsel %vm825, %v1057, 0.0
  %v1148 = vadd.f32 %v1146, %v1147
  %v1149 = vsel %vm825, %v1058, 0.0
  %v1150 = vadd.f32 %v1148, %v1149
  %v1151 = vsel %vm825, %v1059, 0.0
  %v1152 = vadd.f32 %v1150, %v1151
  %v1153 = vsel %vm825, %v1060, 0.0
  %v1154 = vadd.f32 %v1152, %v1153
  %v1155 = vsel %vm825, %v1061, 0.0
  %v1156 = vadd.f32 %v1154, %v1155
  %v1157 = vsel %vm825, %v1062, 0.0
  %v1158 = vadd.f32 %v1156, %v1157
  %v1159 = vsel %vm825, %v1063, 0.0
  %v1160 = vadd.f32 %v1158, %v1159
  %v1161 = vsel %vm825, %v1064, 0.0
  %v1162 = vadd.f32 %v1160, %v1161
  %v1163 = vsel %vm825, %v1065, 0.0
  %v1164 = vadd.f32 %v1162, %v1163
  %v1165 = vsel %vm825, %v1066, 0.0
  %v1166 = vadd.f32 %v1164, %v1165
  %v1167 = vsel %vm825, %v1067, 0.0
  %v1168 = vadd.f32 %v1166, %v1167
  %v1169 = vsel %vm825, %v1068, 0.0
  %v1170 = vadd.f32 %v1168, %v1169
  %v1171 = vsel %vm825, %v1069, 0.0
  %v1172 = vadd.f32 %v1170, %v1171
  %v1173 = vsel %vm825, %v1070, 0.0
  %v1174 = vadd.f32 %v1172, %v1173
  %v1175 = vsel %vm825, %v1071, 0.0
  %v1176 = vadd.f32 %v1174, %v1175
  %v1177 = vsel %vm825, %v1072, 0.0
  %v1178 = vadd.f32 %v1176, %v1177
  %v1179 = vsel %vm825, %v1073, 0.0
  %v1180 = vadd.f32 %v1178, %v1179
  %v1181 = vsel %vm825, %v1074, 0.0
  %v1182 = vadd.f32 %v1180, %v1181
  %v1183 = vsel %vm825, %v1075, 0.0
  %v1184 = vadd.f32 %v1182, %v1183
  %v1185 = vsel %vm825, %v1076, 0.0
  %v1186 = vadd.f32 %v1184, %v1185
  %v1187 = vsel %vm825, %v1077, 0.0
  %v1188 = vadd.f32 %v1186, %v1187
  %v1189 = vsel %vm825, %v1078, 0.0
  %v1190 = vadd.f32 %v1188, %v1189
  %v1191 = vsel %vm825, %v1079, 0.0
  %v1192 = vadd.f32 %v1190, %v1191
  %v1193 = vsel %vm825, %v1080, 0.0
  %v1194 = vadd.f32 %v1192, %v1193
  %v1195 = vsel %vm825, %v1081, 0.0
  %v1196 = vadd.f32 %v1194, %v1195
  %v1197 = vsel %vm825, %v1082, 0.0
  %v1198 = vadd.f32 %v1196, %v1197
  %v1199 = vsel %vm825, %v1083, 0.0
  %v1200 = vadd.f32 %v1198, %v1199
  %v1201 = vsel %vm825, %v1084, 0.0
  %v1202 = vadd.f32 %v1200, %v1201
  %v1203 = vsel %vm825, %v1085, 0.0
  %v1204 = vadd.f32 %v1202, %v1203
  %v1205 = vsel %vm825, %v1086, 0.0
  %v1206 = vadd.f32 %v1204, %v1205
  %v1207 = vsel %vm825, %v1087, 0.0
  %v1208 = vadd.f32 %v1206, %v1207
  %v1209 = vsel %vm825, %v1088, 0.0
  %v1210 = vadd.f32 %v1208, %v1209
  %v1211 = vsel %vm825, %v1089, 0.0
  %v1212 = vadd.f32 %v1210, %v1211
  %v1213 = vsel %vm825, %v1090, 0.0
  %v1214 = vadd.f32 %v1212, %v1213
  %v1215 = vsel %vm825, %v1091, 0.0
  %v1216 = vadd.f32 %v1214, %v1215
  %v1217 = vsel %vm825, %v1092, 0.0
  %v1218 = vadd.f32 %v1216, %v1217
  %v1219 = vsel %vm825, %v1093, 0.0
  %v1220 = vadd.f32 %v1218, %v1219
  %v1221 = vrot.slane %v1220, 4
  %v1222 = vadd.f32 %v1220, %v1221
  %v1223 = vrot.slane %v1222, 2
  %v1224 = vadd.f32 %v1222, %v1223
  %v1225 = vrot.slane %v1224, 1
  %v1226 = vadd.f32 %v1224, %v1225
  %v1227 = vmul.f32 %v1226, 0.001953125
  %v1228 = vld [vmem:[%s3] sm:$0xff]
  %v1229 = vld [vmem:[%s3 + $0x8] sm:$0xff]
  %v1230 = vld [vmem:[%s3 + $0x10] sm:$0xff]
  %v1231 = vld [vmem:[%s3 + $0x18] sm:$0xff]
  %v1232 = vld [vmem:[%s3 + $0x20] sm:$0xf]
  %v1234 = vsel %vm825, %v1227, 0
  %vm1236 = vcmask 1043456
  %v1238 = vsel %vm1236, %v1232, 0
  %1240 = vmatprep.subr.mxu0 0.0
  %1241 = vmatpush1.msra.mxu0 %v1228
  %1242 = vmatprep.subr.mxu0 0.0
  %1243 = vmatpush1.msra.mxu0 %v1229
  %1244 = vmatprep.subr.mxu0 0.0
  %1245 = vmatpush1.msra.mxu0 %v1230
  %1246 = vmatprep.subr.mxu0 0.0
  %1247 = vmatpush1.msra.mxu0 %v1231
  %1248 = vmatprep.subr.mxu0 0.0
  %1249 = vmatpush1.msra.mxu0 %v1238
  %1250 = vmatprep.subr.mxu0 0.0
  %1251 = vmatpush1.msra.mxu0 0.0
  %1252 = vmatprep.subr.mxu0 0.0
  %1253 = vmatpush1.msra.mxu0 0.0
  %1254 = vmatprep.subr.mxu0 0.0
  %1255 = vmatpush1.msra.mxu0 0.0
  %1256 = vmatprep.subr.mxu0 0.0
  %1257 = vmatpush1.msra.mxu0 0.0
  %1258 = vmatprep.subr.mxu0 0.0
  %1259 = vmatpush1.msra.mxu0 0.0
  %1260 = vmatprep.subr.mxu0 0.0
  %1261 = vmatpush1.msra.mxu0 0.0
  %1262 = vmatprep.subr.mxu0 0.0
  %1263 = vmatpush1.msra.mxu0 0.0
  %1264 = vmatprep.subr.mxu0 0.0
  %1265 = vmatpush1.msra.mxu0 0.0
  %1266 = vmatprep.subr.mxu0 0.0
  %1267 = vmatpush1.msra.mxu0 0.0
  %1268 = vmatprep.subr.mxu0 0.0
  %1269 = vmatpush1.msra.mxu0 0.0
  %1270 = vmatprep.subr.mxu0 0.0
  %1271 = vmatpush1.msra.mxu0 0.0
  %1272 = vmatprep.subr.mxu0 0.0
  %1273 = vmatpush1.msra.mxu0 0.0
  %1274 = vmatprep.subr.mxu0 0.0
  %1275 = vmatpush1.msra.mxu0 0.0
  %1276 = vmatprep.subr.mxu0 0.0
  %1277 = vmatpush1.msra.mxu0 0.0
  %1278 = vmatprep.subr.mxu0 0.0
  %1279 = vmatpush1.msra.mxu0 0.0
  %1280 = vmatprep.subr.mxu0 0.0
  %1281 = vmatpush1.msra.mxu0 0.0
  %1282 = vmatprep.subr.mxu0 0.0
  %1283 = vmatpush1.msra.mxu0 0.0
  %1284 = vmatprep.subr.mxu0 0.0
  %1285 = vmatpush1.msra.mxu0 0.0
  %1286 = vmatprep.subr.mxu0 0.0
  %1287 = vmatpush1.msra.mxu0 0.0
  %1288 = vmatprep.subr.mxu0 0.0
  %1289 = vmatpush1.msra.mxu0 0.0
  %1290 = vmatprep.subr.mxu0 0.0
  %1291 = vmatpush1.msra.mxu0 0.0
  %1292 = vmatprep.subr.mxu0 0.0
  %1293 = vmatpush1.msra.mxu0 0.0
  %1294 = vmatprep.subr.mxu0 0.0
  %1295 = vmatpush1.msra.mxu0 0.0
  %1296 = vmatprep.subr.mxu0 0.0
  %1297 = vmatpush1.msra.mxu0 0.0
  %1298 = vmatprep.subr.mxu0 0.0
  %1299 = vmatpush1.msra.mxu0 0.0
  %1300 = vmatprep.subr.mxu0 0.0
  %1301 = vmatpush1.msra.mxu0 0.0
  %1302 = vmatprep.subr.mxu0 0.0
  %1303 = vmatpush1.msra.mxu0 0.0
  %1304 = vmatprep.mubr.f32.mxu0 0.0
  %1305 = vmatmul.mubr.f32.gmra.mrb[0].mxu0 %v1234
  %v1306 = vpop.f32.mrb[0].mxu0
  %v1307 = vadd.f32 1e-05, %v1306
  %v1308 = vpop.f32.mrb[0].mxu0
  %1309 = vdwg.mxu0
  %v1310 = vrsqrt.pop %v1307
  %v1311 = vlaneseq
  %v1312 = vshrl.u32 %v1311, 7
  %v1313 = vsub.s32 0, %v1312
  %v1314 = vrot.slane %v1310, %v1313
  %v1315 = vmul.f32 %v966, %v1314
  %v1316 = vmul.f32 %v967, %v1314
  %v1317 = vmul.f32 %v968, %v1314
  %v1318 = vmul.f32 %v969, %v1314
  %v1319 = vmul.f32 %v970, %v1314
  %v1320 = vmul.f32 %v971, %v1314
  %v1321 = vmul.f32 %v972, %v1314
  %v1322 = vmul.f32 %v973, %v1314
  %v1323 = vmul.f32 %v974, %v1314
  %v1324 = vmul.f32 %v975, %v1314
  %v1325 = vmul.f32 %v976, %v1314
  %v1326 = vmul.f32 %v977, %v1314
  %v1327 = vmul.f32 %v978, %v1314
  %v1328 = vmul.f32 %v979, %v1314
  %v1329 = vmul.f32 %v980, %v1314
  %v1330 = vmul.f32 %v981, %v1314
  %v1331 = vmul.f32 %v982, %v1314
  %v1332 = vmul.f32 %v983, %v1314
  %v1333 = vmul.f32 %v984, %v1314
  %v1334 = vmul.f32 %v985, %v1314
  %v1335 = vmul.f32 %v986, %v1314
  %v1336 = vmul.f32 %v987, %v1314
  %v1337 = vmul.f32 %v988, %v1314
  %v1338 = vmul.f32 %v989, %v1314
  %v1339 = vmul.f32 %v990, %v1314
  %v1340 = vmul.f32 %v991, %v1314
  %v1341 = vmul.f32 %v992, %v1314
  %v1342 = vmul.f32 %v993, %v1314
  %v1343 = vmul.f32 %v994, %v1314
  %v1344 = vmul.f32 %v995, %v1314
  %v1345 = vmul.f32 %v996, %v1314
  %v1346 = vmul.f32 %v997, %v1314
  %v1347 = vmul.f32 %v998, %v1314
  %v1348 = vmul.f32 %v999, %v1314
  %v1349 = vmul.f32 %v1000, %v1314
  %v1350 = vmul.f32 %v1001, %v1314
  %v1351 = vmul.f32 %v1002, %v1314
  %v1352 = vmul.f32 %v1003, %v1314
  %v1353 = vmul.f32 %v1004, %v1314
  %v1354 = vmul.f32 %v1005, %v1314
  %v1355 = vmul.f32 %v1006, %v1314
  %v1356 = vmul.f32 %v1007, %v1314
  %v1357 = vmul.f32 %v1008, %v1314
  %v1358 = vmul.f32 %v1009, %v1314
  %v1359 = vmul.f32 %v1010, %v1314
  %v1360 = vmul.f32 %v1011, %v1314
  %v1361 = vmul.f32 %v1012, %v1314
  %v1362 = vmul.f32 %v1013, %v1314
  %v1363 = vmul.f32 %v1014, %v1314
  %v1364 = vmul.f32 %v1015, %v1314
  %v1365 = vmul.f32 %v1016, %v1314
  %v1366 = vmul.f32 %v1017, %v1314
  %v1367 = vmul.f32 %v1018, %v1314
  %v1368 = vmul.f32 %v1019, %v1314
  %v1369 = vmul.f32 %v1020, %v1314
  %v1370 = vmul.f32 %v1021, %v1314
  %v1371 = vmul.f32 %v1022, %v1314
  %v1372 = vmul.f32 %v1023, %v1314
  %v1373 = vmul.f32 %v1024, %v1314
  %v1374 = vmul.f32 %v1025, %v1314
  %v1375 = vmul.f32 %v1026, %v1314
  %v1376 = vmul.f32 %v1027, %v1314
  %v1377 = vmul.f32 %v1028, %v1314
  %v1378 = vmul.f32 %v1029, %v1314
  %v1379 = vpack.c.bf16 %v1316, %v1315
  %v1380 = vpack.c.bf16 %v1318, %v1317
  %v1381 = vpack.c.bf16 %v1320, %v1319
  %v1382 = vpack.c.bf16 %v1322, %v1321
  %v1383 = vpack.c.bf16 %v1324, %v1323
  %v1384 = vpack.c.bf16 %v1326, %v1325
  %v1385 = vpack.c.bf16 %v1328, %v1327
  %v1386 = vpack.c.bf16 %v1330, %v1329
  %v1387 = vpack.c.bf16 %v1332, %v1331
  %v1388 = vpack.c.bf16 %v1334, %v1333
  %v1389 = vpack.c.bf16 %v1336, %v1335
  %v1390 = vpack.c.bf16 %v1338, %v1337
  %v1391 = vpack.c.bf16 %v1340, %v1339
  %v1392 = vpack.c.bf16 %v1342, %v1341
  %v1393 = vpack.c.bf16 %v1344, %v1343
  %v1394 = vpack.c.bf16 %v1346, %v1345
  %v1395 = vpack.c.bf16 %v1348, %v1347
  %v1396 = vpack.c.bf16 %v1350, %v1349
  %v1397 = vpack.c.bf16 %v1352, %v1351
  %v1398 = vpack.c.bf16 %v1354, %v1353
  %v1399 = vpack.c.bf16 %v1356, %v1355
  %v1400 = vpack.c.bf16 %v1358, %v1357
  %v1401 = vpack.c.bf16 %v1360, %v1359
  %v1402 = vpack.c.bf16 %v1362, %v1361
  %v1403 = vpack.c.bf16 %v1364, %v1363
  %v1404 = vpack.c.bf16 %v1366, %v1365
  %v1405 = vpack.c.bf16 %v1368, %v1367
  %v1406 = vpack.c.bf16 %v1370, %v1369
  %v1407 = vpack.c.bf16 %v1372, %v1371
  %v1408 = vpack.c.bf16 %v1374, %v1373
  %v1409 = vpack.c.bf16 %v1376, %v1375
  %v1410 = vpack.c.bf16 %v1378, %v1377
  %v1411 = vld [vmem:[%s4] sm:$0xf]
  %v1412 = vld [vmem:[%s4 + $0x4] sm:$0xf]
  %v1413 = vld [vmem:[%s4 + $0x8] sm:$0xf]
  %v1414 = vld [vmem:[%s4 + $0xc] sm:$0xf]
  %v1415 = vld [vmem:[%s4 + $0x10] sm:$0x3]
  %v1421 = vunpack.c.l.b16 %v1411
  %v1422 = vunpack.c.l.b16 %v1412
  %v1423 = vunpack.c.l.b16 %v1413
  %v1424 = vunpack.c.l.b16 %v1414
  %v1425 = vunpack.c.l.b16 %v1415
  %v1426 = vpack.c.b16 %v1422, %v1421
  %v1427 = vpack.c.b16 %v1424, %v1423
  %v1428 = vpack.c.b16 %v1425, %v1425
  %v1432 = vsel %vm825, %v1379, 0
  %v1435 = vsel %vm825, %v1380, 0
  %v1438 = vsel %vm825, %v1381, 0
  %v1441 = vsel %vm825, %v1382, 0
  %v1444 = vsel %vm825, %v1383, 0
  %v1447 = vsel %vm825, %v1384, 0
  %v1450 = vsel %vm825, %v1385, 0
  %v1453 = vsel %vm825, %v1386, 0
  %v1456 = vsel %vm825, %v1387, 0
  %v1459 = vsel %vm825, %v1388, 0
  %v1462 = vsel %vm825, %v1389, 0
  %v1465 = vsel %vm825, %v1390, 0
  %v1468 = vsel %vm825, %v1391, 0
  %v1471 = vsel %vm825, %v1392, 0
  %v1474 = vsel %vm825, %v1393, 0
  %v1477 = vsel %vm825, %v1394, 0
  %v1480 = vsel %vm825, %v1395, 0
  %v1483 = vsel %vm825, %v1396, 0
  %v1486 = vsel %vm825, %v1397, 0
  %v1489 = vsel %vm825, %v1398, 0
  %v1492 = vsel %vm825, %v1399, 0
  %v1495 = vsel %vm825, %v1400, 0
  %v1498 = vsel %vm825, %v1401, 0
  %v1501 = vsel %vm825, %v1402, 0
  %v1504 = vsel %vm825, %v1403, 0
  %v1507 = vsel %vm825, %v1404, 0
  %v1510 = vsel %vm825, %v1405, 0
  %v1513 = vsel %vm825, %v1406, 0
  %v1516 = vsel %vm825, %v1407, 0
  %v1519 = vsel %vm825, %v1408, 0
  %v1522 = vsel %vm825, %v1409, 0
  %v1525 = vsel %vm825, %v1410, 0
  %vm1527 = vcmask 1041408
  %v1529 = vsel %vm1527, %v1428, 0
  %1531 = vmatprep.subr.bf16.mxu0 0
  %1532 = vmatpush1.bf16.msra.mxu0 %v1426
  %1533 = vmatprep.subr.bf16.mxu0 0
  %1534 = vmatpush1.bf16.msra.mxu0 %v1427
  %1535 = vmatprep.subr.bf16.mxu0 0
  %1536 = vmatpush1.bf16.msra.mxu0 %v1529
  %1537 = vmatprep.subr.bf16.mxu0 0
  %1538 = vmatpush1.bf16.msra.mxu0 0
  %1539 = vmatprep.subr.bf16.mxu0 0
  %1540 = vmatpush1.bf16.msra.mxu0 0
  %1541 = vmatprep.subr.bf16.mxu0 0
  %1542 = vmatpush1.bf16.msra.mxu0 0
  %1543 = vmatprep.subr.bf16.mxu0 0
  %1544 = vmatpush1.bf16.msra.mxu0 0
  %1545 = vmatprep.subr.bf16.mxu0 0
  %1546 = vmatpush1.bf16.msra.mxu0 0
  %1547 = vmatprep.subr.bf16.mxu0 0
  %1548 = vmatpush1.bf16.msra.mxu0 0
  %1549 = vmatprep.subr.bf16.mxu0 0
  %1550 = vmatpush1.bf16.msra.mxu0 0
  %1551 = vmatprep.subr.bf16.mxu0 0
  %1552 = vmatpush1.bf16.msra.mxu0 0
  %1553 = vmatprep.subr.bf16.mxu0 0
  %1554 = vmatpush1.bf16.msra.mxu0 0
  %1555 = vmatprep.subr.bf16.mxu0 0
  %1556 = vmatpush1.bf16.msra.mxu0 0
  %1557 = vmatprep.subr.bf16.mxu0 0
  %1558 = vmatpush1.bf16.msra.mxu0 0
  %1559 = vmatprep.subr.bf16.mxu0 0
  %1560 = vmatpush1.bf16.msra.mxu0 0
  %1561 = vmatprep.subr.bf16.mxu0 0
  %1562 = vmatpush1.bf16.msra.mxu0 0
  %1563 = vmatprep.mubr.bf16.mxu0 0
  %1564 = vmatmul.mubr.bf16.gmra.mrb[0].mxu0 %v1432
  %v1565 = vpop.f32.mrb[0].mxu0
  %v1566 = vadd.f32 0.0, %v1565
  %v1567 = vpop.f32.mrb[0].mxu0
  %v1568 = vpop.f32.mrb[0].mxu0
  %v1569 = vadd.f32 0.0, %v1568
  %v1570 = vpop.f32.mrb[0].mxu0
  %1571 = vmatprep.mubr.bf16.mxu0 0
  %1572 = vmatmul.mubr.bf16.gmra.mrb[0].mxu0 %v1435
  %v1573 = vpop.f32.mrb[0].mxu0
  %v1574 = vadd.f32 0.0, %v1573
  %v1575 = vpop.f32.mrb[0].mxu0
  %v1576 = vpop.f32.mrb[0].mxu0
  %v1577 = vadd.f32 0.0, %v1576
  %v1578 = vpop.f32.mrb[0].mxu0
  %1579 = vmatprep.mubr.bf16.mxu0 0
  %1580 = vmatmul.mubr.bf16.gmra.mrb[0].mxu0 %v1438
  %v1581 = vpop.f32.mrb[0].mxu0
  %v1582 = vadd.f32 0.0, %v1581
  %v1583 = vpop.f32.mrb[0].mxu0
  %v1584 = vpop.f32.mrb[0].mxu0
  %v1585 = vadd.f32 0.0, %v1584
  %v1586 = vpop.f32.mrb[0].mxu0
  %1587 = vmatprep.mubr.bf16.mxu0 0
  %1588 = vmatmul.mubr.bf16.gmra.mrb[0].mxu0 %v1441
  %v1589 = vpop.f32.mrb[0].mxu0
  %v1590 = vadd.f32 0.0, %v1589
  %v1591 = vpop.f32.mrb[0].mxu0
  %v1592 = vpop.f32.mrb[0].mxu0
  %v1593 = vadd.f32 0.0, %v1592
  %v1594 = vpop.f32.mrb[0].mxu0
  %1595 = vmatprep.mubr.bf16.mxu0 0
  %1596 = vmatmul.mubr.bf16.gmra.mrb[0].mxu0 %v1444
  %v1597 = vpop.f32.mrb[0].mxu0
  %v1598 = vadd.f32 0.0, %v1597
  %v1599 = vpop.f32.mrb[0].mxu0
  %v1600 = vpop.f32.mrb[0].mxu0
  %v1601 = vadd.f32 0.0, %v1600
  %v1602 = vpop.f32.mrb[0].mxu0
  %1603 = vmatprep.mubr.bf16.mxu0 0
  %1604 = vmatmul.mubr.bf16.gmra.mrb[0].mxu0 %v1447
  %v1605 = vpop.f32.mrb[0].mxu0
  %v1606 = vadd.f32 0.0, %v1605
  %v1607 = vpop.f32.mrb[0].mxu0
  %v1608 = vpop.f32.mrb[0].mxu0
  %v1609 = vadd.f32 0.0, %v1608
  %v1610 = vpop.f32.mrb[0].mxu0
  %1611 = vmatprep.mubr.bf16.mxu0 0
  %1612 = vmatmul.mubr.bf16.gmra.mrb[0].mxu0 %v1450
  %v1613 = vpop.f32.mrb[0].mxu0
  %v1614 = vadd.f32 0.0, %v1613
  %v1615 = vpop.f32.mrb[0].mxu0
  %v1616 = vpop.f32.mrb[0].mxu0
  %v1617 = vadd.f32 0.0, %v1616
  %v1618 = vpop.f32.mrb[0].mxu0
  %1619 = vmatprep.mubr.bf16.mxu0 0
  %1620 = vmatmul.mubr.bf16.gmra.mrb[0].mxu0 %v1453
  %v1621 = vpop.f32.mrb[0].mxu0
  %v1622 = vadd.f32 0.0, %v1621
  %v1623 = vpop.f32.mrb[0].mxu0
  %v1624 = vpop.f32.mrb[0].mxu0
  %v1625 = vadd.f32 0.0, %v1624
  %v1626 = vpop.f32.mrb[0].mxu0
  %1627 = vmatprep.mubr.bf16.mxu0 0
  %1628 = vmatmul.mubr.bf16.gmra.mrb[0].mxu0 %v1456
  %v1629 = vpop.f32.mrb[0].mxu0
  %v1630 = vadd.f32 0.0, %v1629
  %v1631 = vpop.f32.mrb[0].mxu0
  %v1632 = vpop.f32.mrb[0].mxu0
  %v1633 = vadd.f32 0.0, %v1632
  %v1634 = vpop.f32.mrb[0].mxu0
  %1635 = vmatprep.mubr.bf16.mxu0 0
  %1636 = vmatmul.mubr.bf16.gmra.mrb[0].mxu0 %v1459
  %v1637 = vpop.f32.mrb[0].mxu0
  %v1638 = vadd.f32 0.0, %v1637
  %v1639 = vpop.f32.mrb[0].mxu0
  %v1640 = vpop.f32.mrb[0].mxu0
  %v1641 = vadd.f32 0.0, %v1640
  %v1642 = vpop.f32.mrb[0].mxu0
  %1643 = vmatprep.mubr.bf16.mxu0 0
  %1644 = vmatmul.mubr.bf16.gmra.mrb[0].mxu0 %v1462
  %v1645 = vpop.f32.mrb[0].mxu0
  %v1646 = vadd.f32 0.0, %v1645
  %v1647 = vpop.f32.mrb[0].mxu0
  %v1648 = vpop.f32.mrb[0].mxu0
  %v1649 = vadd.f32 0.0, %v1648
  %v1650 = vpop.f32.mrb[0].mxu0
  %1651 = vmatprep.mubr.bf16.mxu0 0
  %1652 = vmatmul.mubr.bf16.gmra.mrb[0].mxu0 %v1465
  %v1653 = vpop.f32.mrb[0].mxu0
  %v1654 = vadd.f32 0.0, %v1653
  %v1655 = vpop.f32.mrb[0].mxu0
  %v1656 = vpop.f32.mrb[0].mxu0
  %v1657 = vadd.f32 0.0, %v1656
  %v1658 = vpop.f32.mrb[0].mxu0
  %1659 = vmatprep.mubr.bf16.mxu0 0
  %1660 = vmatmul.mubr.bf16.gmra.mrb[0].mxu0 %v1468
  %v1661 = vpop.f32.mrb[0].mxu0
  %v1662 = vadd.f32 0.0, %v1661
  %v1663 = vpop.f32.mrb[0].mxu0
  %v1664 = vpop.f32.mrb[0].mxu0
  %v1665 = vadd.f32 0.0, %v1664
  %v1666 = vpop.f32.mrb[0].mxu0
  %1667 = vmatprep.mubr.bf16.mxu0 0
  %1668 = vmatmul.mubr.bf16.gmra.mrb[0].mxu0 %v1471
  %v1669 = vpop.f32.mrb[0].mxu0
  %v1670 = vadd.f32 0.0, %v1669
  %v1671 = vpop.f32.mrb[0].mxu0
  %v1672 = vpop.f32.mrb[0].mxu0
  %v1673 = vadd.f32 0.0, %v1672
  %v1674 = vpop.f32.mrb[0].mxu0
  %1675 = vmatprep.mubr.bf16.mxu0 0
  %1676 = vmatmul.mubr.bf16.gmra.mrb[0].mxu0 %v1474
  %v1677 = vpop.f32.mrb[0].mxu0
  %v1678 = vadd.f32 0.0, %v1677
  %v1679 = vpop.f32.mrb[0].mxu0
  %v1680 = vpop.f32.mrb[0].mxu0
  %v1681 = vadd.f32 0.0, %v1680
  %v1682 = vpop.f32.mrb[0].mxu0
  %1683 = vmatprep.mubr.bf16.mxu0 0
  %1684 = vmatmul.mubr.bf16.gmra.mrb[0].mxu0 %v1477
  %v1685 = vpop.f32.mrb[0].mxu0
  %v1686 = vadd.f32 0.0, %v1685
  %v1687 = vpop.f32.mrb[0].mxu0
  %v1688 = vpop.f32.mrb[0].mxu0
  %v1689 = vadd.f32 0.0, %v1688
  %v1690 = vpop.f32.mrb[0].mxu0
  %1691 = vmatprep.mubr.bf16.mxu0 0
  %1692 = vmatmul.mubr.bf16.gmra.mrb[0].mxu0 %v1480
  %v1693 = vpop.f32.mrb[0].mxu0
  %v1694 = vadd.f32 0.0, %v1693
  %v1695 = vpop.f32.mrb[0].mxu0
  %v1696 = vpop.f32.mrb[0].mxu0
  %v1697 = vadd.f32 0.0, %v1696
  %v1698 = vpop.f32.mrb[0].mxu0
  %1699 = vmatprep.mubr.bf16.mxu0 0
  %1700 = vmatmul.mubr.bf16.gmra.mrb[0].mxu0 %v1483
  %v1701 = vpop.f32.mrb[0].mxu0
  %v1702 = vadd.f32 0.0, %v1701
  %v1703 = vpop.f32.mrb[0].mxu0
  %v1704 = vpop.f32.mrb[0].mxu0
  %v1705 = vadd.f32 0.0, %v1704
  %v1706 = vpop.f32.mrb[0].mxu0
  %1707 = vmatprep.mubr.bf16.mxu0 0
  %1708 = vmatmul.mubr.bf16.gmra.mrb[0].mxu0 %v1486
  %v1709 = vpop.f32.mrb[0].mxu0
  %v1710 = vadd.f32 0.0, %v1709
  %v1711 = vpop.f32.mrb[0].mxu0
  %v1712 = vpop.f32.mrb[0].mxu0
  %v1713 = vadd.f32 0.0, %v1712
  %v1714 = vpop.f32.mrb[0].mxu0
  %1715 = vmatprep.mubr.bf16.mxu0 0
  %1716 = vmatmul.mubr.bf16.gmra.mrb[0].mxu0 %v1489
  %v1717 = vpop.f32.mrb[0].mxu0
  %v1718 = vadd.f32 0.0, %v1717
  %v1719 = vpop.f32.mrb[0].mxu0
  %v1720 = vpop.f32.mrb[0].mxu0
  %v1721 = vadd.f32 0.0, %v1720
  %v1722 = vpop.f32.mrb[0].mxu0
  %1723 = vmatprep.mubr.bf16.mxu0 0
  %1724 = vmatmul.mubr.bf16.gmra.mrb[0].mxu0 %v1492
  %v1725 = vpop.f32.mrb[0].mxu0
  %v1726 = vadd.f32 0.0, %v1725
  %v1727 = vpop.f32.mrb[0].mxu0
  %v1728 = vpop.f32.mrb[0].mxu0
  %v1729 = vadd.f32 0.0, %v1728
  %v1730 = vpop.f32.mrb[0].mxu0
  %1731 = vmatprep.mubr.bf16.mxu0 0
  %1732 = vmatmul.mubr.bf16.gmra.mrb[0].mxu0 %v1495
  %v1733 = vpop.f32.mrb[0].mxu0
  %v1734 = vadd.f32 0.0, %v1733
  %v1735 = vpop.f32.mrb[0].mxu0
  %v1736 = vpop.f32.mrb[0].mxu0
  %v1737 = vadd.f32 0.0, %v1736
  %v1738 = vpop.f32.mrb[0].mxu0
  %1739 = vmatprep.mubr.bf16.mxu0 0
  %1740 = vmatmul.mubr.bf16.gmra.mrb[0].mxu0 %v1498
  %v1741 = vpop.f32.mrb[0].mxu0
  %v1742 = vadd.f32 0.0, %v1741
  %v1743 = vpop.f32.mrb[0].mxu0
  %v1744 = vpop.f32.mrb[0].mxu0
  %v1745 = vadd.f32 0.0, %v1744
  %v1746 = vpop.f32.mrb[0].mxu0
  %1747 = vmatprep.mubr.bf16.mxu0 0
  %1748 = vmatmul.mubr.bf16.gmra.mrb[0].mxu0 %v1501
  %v1749 = vpop.f32.mrb[0].mxu0
  %v1750 = vadd.f32 0.0, %v1749
  %v1751 = vpop.f32.mrb[0].mxu0
  %v1752 = vpop.f32.mrb[0].mxu0
  %v1753 = vadd.f32 0.0, %v1752
  %v1754 = vpop.f32.mrb[0].mxu0
  %1755 = vmatprep.mubr.bf16.mxu0 0
  %1756 = vmatmul.mubr.bf16.gmra.mrb[0].mxu0 %v1504
  %v1757 = vpop.f32.mrb[0].mxu0
  %v1758 = vadd.f32 0.0, %v1757
  %v1759 = vpop.f32.mrb[0].mxu0
  %v1760 = vpop.f32.mrb[0].mxu0
  %v1761 = vadd.f32 0.0, %v1760
  %v1762 = vpop.f32.mrb[0].mxu0
  %1763 = vmatprep.mubr.bf16.mxu0 0
  %1764 = vmatmul.mubr.bf16.gmra.mrb[0].mxu0 %v1507
  %v1765 = vpop.f32.mrb[0].mxu0
  %v1766 = vadd.f32 0.0, %v1765
  %v1767 = vpop.f32.mrb[0].mxu0
  %v1768 = vpop.f32.mrb[0].mxu0
  %v1769 = vadd.f32 0.0, %v1768
  %v1770 = vpop.f32.mrb[0].mxu0
  %1771 = vmatprep.mubr.bf16.mxu0 0
  %1772 = vmatmul.mubr.bf16.gmra.mrb[0].mxu0 %v1510
  %v1773 = vpop.f32.mrb[0].mxu0
  %v1774 = vadd.f32 0.0, %v1773
  %v1775 = vpop.f32.mrb[0].mxu0
  %v1776 = vpop.f32.mrb[0].mxu0
  %v1777 = vadd.f32 0.0, %v1776
  %v1778 = vpop.f32.mrb[0].mxu0
  %1779 = vmatprep.mubr.bf16.mxu0 0
  %1780 = vmatmul.mubr.bf16.gmra.mrb[0].mxu0 %v1513
  %v1781 = vpop.f32.mrb[0].mxu0
  %v1782 = vadd.f32 0.0, %v1781
  %v1783 = vpop.f32.mrb[0].mxu0
  %v1784 = vpop.f32.mrb[0].mxu0
  %v1785 = vadd.f32 0.0, %v1784
  %v1786 = vpop.f32.mrb[0].mxu0
  %1787 = vmatprep.mubr.bf16.mxu0 0
  %1788 = vmatmul.mubr.bf16.gmra.mrb[0].mxu0 %v1516
  %v1789 = vpop.f32.mrb[0].mxu0
  %v1790 = vadd.f32 0.0, %v1789
  %v1791 = vpop.f32.mrb[0].mxu0
  %v1792 = vpop.f32.mrb[0].mxu0
  %v1793 = vadd.f32 0.0, %v1792
  %v1794 = vpop.f32.mrb[0].mxu0
  %1795 = vmatprep.mubr.bf16.mxu0 0
  %1796 = vmatmul.mubr.bf16.gmra.mrb[0].mxu0 %v1519
  %v1797 = vpop.f32.mrb[0].mxu0
  %v1798 = vadd.f32 0.0, %v1797
  %v1799 = vpop.f32.mrb[0].mxu0
  %v1800 = vpop.f32.mrb[0].mxu0
  %v1801 = vadd.f32 0.0, %v1800
  %v1802 = vpop.f32.mrb[0].mxu0
  %1803 = vmatprep.mubr.bf16.mxu0 0
  %1804 = vmatmul.mubr.bf16.gmra.mrb[0].mxu0 %v1522
  %v1805 = vpop.f32.mrb[0].mxu0
  %v1806 = vadd.f32 0.0, %v1805
  %v1807 = vpop.f32.mrb[0].mxu0
  %v1808 = vpop.f32.mrb[0].mxu0
  %v1809 = vadd.f32 0.0, %v1808
  %v1810 = vpop.f32.mrb[0].mxu0
  %1811 = vmatprep.mubr.bf16.mxu0 0
  %1812 = vmatmul.mubr.bf16.gmra.mrb[0].mxu0 %v1525
  %v1813 = vpop.f32.mrb[0].mxu0
  %v1814 = vadd.f32 0.0, %v1813
  %v1815 = vpop.f32.mrb[0].mxu0
  %v1816 = vpop.f32.mrb[0].mxu0
  %v1817 = vadd.f32 0.0, %v1816
  %v1818 = vpop.f32.mrb[0].mxu0
  %1819 = vdwg.mxu0
  %vm1820 = vcmp.gt.f32.partialorder %v1566, 0.0
  %vm1821 = vcmp.gt.f32.partialorder %v1569, 0.0
  %vm1822 = vcmp.gt.f32.partialorder %v1574, 0.0
  %vm1823 = vcmp.gt.f32.partialorder %v1577, 0.0
  %vm1824 = vcmp.gt.f32.partialorder %v1582, 0.0
  %vm1825 = vcmp.gt.f32.partialorder %v1585, 0.0
  %vm1826 = vcmp.gt.f32.partialorder %v1590, 0.0
  %vm1827 = vcmp.gt.f32.partialorder %v1593, 0.0
  %vm1828 = vcmp.gt.f32.partialorder %v1598, 0.0
  %vm1829 = vcmp.gt.f32.partialorder %v1601, 0.0
  %vm1830 = vcmp.gt.f32.partialorder %v1606, 0.0
  %vm1831 = vcmp.gt.f32.partialorder %v1609, 0.0
  %vm1832 = vcmp.gt.f32.partialorder %v1614, 0.0
  %vm1833 = vcmp.gt.f32.partialorder %v1617, 0.0
  %vm1834 = vcmp.gt.f32.partialorder %v1622, 0.0
  %vm1835 = vcmp.gt.f32.partialorder %v1625, 0.0
  %vm1836 = vcmp.gt.f32.partialorder %v1630, 0.0
  %vm1837 = vcmp.gt.f32.partialorder %v1633, 0.0
  %vm1838 = vcmp.gt.f32.partialorder %v1638, 0.0
  %vm1839 = vcmp.gt.f32.partialorder %v1641, 0.0
  %vm1840 = vcmp.gt.f32.partialorder %v1646, 0.0
  %vm1841 = vcmp.gt.f32.partialorder %v1649, 0.0
  %vm1842 = vcmp.gt.f32.partialorder %v1654, 0.0
  %vm1843 = vcmp.gt.f32.partialorder %v1657, 0.0
  %vm1844 = vcmp.gt.f32.partialorder %v1662, 0.0
  %vm1845 = vcmp.gt.f32.partialorder %v1665, 0.0
  %vm1846 = vcmp.gt.f32.partialorder %v1670, 0.0
  %vm1847 = vcmp.gt.f32.partialorder %v1673, 0.0
  %vm1848 = vcmp.gt.f32.partialorder %v1678, 0.0
  %vm1849 = vcmp.gt.f32.partialorder %v1681, 0.0
  %vm1850 = vcmp.gt.f32.partialorder %v1686, 0.0
  %vm1851 = vcmp.gt.f32.partialorder %v1689, 0.0
  %vm1852 = vcmp.gt.f32.partialorder %v1694, 0.0
  %vm1853 = vcmp.gt.f32.partialorder %v1697, 0.0
  %vm1854 = vcmp.gt.f32.partialorder %v1702, 0.0
  %vm1855 = vcmp.gt.f32.partialorder %v1705, 0.0
  %vm1856 = vcmp.gt.f32.partialorder %v1710, 0.0
  %vm1857 = vcmp.gt.f32.partialorder %v1713, 0.0
  %vm1858 = vcmp.gt.f32.partialorder %v1718, 0.0
  %vm1859 = vcmp.gt.f32.partialorder %v1721, 0.0
  %vm1860 = vcmp.gt.f32.partialorder %v1726, 0.0
  %vm1861 = vcmp.gt.f32.partialorder %v1729, 0.0
  %vm1862 = vcmp.gt.f32.partialorder %v1734, 0.0
  %vm1863 = vcmp.gt.f32.partialorder %v1737, 0.0
  %vm1864 = vcmp.gt.f32.partialorder %v1742, 0.0
  %vm1865 = vcmp.gt.f32.partialorder %v1745, 0.0
  %vm1866 = vcmp.gt.f32.partialorder %v1750, 0.0
  %vm1867 = vcmp.gt.f32.partialorder %v1753, 0.0
  %vm1868 = vcmp.gt.f32.partialorder %v1758, 0.0
  %vm1869 = vcmp.gt.f32.partialorder %v1761, 0.0
  %vm1870 = vcmp.gt.f32.partialorder %v1766, 0.0
  %vm1871 = vcmp.gt.f32.partialorder %v1769, 0.0
  %vm1872 = vcmp.gt.f32.partialorder %v1774, 0.0
  %vm1873 = vcmp.gt.f32.partialorder %v1777, 0.0
  %vm1874 = vcmp.gt.f32.partialorder %v1782, 0.0
  %vm1875 = vcmp.gt.f32.partialorder %v1785, 0.0
  %vm1876 = vcmp.gt.f32.partialorder %v1790, 0.0
  %vm1877 = vcmp.gt.f32.partialorder %v1793, 0.0
  %vm1878 = vcmp.gt.f32.partialorder %v1798, 0.0
  %vm1879 = vcmp.gt.f32.partialorder %v1801, 0.0
  %vm1880 = vcmp.gt.f32.partialorder %v1806, 0.0
  %vm1881 = vcmp.gt.f32.partialorder %v1809, 0.0
  %vm1882 = vcmp.gt.f32.partialorder %v1814, 0.0
  %vm1883 = vcmp.gt.f32.partialorder %v1817, 0.0
  %v1884 = vmin.f32 %v1566, 0.0
  %v1885 = vmin.f32 %v1569, 0.0
  %v1886 = vmin.f32 %v1574, 0.0
  %v1887 = vmin.f32 %v1577, 0.0
  %v1888 = vmin.f32 %v1582, 0.0
  %v1889 = vmin.f32 %v1585, 0.0
  %v1890 = vmin.f32 %v1590, 0.0
  %v1891 = vmin.f32 %v1593, 0.0
  %v1892 = vmin.f32 %v1598, 0.0
  %v1893 = vmin.f32 %v1601, 0.0
  %v1894 = vmin.f32 %v1606, 0.0
  %v1895 = vmin.f32 %v1609, 0.0
  %v1896 = vmin.f32 %v1614, 0.0
  %v1897 = vmin.f32 %v1617, 0.0
  %v1898 = vmin.f32 %v1622, 0.0
  %v1899 = vmin.f32 %v1625, 0.0
  %v1900 = vmin.f32 %v1630, 0.0
  %v1901 = vmin.f32 %v1633, 0.0
  %v1902 = vmin.f32 %v1638, 0.0
  %v1903 = vmin.f32 %v1641, 0.0
  %v1904 = vmin.f32 %v1646, 0.0
  %v1905 = vmin.f32 %v1649, 0.0
  %v1906 = vmin.f32 %v1654, 0.0
  %v1907 = vmin.f32 %v1657, 0.0
  %v1908 = vmin.f32 %v1662, 0.0
  %v1909 = vmin.f32 %v1665, 0.0
  %v1910 = vmin.f32 %v1670, 0.0
  %v1911 = vmin.f32 %v1673, 0.0
  %v1912 = vmin.f32 %v1678, 0.0
  %v1913 = vmin.f32 %v1681, 0.0
  %v1914 = vmin.f32 %v1686, 0.0
  %v1915 = vmin.f32 %v1689, 0.0
  %v1916 = vmin.f32 %v1694, 0.0
  %v1917 = vmin.f32 %v1697, 0.0
  %v1918 = vmin.f32 %v1702, 0.0
  %v1919 = vmin.f32 %v1705, 0.0
  %v1920 = vmin.f32 %v1710, 0.0
  %v1921 = vmin.f32 %v1713, 0.0
  %v1922 = vmin.f32 %v1718, 0.0
  %v1923 = vmin.f32 %v1721, 0.0
  %v1924 = vmin.f32 %v1726, 0.0
  %v1925 = vmin.f32 %v1729, 0.0
  %v1926 = vmin.f32 %v1734, 0.0
  %v1927 = vmin.f32 %v1737, 0.0
  %v1928 = vmin.f32 %v1742, 0.0
  %v1929 = vmin.f32 %v1745, 0.0
  %v1930 = vmin.f32 %v1750, 0.0
  %v1931 = vmin.f32 %v1753, 0.0
  %v1932 = vmin.f32 %v1758, 0.0
  %v1933 = vmin.f32 %v1761, 0.0
  %v1934 = vmin.f32 %v1766, 0.0
  %v1935 = vmin.f32 %v1769, 0.0
  %v1936 = vmin.f32 %v1774, 0.0
  %v1937 = vmin.f32 %v1777, 0.0
  %v1938 = vmin.f32 %v1782, 0.0
  %v1939 = vmin.f32 %v1785, 0.0
  %v1940 = vmin.f32 %v1790, 0.0
  %v1941 = vmin.f32 %v1793, 0.0
  %v1942 = vmin.f32 %v1798, 0.0
  %v1943 = vmin.f32 %v1801, 0.0
  %v1944 = vmin.f32 %v1806, 0.0
  %v1945 = vmin.f32 %v1809, 0.0
  %v1946 = vmin.f32 %v1814, 0.0
  %v1947 = vmin.f32 %v1817, 0.0
  %v1948 = vmul.f32 %v1884, 1.442695
  %v1949 = vpow.pop %v1948
  %v1950 = vmul.f32 %v1885, 1.442695
  %v1951 = vpow.pop %v1950
  %v1952 = vmul.f32 %v1886, 1.442695
  %v1953 = vpow.pop %v1952
  %v1954 = vmul.f32 %v1887, 1.442695
  %v1955 = vpow.pop %v1954
  %v1956 = vmul.f32 %v1888, 1.442695
  %v1957 = vpow.pop %v1956
  %v1958 = vmul.f32 %v1889, 1.442695
  %v1959 = vpow.pop %v1958
  %v1960 = vmul.f32 %v1890, 1.442695
  %v1961 = vpow.pop %v1960
  %v1962 = vmul.f32 %v1891, 1.442695
  %v1963 = vpow.pop %v1962
  %v1964 = vmul.f32 %v1892, 1.442695
  %v1965 = vpow.pop %v1964
  %v1966 = vmul.f32 %v1893, 1.442695
  %v1967 = vpow.pop %v1966
  %v1968 = vmul.f32 %v1894, 1.442695
  %v1969 = vpow.pop %v1968
  %v1970 = vmul.f32 %v1895, 1.442695
  %v1971 = vpow.pop %v1970
  %v1972 = vmul.f32 %v1896, 1.442695
  %v1973 = vpow.pop %v1972
  %v1974 = vmul.f32 %v1897, 1.442695
  %v1975 = vpow.pop %v1974
  %v1976 = vmul.f32 %v1898, 1.442695
  %v1977 = vpow.pop %v1976
  %v1978 = vmul.f32 %v1899, 1.442695
  %v1979 = vpow.pop %v1978
  %v1980 = vmul.f32 %v1900, 1.442695
  %v1981 = vpow.pop %v1980
  %v1982 = vmul.f32 %v1901, 1.442695
  %v1983 = vpow.pop %v1982
  %v1984 = vmul.f32 %v1902, 1.442695
  %v1985 = vpow.pop %v1984
  %v1986 = vmul.f32 %v1903, 1.442695
  %v1987 = vpow.pop %v1986
  %v1988 = vmul.f32 %v1904, 1.442695
  %v1989 = vpow.pop %v1988
  %v1990 = vmul.f32 %v1905, 1.442695
  %v1991 = vpow.pop %v1990
  %v1992 = vmul.f32 %v1906, 1.442695
  %v1993 = vpow.pop %v1992
  %v1994 = vmul.f32 %v1907, 1.442695
  %v1995 = vpow.pop %v1994
  %v1996 = vmul.f32 %v1908, 1.442695
  %v1997 = vpow.pop %v1996
  %v1998 = vmul.f32 %v1909, 1.442695
  %v1999 = vpow.pop %v1998
  %v2000 = vmul.f32 %v1910, 1.442695
  %v2001 = vpow.pop %v2000
  %v2002 = vmul.f32 %v1911, 1.442695
  %v2003 = vpow.pop %v2002
  %v2004 = vmul.f32 %v1912, 1.442695
  %v2005 = vpow.pop %v2004
  %v2006 = vmul.f32 %v1913, 1.442695
  %v2007 = vpow.pop %v2006
  %v2008 = vmul.f32 %v1914, 1.442695
  %v2009 = vpow.pop %v2008
  %v2010 = vmul.f32 %v1915, 1.442695
  %v2011 = vpow.pop %v2010
  %v2012 = vmul.f32 %v1916, 1.442695
  %v2013 = vpow.pop %v2012
  %v2014 = vmul.f32 %v1917, 1.442695
  %v2015 = vpow.pop %v2014
  %v2016 = vmul.f32 %v1918, 1.442695
  %v2017 = vpow.pop %v2016
  %v2018 = vmul.f32 %v1919, 1.442695
  %v2019 = vpow.pop %v2018
  %v2020 = vmul.f32 %v1920, 1.442695
  %v2021 = vpow.pop %v2020
  %v2022 = vmul.f32 %v1921, 1.442695
  %v2023 = vpow.pop %v2022
  %v2024 = vmul.f32 %v1922, 1.442695
  %v2025 = vpow.pop %v2024
  %v2026 = vmul.f32 %v1923, 1.442695
  %v2027 = vpow.pop %v2026
  %v2028 = vmul.f32 %v1924, 1.442695
  %v2029 = vpow.pop %v2028
  %v2030 = vmul.f32 %v1925, 1.442695
  %v2031 = vpow.pop %v2030
  %v2032 = vmul.f32 %v1926, 1.442695
  %v2033 = vpow.pop %v2032
  %v2034 = vmul.f32 %v1927, 1.442695
  %v2035 = vpow.pop %v2034
  %v2036 = vmul.f32 %v1928, 1.442695
  %v2037 = vpow.pop %v2036
  %v2038 = vmul.f32 %v1929, 1.442695
  %v2039 = vpow.pop %v2038
  %v2040 = vmul.f32 %v1930, 1.442695
  %v2041 = vpow.pop %v2040
  %v2042 = vmul.f32 %v1931, 1.442695
  %v2043 = vpow.pop %v2042
  %v2044 = vmul.f32 %v1932, 1.442695
  %v2045 = vpow.pop %v2044
  %v2046 = vmul.f32 %v1933, 1.442695
  %v2047 = vpow.pop %v2046
  %v2048 = vmul.f32 %v1934, 1.442695
  %v2049 = vpow.pop %v2048
  %v2050 = vmul.f32 %v1935, 1.442695
  %v2051 = vpow.pop %v2050
  %v2052 = vmul.f32 %v1936, 1.442695
  %v2053 = vpow.pop %v2052
  %v2054 = vmul.f32 %v1937, 1.442695
  %v2055 = vpow.pop %v2054
  %v2056 = vmul.f32 %v1938, 1.442695
  %v2057 = vpow.pop %v2056
  %v2058 = vmul.f32 %v1939, 1.442695
  %v2059 = vpow.pop %v2058
  %v2060 = vmul.f32 %v1940, 1.442695
  %v2061 = vpow.pop %v2060
  %v2062 = vmul.f32 %v1941, 1.442695
  %v2063 = vpow.pop %v2062
  %v2064 = vmul.f32 %v1942, 1.442695
  %v2065 = vpow.pop %v2064
  %v2066 = vmul.f32 %v1943, 1.442695
  %v2067 = vpow.pop %v2066
  %v2068 = vmul.f32 %v1944, 1.442695
  %v2069 = vpow.pop %v2068
  %v2070 = vmul.f32 %v1945, 1.442695
  %v2071 = vpow.pop %v2070
  %v2072 = vmul.f32 %v1946, 1.442695
  %v2073 = vpow.pop %v2072
  %v2074 = vmul.f32 %v1947, 1.442695
  %v2075 = vpow.pop %v2074
  %v2076 = vsub.f32 %v1949, 1.0
  %v2077 = vsub.f32 %v1951, 1.0
  %v2078 = vsub.f32 %v1953, 1.0
  %v2079 = vsub.f32 %v1955, 1.0
  %v2080 = vsub.f32 %v1957, 1.0
  %v2081 = vsub.f32 %v1959, 1.0
  %v2082 = vsub.f32 %v1961, 1.0
  %v2083 = vsub.f32 %v1963, 1.0
  %v2084 = vsub.f32 %v1965, 1.0
  %v2085 = vsub.f32 %v1967, 1.0
  %v2086 = vsub.f32 %v1969, 1.0
  %v2087 = vsub.f32 %v1971, 1.0
  %v2088 = vsub.f32 %v1973, 1.0
  %v2089 = vsub.f32 %v1975, 1.0
  %v2090 = vsub.f32 %v1977, 1.0
  %v2091 = vsub.f32 %v1979, 1.0
  %v2092 = vsub.f32 %v1981, 1.0
  %v2093 = vsub.f32 %v1983, 1.0
  %v2094 = vsub.f32 %v1985, 1.0
  %v2095 = vsub.f32 %v1987, 1.0
  %v2096 = vsub.f32 %v1989, 1.0
  %v2097 = vsub.f32 %v1991, 1.0
  %v2098 = vsub.f32 %v1993, 1.0
  %v2099 = vsub.f32 %v1995, 1.0
  %v2100 = vsub.f32 %v1997, 1.0
  %v2101 = vsub.f32 %v1999, 1.0
  %v2102 = vsub.f32 %v2001, 1.0
  %v2103 = vsub.f32 %v2003, 1.0
  %v2104 = vsub.f32 %v2005, 1.0
  %v2105 = vsub.f32 %v2007, 1.0
  %v2106 = vsub.f32 %v2009, 1.0
  %v2107 = vsub.f32 %v2011, 1.0
  %v2108 = vsub.f32 %v2013, 1.0
  %v2109 = vsub.f32 %v2015, 1.0
  %v2110 = vsub.f32 %v2017, 1.0
  %v2111 = vsub.f32 %v2019, 1.0
  %v2112 = vsub.f32 %v2021, 1.0
  %v2113 = vsub.f32 %v2023, 1.0
  %v2114 = vsub.f32 %v2025, 1.0
  %v2115 = vsub.f32 %v2027, 1.0
  %v2116 = vsub.f32 %v2029, 1.0
  %v2117 = vsub.f32 %v2031, 1.0
  %v2118 = vsub.f32 %v2033, 1.0
  %v2119 = vsub.f32 %v2035, 1.0
  %v2120 = vsub.f32 %v2037, 1.0
  %v2121 = vsub.f32 %v2039, 1.0
  %v2122 = vsub.f32 %v2041, 1.0
  %v2123 = vsub.f32 %v2043, 1.0
  %v2124 = vsub.f32 %v2045, 1.0
  %v2125 = vsub.f32 %v2047, 1.0
  %v2126 = vsub.f32 %v2049, 1.0
  %v2127 = vsub.f32 %v2051, 1.0
  %v2128 = vsub.f32 %v2053, 1.0
  %v2129 = vsub.f32 %v2055, 1.0
  %v2130 = vsub.f32 %v2057, 1.0
  %v2131 = vsub.f32 %v2059, 1.0
  %v2132 = vsub.f32 %v2061, 1.0
  %v2133 = vsub.f32 %v2063, 1.0
  %v2134 = vsub.f32 %v2065, 1.0
  %v2135 = vsub.f32 %v2067, 1.0
  %v2136 = vsub.f32 %v2069, 1.0
  %v2137 = vsub.f32 %v2071, 1.0
  %v2138 = vsub.f32 %v2073, 1.0
  %v2139 = vsub.f32 %v2075, 1.0
  %v2140 = vsel %vm1820, %v1566, %v2076
  %v2141 = vsel %vm1821, %v1569, %v2077
  %v2142 = vsel %vm1822, %v1574, %v2078
  %v2143 = vsel %vm1823, %v1577, %v2079
  %v2144 = vsel %vm1824, %v1582, %v2080
  %v2145 = vsel %vm1825, %v1585, %v2081
  %v2146 = vsel %vm1826, %v1590, %v2082
  %v2147 = vsel %vm1827, %v1593, %v2083
  %v2148 = vsel %vm1828, %v1598, %v2084
  %v2149 = vsel %vm1829, %v1601, %v2085
  %v2150 = vsel %vm1830, %v1606, %v2086
  %v2151 = vsel %vm1831, %v1609, %v2087
  %v2152 = vsel %vm1832, %v1614, %v2088
  %v2153 = vsel %vm1833, %v1617, %v2089
  %v2154 = vsel %vm1834, %v1622, %v2090
  %v2155 = vsel %vm1835, %v1625, %v2091
  %v2156 = vsel %vm1836, %v1630, %v2092
  %v2157 = vsel %vm1837, %v1633, %v2093
  %v2158 = vsel %vm1838, %v1638, %v2094
  %v2159 = vsel %vm1839, %v1641, %v2095
  %v2160 = vsel %vm1840, %v1646, %v2096
  %v2161 = vsel %vm1841, %v1649, %v2097
  %v2162 = vsel %vm1842, %v1654, %v2098
  %v2163 = vsel %vm1843, %v1657, %v2099
  %v2164 = vsel %vm1844, %v1662, %v2100
  %v2165 = vsel %vm1845, %v1665, %v2101
  %v2166 = vsel %vm1846, %v1670, %v2102
  %v2167 = vsel %vm1847, %v1673, %v2103
  %v2168 = vsel %vm1848, %v1678, %v2104
  %v2169 = vsel %vm1849, %v1681, %v2105
  %v2170 = vsel %vm1850, %v1686, %v2106
  %v2171 = vsel %vm1851, %v1689, %v2107
  %v2172 = vsel %vm1852, %v1694, %v2108
  %v2173 = vsel %vm1853, %v1697, %v2109
  %v2174 = vsel %vm1854, %v1702, %v2110
  %v2175 = vsel %vm1855, %v1705, %v2111
  %v2176 = vsel %vm1856, %v1710, %v2112
  %v2177 = vsel %vm1857, %v1713, %v2113
  %v2178 = vsel %vm1858, %v1718, %v2114
  %v2179 = vsel %vm1859, %v1721, %v2115
  %v2180 = vsel %vm1860, %v1726, %v2116
  %v2181 = vsel %vm1861, %v1729, %v2117
  %v2182 = vsel %vm1862, %v1734, %v2118
  %v2183 = vsel %vm1863, %v1737, %v2119
  %v2184 = vsel %vm1864, %v1742, %v2120
  %v2185 = vsel %vm1865, %v1745, %v2121
  %v2186 = vsel %vm1866, %v1750, %v2122
  %v2187 = vsel %vm1867, %v1753, %v2123
  %v2188 = vsel %vm1868, %v1758, %v2124
  %v2189 = vsel %vm1869, %v1761, %v2125
  %v2190 = vsel %vm1870, %v1766, %v2126
  %v2191 = vsel %vm1871, %v1769, %v2127
  %v2192 = vsel %vm1872, %v1774, %v2128
  %v2193 = vsel %vm1873, %v1777, %v2129
  %v2194 = vsel %vm1874, %v1782, %v2130
  %v2195 = vsel %vm1875, %v1785, %v2131
  %v2196 = vsel %vm1876, %v1790, %v2132
  %v2197 = vsel %vm1877, %v1793, %v2133
  %v2198 = vsel %vm1878, %v1798, %v2134
  %v2199 = vsel %vm1879, %v1801, %v2135
  %v2200 = vsel %vm1880, %v1806, %v2136
  %v2201 = vsel %vm1881, %v1809, %v2137
  %v2202 = vsel %vm1882, %v1814, %v2138
  %v2203 = vsel %vm1883, %v1817, %v2139
  %v2204 = vld [vmem:[%s5] sm:$0xff]
  %v2205 = vld [vmem:[%s5 + $0x8] sm:$0xff]
  %v2206 = vld [vmem:[%s5 + $0x10] sm:$0xff]
  %v2207 = vld [vmem:[%s5 + $0x18] sm:$0xff]
  %v2208 = vld [vmem:[%s5 + $0x20] sm:$0xff]
  %v2209 = vld [vmem:[%s5 + $0x28] sm:$0xff]
  %v2210 = vld [vmem:[%s5 + $0x30] sm:$0xff]
  %v2211 = vld [vmem:[%s5 + $0x38] sm:$0xff]
  %v2212 = vld [vmem:[%s5 + $0x40] sm:$0xff]
  %v2213 = vld [vmem:[%s5 + $0x48] sm:$0xff]
  %v2214 = vld [vmem:[%s5 + $0x50] sm:$0xff]
  %v2215 = vld [vmem:[%s5 + $0x58] sm:$0xff]
  %v2216 = vld [vmem:[%s5 + $0x60] sm:$0xff]
  %v2217 = vld [vmem:[%s5 + $0x68] sm:$0xff]
  %v2218 = vld [vmem:[%s5 + $0x70] sm:$0xff]
  %v2219 = vld [vmem:[%s5 + $0x78] sm:$0xff]
  %v2220 = vld [vmem:[%s5 + $0x80] sm:$0xff]
  %v2221 = vld [vmem:[%s5 + $0x88] sm:$0xff]
  %v2222 = vld [vmem:[%s5 + $0x90] sm:$0xff]
  %v2223 = vld [vmem:[%s5 + $0x98] sm:$0xff]
  %v2224 = vld [vmem:[%s5 + $0xa0] sm:$0xff]
  %v2225 = vld [vmem:[%s5 + $0xa8] sm:$0xff]
  %v2226 = vld [vmem:[%s5 + $0xb0] sm:$0xff]
  %v2227 = vld [vmem:[%s5 + $0xb8] sm:$0xff]
  %v2228 = vld [vmem:[%s5 + $0xc0] sm:$0xff]
  %v2229 = vld [vmem:[%s5 + $0xc8] sm:$0xff]
  %v2230 = vld [vmem:[%s5 + $0xd0] sm:$0xff]
  %v2231 = vld [vmem:[%s5 + $0xd8] sm:$0xff]
  %v2232 = vld [vmem:[%s5 + $0xe0] sm:$0xff]
  %v2233 = vld [vmem:[%s5 + $0xe8] sm:$0xff]
  %v2234 = vld [vmem:[%s5 + $0xf0] sm:$0xff]
  %v2235 = vld [vmem:[%s5 + $0xf8] sm:$0xff]
  %v2236 = vmul.f32 %v2140, %v2204
  %v2237 = vmul.f32 %v2141, %v2205
  %v2238 = vmul.f32 %v2142, %v2206
  %v2239 = vmul.f32 %v2143, %v2207
  %v2240 = vmul.f32 %v2144, %v2208
  %v2241 = vmul.f32 %v2145, %v2209
  %v2242 = vmul.f32 %v2146, %v2210
  %v2243 = vmul.f32 %v2147, %v2211
  %v2244 = vmul.f32 %v2148, %v2212
  %v2245 = vmul.f32 %v2149, %v2213
  %v2246 = vmul.f32 %v2150, %v2214
  %v2247 = vmul.f32 %v2151, %v2215
  %v2248 = vmul.f32 %v2152, %v2216
  %v2249 = vmul.f32 %v2153, %v2217
  %v2250 = vmul.f32 %v2154, %v2218
  %v2251 = vmul.f32 %v2155, %v2219
  %v2252 = vmul.f32 %v2156, %v2220
  %v2253 = vmul.f32 %v2157, %v2221
  %v2254 = vmul.f32 %v2158, %v2222
  %v2255 = vmul.f32 %v2159, %v2223
  %v2256 = vmul.f32 %v2160, %v2224
  %v2257 = vmul.f32 %v2161, %v2225
  %v2258 = vmul.f32 %v2162, %v2226
  %v2259 = vmul.f32 %v2163, %v2227
  %v2260 = vmul.f32 %v2164, %v2228
  %v2261 = vmul.f32 %v2165, %v2229
  %v2262 = vmul.f32 %v2166, %v2230
  %v2263 = vmul.f32 %v2167, %v2231
  %v2264 = vmul.f32 %v2168, %v2232
  %v2265 = vmul.f32 %v2169, %v2233
  %v2266 = vmul.f32 %v2170, %v2234
  %v2267 = vmul.f32 %v2171, %v2235
  %v2268 = vmul.f32 %v2172, %v2204
  %v2269 = vmul.f32 %v2173, %v2205
  %v2270 = vmul.f32 %v2174, %v2206
  %v2271 = vmul.f32 %v2175, %v2207
  %v2272 = vmul.f32 %v2176, %v2208
  %v2273 = vmul.f32 %v2177, %v2209
  %v2274 = vmul.f32 %v2178, %v2210
  %v2275 = vmul.f32 %v2179, %v2211
  %v2276 = vmul.f32 %v2180, %v2212
  %v2277 = vmul.f32 %v2181, %v2213
  %v2278 = vmul.f32 %v2182, %v2214
  %v2279 = vmul.f32 %v2183, %v2215
  %v2280 = vmul.f32 %v2184, %v2216
  %v2281 = vmul.f32 %v2185, %v2217
  %v2282 = vmul.f32 %v2186, %v2218
  %v2283 = vmul.f32 %v2187, %v2219
  %v2284 = vmul.f32 %v2188, %v2220
  %v2285 = vmul.f32 %v2189, %v2221
  %v2286 = vmul.f32 %v2190, %v2222
  %v2287 = vmul.f32 %v2191, %v2223
  %v2288 = vmul.f32 %v2192, %v2224
  %v2289 = vmul.f32 %v2193, %v2225
  %v2290 = vmul.f32 %v2194, %v2226
  %v2291 = vmul.f32 %v2195, %v2227
  %v2292 = vmul.f32 %v2196, %v2228
  %v2293 = vmul.f32 %v2197, %v2229
  %v2294 = vmul.f32 %v2198, %v2230
  %v2295 = vmul.f32 %v2199, %v2231
  %v2296 = vmul.f32 %v2200, %v2232
  %v2297 = vmul.f32 %v2201, %v2233
  %v2298 = vmul.f32 %v2202, %v2234
  %v2299 = vmul.f32 %v2203, %v2235
  %vm2300 = vcmask 523264
  %v2301 = vsel %vm2300, %v2236, 0.0
  %2302 = vadd.xlane.f32.xlu0 %v2301
  %v2303 = vpop.xlane.xlu0 %2302
  %v2304 = vsel %vm2300, %v2237, 0.0
  %2305 = vadd.xlane.f32.xlu0 %v2304
  %v2306 = vpop.xlane.xlu0 %2305
  %v2307 = vsel %vm2300, %v2238, 0.0
  %2308 = vadd.xlane.f32.xlu0 %v2307
  %v2309 = vpop.xlane.xlu0 %2308
  %v2310 = vsel %vm2300, %v2239, 0.0
  %2311 = vadd.xlane.f32.xlu0 %v2310
  %v2312 = vpop.xlane.xlu0 %2311
  %v2313 = vsel %vm2300, %v2240, 0.0
  %2314 = vadd.xlane.f32.xlu0 %v2313
  %v2315 = vpop.xlane.xlu0 %2314
  %v2316 = vsel %vm2300, %v2241, 0.0
  %2317 = vadd.xlane.f32.xlu0 %v2316
  %v2318 = vpop.xlane.xlu0 %2317
  %v2319 = vsel %vm2300, %v2242, 0.0
  %2320 = vadd.xlane.f32.xlu0 %v2319
  %v2321 = vpop.xlane.xlu0 %2320
  %v2322 = vsel %vm2300, %v2243, 0.0
  %2323 = vadd.xlane.f32.xlu0 %v2322
  %v2324 = vpop.xlane.xlu0 %2323
  %v2325 = vsel %vm2300, %v2244, 0.0
  %2326 = vadd.xlane.f32.xlu0 %v2325
  %v2327 = vpop.xlane.xlu0 %2326
  %v2328 = vsel %vm2300, %v2245, 0.0
  %2329 = vadd.xlane.f32.xlu0 %v2328
  %v2330 = vpop.xlane.xlu0 %2329
  %v2331 = vsel %vm2300, %v2246, 0.0
  %2332 = vadd.xlane.f32.xlu0 %v2331
  %v2333 = vpop.xlane.xlu0 %2332
  %v2334 = vsel %vm2300, %v2247, 0.0
  %2335 = vadd.xlane.f32.xlu0 %v2334
  %v2336 = vpop.xlane.xlu0 %2335
  %v2337 = vsel %vm2300, %v2248, 0.0
  %2338 = vadd.xlane.f32.xlu0 %v2337
  %v2339 = vpop.xlane.xlu0 %2338
  %v2340 = vsel %vm2300, %v2249, 0.0
  %2341 = vadd.xlane.f32.xlu0 %v2340
  %v2342 = vpop.xlane.xlu0 %2341
  %v2343 = vsel %vm2300, %v2250, 0.0
  %2344 = vadd.xlane.f32.xlu0 %v2343
  %v2345 = vpop.xlane.xlu0 %2344
  %v2346 = vsel %vm2300, %v2251, 0.0
  %2347 = vadd.xlane.f32.xlu0 %v2346
  %v2348 = vpop.xlane.xlu0 %2347
  %v2349 = vsel %vm2300, %v2252, 0.0
  %2350 = vadd.xlane.f32.xlu0 %v2349
  %v2351 = vpop.xlane.xlu0 %2350
  %v2352 = vsel %vm2300, %v2253, 0.0
  %2353 = vadd.xlane.f32.xlu0 %v2352
  %v2354 = vpop.xlane.xlu0 %2353
  %v2355 = vsel %vm2300, %v2254, 0.0
  %2356 = vadd.xlane.f32.xlu0 %v2355
  %v2357 = vpop.xlane.xlu0 %2356
  %v2358 = vsel %vm2300, %v2255, 0.0
  %2359 = vadd.xlane.f32.xlu0 %v2358
  %v2360 = vpop.xlane.xlu0 %2359
  %v2361 = vsel %vm2300, %v2256, 0.0
  %2362 = vadd.xlane.f32.xlu0 %v2361
  %v2363 = vpop.xlane.xlu0 %2362
  %v2364 = vsel %vm2300, %v2257, 0.0
  %2365 = vadd.xlane.f32.xlu0 %v2364
  %v2366 = vpop.xlane.xlu0 %2365
  %v2367 = vsel %vm2300, %v2258, 0.0
  %2368 = vadd.xlane.f32.xlu0 %v2367
  %v2369 = vpop.xlane.xlu0 %2368
  %v2370 = vsel %vm2300, %v2259, 0.0
  %2371 = vadd.xlane.f32.xlu0 %v2370
  %v2372 = vpop.xlane.xlu0 %2371
  %v2373 = vsel %vm2300, %v2260, 0.0
  %2374 = vadd.xlane.f32.xlu0 %v2373
  %v2375 = vpop.xlane.xlu0 %2374
  %v2376 = vsel %vm2300, %v2261, 0.0
  %2377 = vadd.xlane.f32.xlu0 %v2376
  %v2378 = vpop.xlane.xlu0 %2377
  %v2379 = vsel %vm2300, %v2262, 0.0
  %2380 = vadd.xlane.f32.xlu0 %v2379
  %v2381 = vpop.xlane.xlu0 %2380
  %v2382 = vsel %vm2300, %v2263, 0.0
  %2383 = vadd.xlane.f32.xlu0 %v2382
  %v2384 = vpop.xlane.xlu0 %2383
  %v2385 = vsel %vm2300, %v2264, 0.0
  %2386 = vadd.xlane.f32.xlu0 %v2385
  %v2387 = vpop.xlane.xlu0 %2386
  %v2388 = vsel %vm2300, %v2265, 0.0
  %2389 = vadd.xlane.f32.xlu0 %v2388
  %v2390 = vpop.xlane.xlu0 %2389
  %v2391 = vsel %vm2300, %v2266, 0.0
  %2392 = vadd.xlane.f32.xlu0 %v2391
  %v2393 = vpop.xlane.xlu0 %2392
  %v2394 = vsel %vm2300, %v2267, 0.0
  %2395 = vadd.xlane.f32.xlu0 %v2394
  %v2396 = vpop.xlane.xlu0 %2395
  %v2397 = vsel %vm2300, %v2268, 0.0
  %2398 = vadd.xlane.f32.xlu0 %v2397
  %v2399 = vpop.xlane.xlu0 %2398
  %v2400 = vsel %vm2300, %v2269, 0.0
  %2401 = vadd.xlane.f32.xlu0 %v2400
  %v2402 = vpop.xlane.xlu0 %2401
  %v2403 = vsel %vm2300, %v2270, 0.0
  %2404 = vadd.xlane.f32.xlu0 %v2403
  %v2405 = vpop.xlane.xlu0 %2404
  %v2406 = vsel %vm2300, %v2271, 0.0
  %2407 = vadd.xlane.f32.xlu0 %v2406
  %v2408 = vpop.xlane.xlu0 %2407
  %v2409 = vsel %vm2300, %v2272, 0.0
  %2410 = vadd.xlane.f32.xlu0 %v2409
  %v2411 = vpop.xlane.xlu0 %2410
  %v2412 = vsel %vm2300, %v2273, 0.0
  %2413 = vadd.xlane.f32.xlu0 %v2412
  %v2414 = vpop.xlane.xlu0 %2413
  %v2415 = vsel %vm2300, %v2274, 0.0
  %2416 = vadd.xlane.f32.xlu0 %v2415
  %v2417 = vpop.xlane.xlu0 %2416
  %v2418 = vsel %vm2300, %v2275, 0.0
  %2419 = vadd.xlane.f32.xlu0 %v2418
  %v2420 = vpop.xlane.xlu0 %2419
  %v2421 = vsel %vm2300, %v2276, 0.0
  %2422 = vadd.xlane.f32.xlu0 %v2421
  %v2423 = vpop.xlane.xlu0 %2422
  %v2424 = vsel %vm2300, %v2277, 0.0
  %2425 = vadd.xlane.f32.xlu0 %v2424
  %v2426 = vpop.xlane.xlu0 %2425
  %v2427 = vsel %vm2300, %v2278, 0.0
  %2428 = vadd.xlane.f32.xlu0 %v2427
  %v2429 = vpop.xlane.xlu0 %2428
  %v2430 = vsel %vm2300, %v2279, 0.0
  %2431 = vadd.xlane.f32.xlu0 %v2430
  %v2432 = vpop.xlane.xlu0 %2431
  %v2433 = vsel %vm2300, %v2280, 0.0
  %2434 = vadd.xlane.f32.xlu0 %v2433
  %v2435 = vpop.xlane.xlu0 %2434
  %v2436 = vsel %vm2300, %v2281, 0.0
  %2437 = vadd.xlane.f32.xlu0 %v2436
  %v2438 = vpop.xlane.xlu0 %2437
  %v2439 = vsel %vm2300, %v2282, 0.0
  %2440 = vadd.xlane.f32.xlu0 %v2439
  %v2441 = vpop.xlane.xlu0 %2440
  %v2442 = vsel %vm2300, %v2283, 0.0
  %2443 = vadd.xlane.f32.xlu0 %v2442
  %v2444 = vpop.xlane.xlu0 %2443
  %v2445 = vsel %vm2300, %v2284, 0.0
  %2446 = vadd.xlane.f32.xlu0 %v2445
  %v2447 = vpop.xlane.xlu0 %2446
  %v2448 = vsel %vm2300, %v2285, 0.0
  %2449 = vadd.xlane.f32.xlu0 %v2448
  %v2450 = vpop.xlane.xlu0 %2449
  %v2451 = vsel %vm2300, %v2286, 0.0
  %2452 = vadd.xlane.f32.xlu0 %v2451
  %v2453 = vpop.xlane.xlu0 %2452
  %v2454 = vsel %vm2300, %v2287, 0.0
  %2455 = vadd.xlane.f32.xlu0 %v2454
  %v2456 = vpop.xlane.xlu0 %2455
  %v2457 = vsel %vm2300, %v2288, 0.0
  %2458 = vadd.xlane.f32.xlu0 %v2457
  %v2459 = vpop.xlane.xlu0 %2458
  %v2460 = vsel %vm2300, %v2289, 0.0
  %2461 = vadd.xlane.f32.xlu0 %v2460
  %v2462 = vpop.xlane.xlu0 %2461
  %v2463 = vsel %vm2300, %v2290, 0.0
  %2464 = vadd.xlane.f32.xlu0 %v2463
  %v2465 = vpop.xlane.xlu0 %2464
  %v2466 = vsel %vm2300, %v2291, 0.0
  %2467 = vadd.xlane.f32.xlu0 %v2466
  %v2468 = vpop.xlane.xlu0 %2467
  %v2469 = vsel %vm2300, %v2292, 0.0
  %2470 = vadd.xlane.f32.xlu0 %v2469
  %v2471 = vpop.xlane.xlu0 %2470
  %v2472 = vsel %vm2300, %v2293, 0.0
  %2473 = vadd.xlane.f32.xlu0 %v2472
  %v2474 = vpop.xlane.xlu0 %2473
  %v2475 = vsel %vm2300, %v2294, 0.0
  %2476 = vadd.xlane.f32.xlu0 %v2475
  %v2477 = vpop.xlane.xlu0 %2476
  %v2478 = vsel %vm2300, %v2295, 0.0
  %2479 = vadd.xlane.f32.xlu0 %v2478
  %v2480 = vpop.xlane.xlu0 %2479
  %v2481 = vsel %vm2300, %v2296, 0.0
  %2482 = vadd.xlane.f32.xlu0 %v2481
  %v2483 = vpop.xlane.xlu0 %2482
  %v2484 = vsel %vm2300, %v2297, 0.0
  %2485 = vadd.xlane.f32.xlu0 %v2484
  %v2486 = vpop.xlane.xlu0 %2485
  %v2487 = vsel %vm2300, %v2298, 0.0
  %2488 = vadd.xlane.f32.xlu0 %v2487
  %v2489 = vpop.xlane.xlu0 %2488
  %v2490 = vsel %vm2300, %v2299, 0.0
  %2491 = vadd.xlane.f32.xlu0 %v2490
  %v2492 = vpop.xlane.xlu0 %2491
  %v2557 = vlaneseq
  %v2558 = vand.u32 %v2557, 127
  %v2559 = vlaneseq
  %v2560 = vshrl.u32 %v2559, 7
  %v2561 = vsub.s32 %v2558, %v2560
  %v2562 = vrot.slane %v2303, %v2561
  %v2563 = vadd.s32 %v2558, 4294967288
  %v2564 = vlaneseq
  %v2565 = vshrl.u32 %v2564, 7
  %v2566 = vsub.s32 %v2563, %v2565
  %v2567 = vrot.slane %v2306, %v2566
  %vm2568 = vcmask 130112
  %v2569 = vsel %vm2568, %v2567, %v2562
  %v2570 = vadd.s32 %v2558, 4294967280
  %v2571 = vlaneseq
  %v2572 = vshrl.u32 %v2571, 7
  %v2573 = vsub.s32 %v2570, %v2572
  %v2574 = vrot.slane %v2309, %v2573
  %vm2575 = vcmask 195712
  %v2576 = vsel %vm2575, %v2574, %v2569
  %v2577 = vadd.s32 %v2558, 4294967272
  %v2578 = vlaneseq
  %v2579 = vshrl.u32 %v2578, 7
  %v2580 = vsub.s32 %v2577, %v2579
  %v2581 = vrot.slane %v2312, %v2580
  %vm2582 = vcmask 261312
  %v2583 = vsel %vm2582, %v2581, %v2576
  %v2584 = vadd.s32 %v2558, 4294967264
  %v2585 = vlaneseq
  %v2586 = vshrl.u32 %v2585, 7
  %v2587 = vsub.s32 %v2584, %v2586
  %v2588 = vrot.slane %v2315, %v2587
  %vm2589 = vcmask 326912
  %v2590 = vsel %vm2589, %v2588, %v2583
  %v2591 = vadd.s32 %v2558, 4294967256
  %v2592 = vlaneseq
  %v2593 = vshrl.u32 %v2592, 7
  %v2594 = vsub.s32 %v2591, %v2593
  %v2595 = vrot.slane %v2318, %v2594
  %vm2596 = vcmask 392512
  %v2597 = vsel %vm2596, %v2595, %v2590
  %v2598 = vadd.s32 %v2558, 4294967248
  %v2599 = vlaneseq
  %v2600 = vshrl.u32 %v2599, 7
  %v2601 = vsub.s32 %v2598, %v2600
  %v2602 = vrot.slane %v2321, %v2601
  %vm2603 = vcmask 458112
  %v2604 = vsel %vm2603, %v2602, %v2597
  %v2605 = vadd.s32 %v2558, 4294967240
  %v2606 = vlaneseq
  %v2607 = vshrl.u32 %v2606, 7
  %v2608 = vsub.s32 %v2605, %v2607
  %v2609 = vrot.slane %v2324, %v2608
  %vm2610 = vcmask 523712
  %v2611 = vsel %vm2610, %v2609, %v2604
  %v2612 = vadd.s32 %v2558, 4294967232
  %v2613 = vlaneseq
  %v2614 = vshrl.u32 %v2613, 7
  %v2615 = vsub.s32 %v2612, %v2614
  %v2616 = vrot.slane %v2327, %v2615
  %vm2617 = vcmask 589312
  %v2618 = vsel %vm2617, %v2616, %v2611
  %v2619 = vadd.s32 %v2558, 4294967224
  %v2620 = vlaneseq
  %v2621 = vshrl.u32 %v2620, 7
  %v2622 = vsub.s32 %v2619, %v2621
  %v2623 = vrot.slane %v2330, %v2622
  %vm2624 = vcmask 654912
  %v2625 = vsel %vm2624, %v2623, %v2618
  %v2626 = vadd.s32 %v2558, 4294967216
  %v2627 = vlaneseq
  %v2628 = vshrl.u32 %v2627, 7
  %v2629 = vsub.s32 %v2626, %v2628
  %v2630 = vrot.slane %v2333, %v2629
  %vm2631 = vcmask 720512
  %v2632 = vsel %vm2631, %v2630, %v2625
  %v2633 = vadd.s32 %v2558, 4294967208
  %v2634 = vlaneseq
  %v2635 = vshrl.u32 %v2634, 7
  %v2636 = vsub.s32 %v2633, %v2635
  %v2637 = vrot.slane %v2336, %v2636
  %vm2638 = vcmask 786112
  %v2639 = vsel %vm2638, %v2637, %v2632
  %v2640 = vadd.s32 %v2558, 4294967200
  %v2641 = vlaneseq
  %v2642 = vshrl.u32 %v2641, 7
  %v2643 = vsub.s32 %v2640, %v2642
  %v2644 = vrot.slane %v2339, %v2643
  %vm2645 = vcmask 851712
  %v2646 = vsel %vm2645, %v2644, %v2639
  %v2647 = vadd.s32 %v2558, 4294967192
  %v2648 = vlaneseq
  %v2649 = vshrl.u32 %v2648, 7
  %v2650 = vsub.s32 %v2647, %v2649
  %v2651 = vrot.slane %v2342, %v2650
  %vm2652 = vcmask 917312
  %v2653 = vsel %vm2652, %v2651, %v2646
  %v2654 = vadd.s32 %v2558, 4294967184
  %v2655 = vlaneseq
  %v2656 = vshrl.u32 %v2655, 7
  %v2657 = vsub.s32 %v2654, %v2656
  %v2658 = vrot.slane %v2345, %v2657
  %vm2659 = vcmask 982912
  %v2660 = vsel %vm2659, %v2658, %v2653
  %v2661 = vadd.s32 %v2558, 4294967176
  %v2662 = vlaneseq
  %v2663 = vshrl.u32 %v2662, 7
  %v2664 = vsub.s32 %v2661, %v2663
  %v2665 = vrot.slane %v2348, %v2664
  %vm2666 = vcmask 1048512
  %v2667 = vsel %vm2666, %v2665, %v2660
  %v2668 = vlaneseq
  %v2669 = vshrl.u32 %v2668, 7
  %v2670 = vsub.s32 %v2558, %v2669
  %v2671 = vrot.slane %v2351, %v2670
  %v2672 = vlaneseq
  %v2673 = vshrl.u32 %v2672, 7
  %v2674 = vsub.s32 %v2563, %v2673
  %v2675 = vrot.slane %v2354, %v2674
  %v2676 = vsel %vm2568, %v2675, %v2671
  %v2677 = vlaneseq
  %v2678 = vshrl.u32 %v2677, 7
  %v2679 = vsub.s32 %v2570, %v2678
  %v2680 = vrot.slane %v2357, %v2679
  %v2681 = vsel %vm2575, %v2680, %v2676
  %v2682 = vlaneseq
  %v2683 = vshrl.u32 %v2682, 7
  %v2684 = vsub.s32 %v2577, %v2683
  %v2685 = vrot.slane %v2360, %v2684
  %v2686 = vsel %vm2582, %v2685, %v2681
  %v2687 = vlaneseq
  %v2688 = vshrl.u32 %v2687, 7
  %v2689 = vsub.s32 %v2584, %v2688
  %v2690 = vrot.slane %v2363, %v2689
  %v2691 = vsel %vm2589, %v2690, %v2686
  %v2692 = vlaneseq
  %v2693 = vshrl.u32 %v2692, 7
  %v2694 = vsub.s32 %v2591, %v2693
  %v2695 = vrot.slane %v2366, %v2694
  %v2696 = vsel %vm2596, %v2695, %v2691
  %v2697 = vlaneseq
  %v2698 = vshrl.u32 %v2697, 7
  %v2699 = vsub.s32 %v2598, %v2698
  %v2700 = vrot.slane %v2369, %v2699
  %v2701 = vsel %vm2603, %v2700, %v2696
  %v2702 = vlaneseq
  %v2703 = vshrl.u32 %v2702, 7
  %v2704 = vsub.s32 %v2605, %v2703
  %v2705 = vrot.slane %v2372, %v2704
  %v2706 = vsel %vm2610, %v2705, %v2701
  %v2707 = vlaneseq
  %v2708 = vshrl.u32 %v2707, 7
  %v2709 = vsub.s32 %v2612, %v2708
  %v2710 = vrot.slane %v2375, %v2709
  %v2711 = vsel %vm2617, %v2710, %v2706
  %v2712 = vlaneseq
  %v2713 = vshrl.u32 %v2712, 7
  %v2714 = vsub.s32 %v2619, %v2713
  %v2715 = vrot.slane %v2378, %v2714
  %v2716 = vsel %vm2624, %v2715, %v2711
  %v2717 = vlaneseq
  %v2718 = vshrl.u32 %v2717, 7
  %v2719 = vsub.s32 %v2626, %v2718
  %v2720 = vrot.slane %v2381, %v2719
  %v2721 = vsel %vm2631, %v2720, %v2716
  %v2722 = vlaneseq
  %v2723 = vshrl.u32 %v2722, 7
  %v2724 = vsub.s32 %v2633, %v2723
  %v2725 = vrot.slane %v2384, %v2724
  %v2726 = vsel %vm2638, %v2725, %v2721
  %v2727 = vlaneseq
  %v2728 = vshrl.u32 %v2727, 7
  %v2729 = vsub.s32 %v2640, %v2728
  %v2730 = vrot.slane %v2387, %v2729
  %v2731 = vsel %vm2645, %v2730, %v2726
  %v2732 = vlaneseq
  %v2733 = vshrl.u32 %v2732, 7
  %v2734 = vsub.s32 %v2647, %v2733
  %v2735 = vrot.slane %v2390, %v2734
  %v2736 = vsel %vm2652, %v2735, %v2731
  %v2737 = vlaneseq
  %v2738 = vshrl.u32 %v2737, 7
  %v2739 = vsub.s32 %v2654, %v2738
  %v2740 = vrot.slane %v2393, %v2739
  %v2741 = vsel %vm2659, %v2740, %v2736
  %v2742 = vlaneseq
  %v2743 = vshrl.u32 %v2742, 7
  %v2744 = vsub.s32 %v2661, %v2743
  %v2745 = vrot.slane %v2396, %v2744
  %v2746 = vsel %vm2666, %v2745, %v2741
  %v2747 = vlaneseq
  %v2748 = vshrl.u32 %v2747, 7
  %v2749 = vsub.s32 %v2558, %v2748
  %v2750 = vrot.slane %v2399, %v2749
  %v2751 = vlaneseq
  %v2752 = vshrl.u32 %v2751, 7
  %v2753 = vsub.s32 %v2563, %v2752
  %v2754 = vrot.slane %v2402, %v2753
  %v2755 = vsel %vm2568, %v2754, %v2750
  %v2756 = vlaneseq
  %v2757 = vshrl.u32 %v2756, 7
  %v2758 = vsub.s32 %v2570, %v2757
  %v2759 = vrot.slane %v2405, %v2758
  %v2760 = vsel %vm2575, %v2759, %v2755
  %v2761 = vlaneseq
  %v2762 = vshrl.u32 %v2761, 7
  %v2763 = vsub.s32 %v2577, %v2762
  %v2764 = vrot.slane %v2408, %v2763
  %v2765 = vsel %vm2582, %v2764, %v2760
  %v2766 = vlaneseq
  %v2767 = vshrl.u32 %v2766, 7
  %v2768 = vsub.s32 %v2584, %v2767
  %v2769 = vrot.slane %v2411, %v2768
  %v2770 = vsel %vm2589, %v2769, %v2765
  %v2771 = vlaneseq
  %v2772 = vshrl.u32 %v2771, 7
  %v2773 = vsub.s32 %v2591, %v2772
  %v2774 = vrot.slane %v2414, %v2773
  %v2775 = vsel %vm2596, %v2774, %v2770
  %v2776 = vlaneseq
  %v2777 = vshrl.u32 %v2776, 7
  %v2778 = vsub.s32 %v2598, %v2777
  %v2779 = vrot.slane %v2417, %v2778
  %v2780 = vsel %vm2603, %v2779, %v2775
  %v2781 = vlaneseq
  %v2782 = vshrl.u32 %v2781, 7
  %v2783 = vsub.s32 %v2605, %v2782
  %v2784 = vrot.slane %v2420, %v2783
  %v2785 = vsel %vm2610, %v2784, %v2780
  %v2786 = vlaneseq
  %v2787 = vshrl.u32 %v2786, 7
  %v2788 = vsub.s32 %v2612, %v2787
  %v2789 = vrot.slane %v2423, %v2788
  %v2790 = vsel %vm2617, %v2789, %v2785
  %v2791 = vlaneseq
  %v2792 = vshrl.u32 %v2791, 7
  %v2793 = vsub.s32 %v2619, %v2792
  %v2794 = vrot.slane %v2426, %v2793
  %v2795 = vsel %vm2624, %v2794, %v2790
  %v2796 = vlaneseq
  %v2797 = vshrl.u32 %v2796, 7
  %v2798 = vsub.s32 %v2626, %v2797
  %v2799 = vrot.slane %v2429, %v2798
  %v2800 = vsel %vm2631, %v2799, %v2795
  %v2801 = vlaneseq
  %v2802 = vshrl.u32 %v2801, 7
  %v2803 = vsub.s32 %v2633, %v2802
  %v2804 = vrot.slane %v2432, %v2803
  %v2805 = vsel %vm2638, %v2804, %v2800
  %v2806 = vlaneseq
  %v2807 = vshrl.u32 %v2806, 7
  %v2808 = vsub.s32 %v2640, %v2807
  %v2809 = vrot.slane %v2435, %v2808
  %v2810 = vsel %vm2645, %v2809, %v2805
  %v2811 = vlaneseq
  %v2812 = vshrl.u32 %v2811, 7
  %v2813 = vsub.s32 %v2647, %v2812
  %v2814 = vrot.slane %v2438, %v2813
  %v2815 = vsel %vm2652, %v2814, %v2810
  %v2816 = vlaneseq
  %v2817 = vshrl.u32 %v2816, 7
  %v2818 = vsub.s32 %v2654, %v2817
  %v2819 = vrot.slane %v2441, %v2818
  %v2820 = vsel %vm2659, %v2819, %v2815
  %v2821 = vlaneseq
  %v2822 = vshrl.u32 %v2821, 7
  %v2823 = vsub.s32 %v2661, %v2822
  %v2824 = vrot.slane %v2444, %v2823
  %v2825 = vsel %vm2666, %v2824, %v2820
  %v2826 = vlaneseq
  %v2827 = vshrl.u32 %v2826, 7
  %v2828 = vsub.s32 %v2558, %v2827
  %v2829 = vrot.slane %v2447, %v2828
  %v2830 = vlaneseq
  %v2831 = vshrl.u32 %v2830, 7
  %v2832 = vsub.s32 %v2563, %v2831
  %v2833 = vrot.slane %v2450, %v2832
  %v2834 = vsel %vm2568, %v2833, %v2829
  %v2835 = vlaneseq
  %v2836 = vshrl.u32 %v2835, 7
  %v2837 = vsub.s32 %v2570, %v2836
  %v2838 = vrot.slane %v2453, %v2837
  %v2839 = vsel %vm2575, %v2838, %v2834
  %v2840 = vlaneseq
  %v2841 = vshrl.u32 %v2840, 7
  %v2842 = vsub.s32 %v2577, %v2841
  %v2843 = vrot.slane %v2456, %v2842
  %v2844 = vsel %vm2582, %v2843, %v2839
  %v2845 = vlaneseq
  %v2846 = vshrl.u32 %v2845, 7
  %v2847 = vsub.s32 %v2584, %v2846
  %v2848 = vrot.slane %v2459, %v2847
  %v2849 = vsel %vm2589, %v2848, %v2844
  %v2850 = vlaneseq
  %v2851 = vshrl.u32 %v2850, 7
  %v2852 = vsub.s32 %v2591, %v2851
  %v2853 = vrot.slane %v2462, %v2852
  %v2854 = vsel %vm2596, %v2853, %v2849
  %v2855 = vlaneseq
  %v2856 = vshrl.u32 %v2855, 7
  %v2857 = vsub.s32 %v2598, %v2856
  %v2858 = vrot.slane %v2465, %v2857
  %v2859 = vsel %vm2603, %v2858, %v2854
  %v2860 = vlaneseq
  %v2861 = vshrl.u32 %v2860, 7
  %v2862 = vsub.s32 %v2605, %v2861
  %v2863 = vrot.slane %v2468, %v2862
  %v2864 = vsel %vm2610, %v2863, %v2859
  %v2865 = vlaneseq
  %v2866 = vshrl.u32 %v2865, 7
  %v2867 = vsub.s32 %v2612, %v2866
  %v2868 = vrot.slane %v2471, %v2867
  %v2869 = vsel %vm2617, %v2868, %v2864
  %v2870 = vlaneseq
  %v2871 = vshrl.u32 %v2870, 7
  %v2872 = vsub.s32 %v2619, %v2871
  %v2873 = vrot.slane %v2474, %v2872
  %v2874 = vsel %vm2624, %v2873, %v2869
  %v2875 = vlaneseq
  %v2876 = vshrl.u32 %v2875, 7
  %v2877 = vsub.s32 %v2626, %v2876
  %v2878 = vrot.slane %v2477, %v2877
  %v2879 = vsel %vm2631, %v2878, %v2874
  %v2880 = vlaneseq
  %v2881 = vshrl.u32 %v2880, 7
  %v2882 = vsub.s32 %v2633, %v2881
  %v2883 = vrot.slane %v2480, %v2882
  %v2884 = vsel %vm2638, %v2883, %v2879
  %v2885 = vlaneseq
  %v2886 = vshrl.u32 %v2885, 7
  %v2887 = vsub.s32 %v2640, %v2886
  %v2888 = vrot.slane %v2483, %v2887
  %v2889 = vsel %vm2645, %v2888, %v2884
  %v2890 = vlaneseq
  %v2891 = vshrl.u32 %v2890, 7
  %v2892 = vsub.s32 %v2647, %v2891
  %v2893 = vrot.slane %v2486, %v2892
  %v2894 = vsel %vm2652, %v2893, %v2889
  %v2895 = vlaneseq
  %v2896 = vshrl.u32 %v2895, 7
  %v2897 = vsub.s32 %v2654, %v2896
  %v2898 = vrot.slane %v2489, %v2897
  %v2899 = vsel %vm2659, %v2898, %v2894
  %v2900 = vlaneseq
  %v2901 = vshrl.u32 %v2900, 7
  %v2902 = vsub.s32 %v2661, %v2901
  %v2903 = vrot.slane %v2492, %v2902
  %v2904 = vsel %vm2666, %v2903, %v2899
  %vm2905 = vcmask 1041409
  %v2906 = vsel %vm2905, %v2825, %v2667
  %v2907 = vsel %vm2905, %v2904, %v2746
  %v2910 = vsel %vm1527, %v2906, 0.0
  %v2911 = vsel %vm1527, %v2907, 0.0
  %v2912 = vadd.f32 %v2910, %v2911
  %2913 = vadd.xlane.f32.xlu0 %v2912
  %v2914 = vpop.xlane.xlu0 %2913
  %s2915 = scalar_lea.vmem %s5, 256
  %v2916 = vld [vmem:[%s2915] sm:$0xff]
  %v2917 = vld [vmem:[%s2915 + $0x8] sm:$0xff]
  %v2918 = vld [vmem:[%s2915 + $0x10] sm:$0xff]
  %v2919 = vld [vmem:[%s2915 + $0x18] sm:$0xff]
  %v2920 = vld [vmem:[%s2915 + $0x20] sm:$0xff]
  %v2921 = vld [vmem:[%s2915 + $0x28] sm:$0xff]
  %v2922 = vld [vmem:[%s2915 + $0x30] sm:$0xff]
  %v2923 = vld [vmem:[%s2915 + $0x38] sm:$0xff]
  %v2924 = vld [vmem:[%s2915 + $0x40] sm:$0xff]
  %v2925 = vld [vmem:[%s2915 + $0x48] sm:$0xff]
  %v2926 = vld [vmem:[%s2915 + $0x50] sm:$0xff]
  %v2927 = vld [vmem:[%s2915 + $0x58] sm:$0xff]
  %v2928 = vld [vmem:[%s2915 + $0x60] sm:$0xff]
  %v2929 = vld [vmem:[%s2915 + $0x68] sm:$0xff]
  %v2930 = vld [vmem:[%s2915 + $0x70] sm:$0xff]
  %v2931 = vld [vmem:[%s2915 + $0x78] sm:$0xff]
  %v2932 = vld [vmem:[%s2915 + $0x80] sm:$0xff]
  %v2933 = vld [vmem:[%s2915 + $0x88] sm:$0xff]
  %v2934 = vld [vmem:[%s2915 + $0x90] sm:$0xff]
  %v2935 = vld [vmem:[%s2915 + $0x98] sm:$0xff]
  %v2936 = vld [vmem:[%s2915 + $0xa0] sm:$0xff]
  %v2937 = vld [vmem:[%s2915 + $0xa8] sm:$0xff]
  %v2938 = vld [vmem:[%s2915 + $0xb0] sm:$0xff]
  %v2939 = vld [vmem:[%s2915 + $0xb8] sm:$0xff]
  %v2940 = vld [vmem:[%s2915 + $0xc0] sm:$0xff]
  %v2941 = vld [vmem:[%s2915 + $0xc8] sm:$0xff]
  %v2942 = vld [vmem:[%s2915 + $0xd0] sm:$0xff]
  %v2943 = vld [vmem:[%s2915 + $0xd8] sm:$0xff]
  %v2944 = vld [vmem:[%s2915 + $0xe0] sm:$0xff]
  %v2945 = vld [vmem:[%s2915 + $0xe8] sm:$0xff]
  %v2946 = vld [vmem:[%s2915 + $0xf0] sm:$0xff]
  %v2947 = vld [vmem:[%s2915 + $0xf8] sm:$0xff]
  %v2948 = vmul.f32 %v2140, %v2916
  %v2949 = vmul.f32 %v2141, %v2917
  %v2950 = vmul.f32 %v2142, %v2918
  %v2951 = vmul.f32 %v2143, %v2919
  %v2952 = vmul.f32 %v2144, %v2920
  %v2953 = vmul.f32 %v2145, %v2921
  %v2954 = vmul.f32 %v2146, %v2922
  %v2955 = vmul.f32 %v2147, %v2923
  %v2956 = vmul.f32 %v2148, %v2924
  %v2957 = vmul.f32 %v2149, %v2925
  %v2958 = vmul.f32 %v2150, %v2926
  %v2959 = vmul.f32 %v2151, %v2927
  %v2960 = vmul.f32 %v2152, %v2928
  %v2961 = vmul.f32 %v2153, %v2929
  %v2962 = vmul.f32 %v2154, %v2930
  %v2963 = vmul.f32 %v2155, %v2931
  %v2964 = vmul.f32 %v2156, %v2932
  %v2965 = vmul.f32 %v2157, %v2933
  %v2966 = vmul.f32 %v2158, %v2934
  %v2967 = vmul.f32 %v2159, %v2935
  %v2968 = vmul.f32 %v2160, %v2936
  %v2969 = vmul.f32 %v2161, %v2937
  %v2970 = vmul.f32 %v2162, %v2938
  %v2971 = vmul.f32 %v2163, %v2939
  %v2972 = vmul.f32 %v2164, %v2940
  %v2973 = vmul.f32 %v2165, %v2941
  %v2974 = vmul.f32 %v2166, %v2942
  %v2975 = vmul.f32 %v2167, %v2943
  %v2976 = vmul.f32 %v2168, %v2944
  %v2977 = vmul.f32 %v2169, %v2945
  %v2978 = vmul.f32 %v2170, %v2946
  %v2979 = vmul.f32 %v2171, %v2947
  %v2980 = vmul.f32 %v2172, %v2916
  %v2981 = vmul.f32 %v2173, %v2917
  %v2982 = vmul.f32 %v2174, %v2918
  %v2983 = vmul.f32 %v2175, %v2919
  %v2984 = vmul.f32 %v2176, %v2920
  %v2985 = vmul.f32 %v2177, %v2921
  %v2986 = vmul.f32 %v2178, %v2922
  %v2987 = vmul.f32 %v2179, %v2923
  %v2988 = vmul.f32 %v2180, %v2924
  %v2989 = vmul.f32 %v2181, %v2925
  %v2990 = vmul.f32 %v2182, %v2926
  %v2991 = vmul.f32 %v2183, %v2927
  %v2992 = vmul.f32 %v2184, %v2928
  %v2993 = vmul.f32 %v2185, %v2929
  %v2994 = vmul.f32 %v2186, %v2930
  %v2995 = vmul.f32 %v2187, %v2931
  %v2996 = vmul.f32 %v2188, %v2932
  %v2997 = vmul.f32 %v2189, %v2933
  %v2998 = vmul.f32 %v2190, %v2934
  %v2999 = vmul.f32 %v2191, %v2935
  %v3000 = vmul.f32 %v2192, %v2936
  %v3001 = vmul.f32 %v2193, %v2937
  %v3002 = vmul.f32 %v2194, %v2938
  %v3003 = vmul.f32 %v2195, %v2939
  %v3004 = vmul.f32 %v2196, %v2940
  %v3005 = vmul.f32 %v2197, %v2941
  %v3006 = vmul.f32 %v2198, %v2942
  %v3007 = vmul.f32 %v2199, %v2943
  %v3008 = vmul.f32 %v2200, %v2944
  %v3009 = vmul.f32 %v2201, %v2945
  %v3010 = vmul.f32 %v2202, %v2946
  %v3011 = vmul.f32 %v2203, %v2947
  %v3012 = vsel %vm2300, %v2948, 0.0
  %3013 = vadd.xlane.f32.xlu0 %v3012
  %v3014 = vpop.xlane.xlu0 %3013
  %v3015 = vsel %vm2300, %v2949, 0.0
  %3016 = vadd.xlane.f32.xlu0 %v3015
  %v3017 = vpop.xlane.xlu0 %3016
  %v3018 = vsel %vm2300, %v2950, 0.0
  %3019 = vadd.xlane.f32.xlu0 %v3018
  %v3020 = vpop.xlane.xlu0 %3019
  %v3021 = vsel %vm2300, %v2951, 0.0
  %3022 = vadd.xlane.f32.xlu0 %v3021
  %v3023 = vpop.xlane.xlu0 %3022
  %v3024 = vsel %vm2300, %v2952, 0.0
  %3025 = vadd.xlane.f32.xlu0 %v3024
  %v3026 = vpop.xlane.xlu0 %3025
  %v3027 = vsel %vm2300, %v2953, 0.0
  %3028 = vadd.xlane.f32.xlu0 %v3027
  %v3029 = vpop.xlane.xlu0 %3028
  %v3030 = vsel %vm2300, %v2954, 0.0
  %3031 = vadd.xlane.f32.xlu0 %v3030
  %v3032 = vpop.xlane.xlu0 %3031
  %v3033 = vsel %vm2300, %v2955, 0.0
  %3034 = vadd.xlane.f32.xlu0 %v3033
  %v3035 = vpop.xlane.xlu0 %3034
  %v3036 = vsel %vm2300, %v2956, 0.0
  %3037 = vadd.xlane.f32.xlu0 %v3036
  %v3038 = vpop.xlane.xlu0 %3037
  %v3039 = vsel %vm2300, %v2957, 0.0
  %3040 = vadd.xlane.f32.xlu0 %v3039
  %v3041 = vpop.xlane.xlu0 %3040
  %v3042 = vsel %vm2300, %v2958, 0.0
  %3043 = vadd.xlane.f32.xlu0 %v3042
  %v3044 = vpop.xlane.xlu0 %3043
  %v3045 = vsel %vm2300, %v2959, 0.0
  %3046 = vadd.xlane.f32.xlu0 %v3045
  %v3047 = vpop.xlane.xlu0 %3046
  %v3048 = vsel %vm2300, %v2960, 0.0
  %3049 = vadd.xlane.f32.xlu0 %v3048
  %v3050 = vpop.xlane.xlu0 %3049
  %v3051 = vsel %vm2300, %v2961, 0.0
  %3052 = vadd.xlane.f32.xlu0 %v3051
  %v3053 = vpop.xlane.xlu0 %3052
  %v3054 = vsel %vm2300, %v2962, 0.0
  %3055 = vadd.xlane.f32.xlu0 %v3054
  %v3056 = vpop.xlane.xlu0 %3055
  %v3057 = vsel %vm2300, %v2963, 0.0
  %3058 = vadd.xlane.f32.xlu0 %v3057
  %v3059 = vpop.xlane.xlu0 %3058
  %v3060 = vsel %vm2300, %v2964, 0.0
  %3061 = vadd.xlane.f32.xlu0 %v3060
  %v3062 = vpop.xlane.xlu0 %3061
  %v3063 = vsel %vm2300, %v2965, 0.0
  %3064 = vadd.xlane.f32.xlu0 %v3063
  %v3065 = vpop.xlane.xlu0 %3064
  %v3066 = vsel %vm2300, %v2966, 0.0
  %3067 = vadd.xlane.f32.xlu0 %v3066
  %v3068 = vpop.xlane.xlu0 %3067
  %v3069 = vsel %vm2300, %v2967, 0.0
  %3070 = vadd.xlane.f32.xlu0 %v3069
  %v3071 = vpop.xlane.xlu0 %3070
  %v3072 = vsel %vm2300, %v2968, 0.0
  %3073 = vadd.xlane.f32.xlu0 %v3072
  %v3074 = vpop.xlane.xlu0 %3073
  %v3075 = vsel %vm2300, %v2969, 0.0
  %3076 = vadd.xlane.f32.xlu0 %v3075
  %v3077 = vpop.xlane.xlu0 %3076
  %v3078 = vsel %vm2300, %v2970, 0.0
  %3079 = vadd.xlane.f32.xlu0 %v3078
  %v3080 = vpop.xlane.xlu0 %3079
  %v3081 = vsel %vm2300, %v2971, 0.0
  %3082 = vadd.xlane.f32.xlu0 %v3081
  %v3083 = vpop.xlane.xlu0 %3082
  %v3084 = vsel %vm2300, %v2972, 0.0
  %3085 = vadd.xlane.f32.xlu0 %v3084
  %v3086 = vpop.xlane.xlu0 %3085
  %v3087 = vsel %vm2300, %v2973, 0.0
  %3088 = vadd.xlane.f32.xlu0 %v3087
  %v3089 = vpop.xlane.xlu0 %3088
  %v3090 = vsel %vm2300, %v2974, 0.0
  %3091 = vadd.xlane.f32.xlu0 %v3090
  %v3092 = vpop.xlane.xlu0 %3091
  %v3093 = vsel %vm2300, %v2975, 0.0
  %3094 = vadd.xlane.f32.xlu0 %v3093
  %v3095 = vpop.xlane.xlu0 %3094
  %v3096 = vsel %vm2300, %v2976, 0.0
  %3097 = vadd.xlane.f32.xlu0 %v3096
  %v3098 = vpop.xlane.xlu0 %3097
  %v3099 = vsel %vm2300, %v2977, 0.0
  %3100 = vadd.xlane.f32.xlu0 %v3099
  %v3101 = vpop.xlane.xlu0 %3100
  %v3102 = vsel %vm2300, %v2978, 0.0
  %3103 = vadd.xlane.f32.xlu0 %v3102
  %v3104 = vpop.xlane.xlu0 %3103
  %v3105 = vsel %vm2300, %v2979, 0.0
  %3106 = vadd.xlane.f32.xlu0 %v3105
  %v3107 = vpop.xlane.xlu0 %3106
  %v3108 = vsel %vm2300, %v2980, 0.0
  %3109 = vadd.xlane.f32.xlu0 %v3108
  %v3110 = vpop.xlane.xlu0 %3109
  %v3111 = vsel %vm2300, %v2981, 0.0
  %3112 = vadd.xlane.f32.xlu0 %v3111
  %v3113 = vpop.xlane.xlu0 %3112
  %v3114 = vsel %vm2300, %v2982, 0.0
  %3115 = vadd.xlane.f32.xlu0 %v3114
  %v3116 = vpop.xlane.xlu0 %3115
  %v3117 = vsel %vm2300, %v2983, 0.0
  %3118 = vadd.xlane.f32.xlu0 %v3117
  %v3119 = vpop.xlane.xlu0 %3118
  %v3120 = vsel %vm2300, %v2984, 0.0
  %3121 = vadd.xlane.f32.xlu0 %v3120
  %v3122 = vpop.xlane.xlu0 %3121
  %v3123 = vsel %vm2300, %v2985, 0.0
  %3124 = vadd.xlane.f32.xlu0 %v3123
  %v3125 = vpop.xlane.xlu0 %3124
  %v3126 = vsel %vm2300, %v2986, 0.0
  %3127 = vadd.xlane.f32.xlu0 %v3126
  %v3128 = vpop.xlane.xlu0 %3127
  %v3129 = vsel %vm2300, %v2987, 0.0
  %3130 = vadd.xlane.f32.xlu0 %v3129
  %v3131 = vpop.xlane.xlu0 %3130
  %v3132 = vsel %vm2300, %v2988, 0.0
  %3133 = vadd.xlane.f32.xlu0 %v3132
  %v3134 = vpop.xlane.xlu0 %3133
  %v3135 = vsel %vm2300, %v2989, 0.0
  %3136 = vadd.xlane.f32.xlu0 %v3135
  %v3137 = vpop.xlane.xlu0 %3136
  %v3138 = vsel %vm2300, %v2990, 0.0
  %3139 = vadd.xlane.f32.xlu0 %v3138
  %v3140 = vpop.xlane.xlu0 %3139
  %v3141 = vsel %vm2300, %v2991, 0.0
  %3142 = vadd.xlane.f32.xlu0 %v3141
  %v3143 = vpop.xlane.xlu0 %3142
  %v3144 = vsel %vm2300, %v2992, 0.0
  %3145 = vadd.xlane.f32.xlu0 %v3144
  %v3146 = vpop.xlane.xlu0 %3145
  %v3147 = vsel %vm2300, %v2993, 0.0
  %3148 = vadd.xlane.f32.xlu0 %v3147
  %v3149 = vpop.xlane.xlu0 %3148
  %v3150 = vsel %vm2300, %v2994, 0.0
  %3151 = vadd.xlane.f32.xlu0 %v3150
  %v3152 = vpop.xlane.xlu0 %3151
  %v3153 = vsel %vm2300, %v2995, 0.0
  %3154 = vadd.xlane.f32.xlu0 %v3153
  %v3155 = vpop.xlane.xlu0 %3154
  %v3156 = vsel %vm2300, %v2996, 0.0
  %3157 = vadd.xlane.f32.xlu0 %v3156
  %v3158 = vpop.xlane.xlu0 %3157
  %v3159 = vsel %vm2300, %v2997, 0.0
  %3160 = vadd.xlane.f32.xlu0 %v3159
  %v3161 = vpop.xlane.xlu0 %3160
  %v3162 = vsel %vm2300, %v2998, 0.0
  %3163 = vadd.xlane.f32.xlu0 %v3162
  %v3164 = vpop.xlane.xlu0 %3163
  %v3165 = vsel %vm2300, %v2999, 0.0
  %3166 = vadd.xlane.f32.xlu0 %v3165
  %v3167 = vpop.xlane.xlu0 %3166
  %v3168 = vsel %vm2300, %v3000, 0.0
  %3169 = vadd.xlane.f32.xlu0 %v3168
  %v3170 = vpop.xlane.xlu0 %3169
  %v3171 = vsel %vm2300, %v3001, 0.0
  %3172 = vadd.xlane.f32.xlu0 %v3171
  %v3173 = vpop.xlane.xlu0 %3172
  %v3174 = vsel %vm2300, %v3002, 0.0
  %3175 = vadd.xlane.f32.xlu0 %v3174
  %v3176 = vpop.xlane.xlu0 %3175
  %v3177 = vsel %vm2300, %v3003, 0.0
  %3178 = vadd.xlane.f32.xlu0 %v3177
  %v3179 = vpop.xlane.xlu0 %3178
  %v3180 = vsel %vm2300, %v3004, 0.0
  %3181 = vadd.xlane.f32.xlu0 %v3180
  %v3182 = vpop.xlane.xlu0 %3181
  %v3183 = vsel %vm2300, %v3005, 0.0
  %3184 = vadd.xlane.f32.xlu0 %v3183
  %v3185 = vpop.xlane.xlu0 %3184
  %v3186 = vsel %vm2300, %v3006, 0.0
  %3187 = vadd.xlane.f32.xlu0 %v3186
  %v3188 = vpop.xlane.xlu0 %3187
  %v3189 = vsel %vm2300, %v3007, 0.0
  %3190 = vadd.xlane.f32.xlu0 %v3189
  %v3191 = vpop.xlane.xlu0 %3190
  %v3192 = vsel %vm2300, %v3008, 0.0
  %3193 = vadd.xlane.f32.xlu0 %v3192
  %v3194 = vpop.xlane.xlu0 %3193
  %v3195 = vsel %vm2300, %v3009, 0.0
  %3196 = vadd.xlane.f32.xlu0 %v3195
  %v3197 = vpop.xlane.xlu0 %3196
  %v3198 = vsel %vm2300, %v3010, 0.0
  %3199 = vadd.xlane.f32.xlu0 %v3198
  %v3200 = vpop.xlane.xlu0 %3199
  %v3201 = vsel %vm2300, %v3011, 0.0
  %3202 = vadd.xlane.f32.xlu0 %v3201
  %v3203 = vpop.xlane.xlu0 %3202
  %v3268 = vlaneseq
  %v3269 = vshrl.u32 %v3268, 7
  %v3270 = vsub.s32 %v2558, %v3269
  %v3271 = vrot.slane %v3014, %v3270
  %v3272 = vlaneseq
  %v3273 = vshrl.u32 %v3272, 7
  %v3274 = vsub.s32 %v2563, %v3273
  %v3275 = vrot.slane %v3017, %v3274
  %v3276 = vsel %vm2568, %v3275, %v3271
  %v3277 = vlaneseq
  %v3278 = vshrl.u32 %v3277, 7
  %v3279 = vsub.s32 %v2570, %v3278
  %v3280 = vrot.slane %v3020, %v3279
  %v3281 = vsel %vm2575, %v3280, %v3276
  %v3282 = vlaneseq
  %v3283 = vshrl.u32 %v3282, 7
  %v3284 = vsub.s32 %v2577, %v3283
  %v3285 = vrot.slane %v3023, %v3284
  %v3286 = vsel %vm2582, %v3285, %v3281
  %v3287 = vlaneseq
  %v3288 = vshrl.u32 %v3287, 7
  %v3289 = vsub.s32 %v2584, %v3288
  %v3290 = vrot.slane %v3026, %v3289
  %v3291 = vsel %vm2589, %v3290, %v3286
  %v3292 = vlaneseq
  %v3293 = vshrl.u32 %v3292, 7
  %v3294 = vsub.s32 %v2591, %v3293
  %v3295 = vrot.slane %v3029, %v3294
  %v3296 = vsel %vm2596, %v3295, %v3291
  %v3297 = vlaneseq
  %v3298 = vshrl.u32 %v3297, 7
  %v3299 = vsub.s32 %v2598, %v3298
  %v3300 = vrot.slane %v3032, %v3299
  %v3301 = vsel %vm2603, %v3300, %v3296
  %v3302 = vlaneseq
  %v3303 = vshrl.u32 %v3302, 7
  %v3304 = vsub.s32 %v2605, %v3303
  %v3305 = vrot.slane %v3035, %v3304
  %v3306 = vsel %vm2610, %v3305, %v3301
  %v3307 = vlaneseq
  %v3308 = vshrl.u32 %v3307, 7
  %v3309 = vsub.s32 %v2612, %v3308
  %v3310 = vrot.slane %v3038, %v3309
  %v3311 = vsel %vm2617, %v3310, %v3306
  %v3312 = vlaneseq
  %v3313 = vshrl.u32 %v3312, 7
  %v3314 = vsub.s32 %v2619, %v3313
  %v3315 = vrot.slane %v3041, %v3314
  %v3316 = vsel %vm2624, %v3315, %v3311
  %v3317 = vlaneseq
  %v3318 = vshrl.u32 %v3317, 7
  %v3319 = vsub.s32 %v2626, %v3318
  %v3320 = vrot.slane %v3044, %v3319
  %v3321 = vsel %vm2631, %v3320, %v3316
  %v3322 = vlaneseq
  %v3323 = vshrl.u32 %v3322, 7
  %v3324 = vsub.s32 %v2633, %v3323
  %v3325 = vrot.slane %v3047, %v3324
  %v3326 = vsel %vm2638, %v3325, %v3321
  %v3327 = vlaneseq
  %v3328 = vshrl.u32 %v3327, 7
  %v3329 = vsub.s32 %v2640, %v3328
  %v3330 = vrot.slane %v3050, %v3329
  %v3331 = vsel %vm2645, %v3330, %v3326
  %v3332 = vlaneseq
  %v3333 = vshrl.u32 %v3332, 7
  %v3334 = vsub.s32 %v2647, %v3333
  %v3335 = vrot.slane %v3053, %v3334
  %v3336 = vsel %vm2652, %v3335, %v3331
  %v3337 = vlaneseq
  %v3338 = vshrl.u32 %v3337, 7
  %v3339 = vsub.s32 %v2654, %v3338
  %v3340 = vrot.slane %v3056, %v3339
  %v3341 = vsel %vm2659, %v3340, %v3336
  %v3342 = vlaneseq
  %v3343 = vshrl.u32 %v3342, 7
  %v3344 = vsub.s32 %v2661, %v3343
  %v3345 = vrot.slane %v3059, %v3344
  %v3346 = vsel %vm2666, %v3345, %v3341
  %v3347 = vlaneseq
  %v3348 = vshrl.u32 %v3347, 7
  %v3349 = vsub.s32 %v2558, %v3348
  %v3350 = vrot.slane %v3062, %v3349
  %v3351 = vlaneseq
  %v3352 = vshrl.u32 %v3351, 7
  %v3353 = vsub.s32 %v2563, %v3352
  %v3354 = vrot.slane %v3065, %v3353
  %v3355 = vsel %vm2568, %v3354, %v3350
  %v3356 = vlaneseq
  %v3357 = vshrl.u32 %v3356, 7
  %v3358 = vsub.s32 %v2570, %v3357
  %v3359 = vrot.slane %v3068, %v3358
  %v3360 = vsel %vm2575, %v3359, %v3355
  %v3361 = vlaneseq
  %v3362 = vshrl.u32 %v3361, 7
  %v3363 = vsub.s32 %v2577, %v3362
  %v3364 = vrot.slane %v3071, %v3363
  %v3365 = vsel %vm2582, %v3364, %v3360
  %v3366 = vlaneseq
  %v3367 = vshrl.u32 %v3366, 7
  %v3368 = vsub.s32 %v2584, %v3367
  %v3369 = vrot.slane %v3074, %v3368
  %v3370 = vsel %vm2589, %v3369, %v3365
  %v3371 = vlaneseq
  %v3372 = vshrl.u32 %v3371, 7
  %v3373 = vsub.s32 %v2591, %v3372
  %v3374 = vrot.slane %v3077, %v3373
  %v3375 = vsel %vm2596, %v3374, %v3370
  %v3376 = vlaneseq
  %v3377 = vshrl.u32 %v3376, 7
  %v3378 = vsub.s32 %v2598, %v3377
  %v3379 = vrot.slane %v3080, %v3378
  %v3380 = vsel %vm2603, %v3379, %v3375
  %v3381 = vlaneseq
  %v3382 = vshrl.u32 %v3381, 7
  %v3383 = vsub.s32 %v2605, %v3382
  %v3384 = vrot.slane %v3083, %v3383
  %v3385 = vsel %vm2610, %v3384, %v3380
  %v3386 = vlaneseq
  %v3387 = vshrl.u32 %v3386, 7
  %v3388 = vsub.s32 %v2612, %v3387
  %v3389 = vrot.slane %v3086, %v3388
  %v3390 = vsel %vm2617, %v3389, %v3385
  %v3391 = vlaneseq
  %v3392 = vshrl.u32 %v3391, 7
  %v3393 = vsub.s32 %v2619, %v3392
  %v3394 = vrot.slane %v3089, %v3393
  %v3395 = vsel %vm2624, %v3394, %v3390
  %v3396 = vlaneseq
  %v3397 = vshrl.u32 %v3396, 7
  %v3398 = vsub.s32 %v2626, %v3397
  %v3399 = vrot.slane %v3092, %v3398
  %v3400 = vsel %vm2631, %v3399, %v3395
  %v3401 = vlaneseq
  %v3402 = vshrl.u32 %v3401, 7
  %v3403 = vsub.s32 %v2633, %v3402
  %v3404 = vrot.slane %v3095, %v3403
  %v3405 = vsel %vm2638, %v3404, %v3400
  %v3406 = vlaneseq
  %v3407 = vshrl.u32 %v3406, 7
  %v3408 = vsub.s32 %v2640, %v3407
  %v3409 = vrot.slane %v3098, %v3408
  %v3410 = vsel %vm2645, %v3409, %v3405
  %v3411 = vlaneseq
  %v3412 = vshrl.u32 %v3411, 7
  %v3413 = vsub.s32 %v2647, %v3412
  %v3414 = vrot.slane %v3101, %v3413
  %v3415 = vsel %vm2652, %v3414, %v3410
  %v3416 = vlaneseq
  %v3417 = vshrl.u32 %v3416, 7
  %v3418 = vsub.s32 %v2654, %v3417
  %v3419 = vrot.slane %v3104, %v3418
  %v3420 = vsel %vm2659, %v3419, %v3415
  %v3421 = vlaneseq
  %v3422 = vshrl.u32 %v3421, 7
  %v3423 = vsub.s32 %v2661, %v3422
  %v3424 = vrot.slane %v3107, %v3423
  %v3425 = vsel %vm2666, %v3424, %v3420
  %v3426 = vlaneseq
  %v3427 = vshrl.u32 %v3426, 7
  %v3428 = vsub.s32 %v2558, %v3427
  %v3429 = vrot.slane %v3110, %v3428
  %v3430 = vlaneseq
  %v3431 = vshrl.u32 %v3430, 7
  %v3432 = vsub.s32 %v2563, %v3431
  %v3433 = vrot.slane %v3113, %v3432
  %v3434 = vsel %vm2568, %v3433, %v3429
  %v3435 = vlaneseq
  %v3436 = vshrl.u32 %v3435, 7
  %v3437 = vsub.s32 %v2570, %v3436
  %v3438 = vrot.slane %v3116, %v3437
  %v3439 = vsel %vm2575, %v3438, %v3434
  %v3440 = vlaneseq
  %v3441 = vshrl.u32 %v3440, 7
  %v3442 = vsub.s32 %v2577, %v3441
  %v3443 = vrot.slane %v3119, %v3442
  %v3444 = vsel %vm2582, %v3443, %v3439
  %v3445 = vlaneseq
  %v3446 = vshrl.u32 %v3445, 7
  %v3447 = vsub.s32 %v2584, %v3446
  %v3448 = vrot.slane %v3122, %v3447
  %v3449 = vsel %vm2589, %v3448, %v3444
  %v3450 = vlaneseq
  %v3451 = vshrl.u32 %v3450, 7
  %v3452 = vsub.s32 %v2591, %v3451
  %v3453 = vrot.slane %v3125, %v3452
  %v3454 = vsel %vm2596, %v3453, %v3449
  %v3455 = vlaneseq
  %v3456 = vshrl.u32 %v3455, 7
  %v3457 = vsub.s32 %v2598, %v3456
  %v3458 = vrot.slane %v3128, %v3457
  %v3459 = vsel %vm2603, %v3458, %v3454
  %v3460 = vlaneseq
  %v3461 = vshrl.u32 %v3460, 7
  %v3462 = vsub.s32 %v2605, %v3461
  %v3463 = vrot.slane %v3131, %v3462
  %v3464 = vsel %vm2610, %v3463, %v3459
  %v3465 = vlaneseq
  %v3466 = vshrl.u32 %v3465, 7
  %v3467 = vsub.s32 %v2612, %v3466
  %v3468 = vrot.slane %v3134, %v3467
  %v3469 = vsel %vm2617, %v3468, %v3464
  %v3470 = vlaneseq
  %v3471 = vshrl.u32 %v3470, 7
  %v3472 = vsub.s32 %v2619, %v3471
  %v3473 = vrot.slane %v3137, %v3472
  %v3474 = vsel %vm2624, %v3473, %v3469
  %v3475 = vlaneseq
  %v3476 = vshrl.u32 %v3475, 7
  %v3477 = vsub.s32 %v2626, %v3476
  %v3478 = vrot.slane %v3140, %v3477
  %v3479 = vsel %vm2631, %v3478, %v3474
  %v3480 = vlaneseq
  %v3481 = vshrl.u32 %v3480, 7
  %v3482 = vsub.s32 %v2633, %v3481
  %v3483 = vrot.slane %v3143, %v3482
  %v3484 = vsel %vm2638, %v3483, %v3479
  %v3485 = vlaneseq
  %v3486 = vshrl.u32 %v3485, 7
  %v3487 = vsub.s32 %v2640, %v3486
  %v3488 = vrot.slane %v3146, %v3487
  %v3489 = vsel %vm2645, %v3488, %v3484
  %v3490 = vlaneseq
  %v3491 = vshrl.u32 %v3490, 7
  %v3492 = vsub.s32 %v2647, %v3491
  %v3493 = vrot.slane %v3149, %v3492
  %v3494 = vsel %vm2652, %v3493, %v3489
  %v3495 = vlaneseq
  %v3496 = vshrl.u32 %v3495, 7
  %v3497 = vsub.s32 %v2654, %v3496
  %v3498 = vrot.slane %v3152, %v3497
  %v3499 = vsel %vm2659, %v3498, %v3494
  %v3500 = vlaneseq
  %v3501 = vshrl.u32 %v3500, 7
  %v3502 = vsub.s32 %v2661, %v3501
  %v3503 = vrot.slane %v3155, %v3502
  %v3504 = vsel %vm2666, %v3503, %v3499
  %v3505 = vlaneseq
  %v3506 = vshrl.u32 %v3505, 7
  %v3507 = vsub.s32 %v2558, %v3506
  %v3508 = vrot.slane %v3158, %v3507
  %v3509 = vlaneseq
  %v3510 = vshrl.u32 %v3509, 7
  %v3511 = vsub.s32 %v2563, %v3510
  %v3512 = vrot.slane %v3161, %v3511
  %v3513 = vsel %vm2568, %v3512, %v3508
  %v3514 = vlaneseq
  %v3515 = vshrl.u32 %v3514, 7
  %v3516 = vsub.s32 %v2570, %v3515
  %v3517 = vrot.slane %v3164, %v3516
  %v3518 = vsel %vm2575, %v3517, %v3513
  %v3519 = vlaneseq
  %v3520 = vshrl.u32 %v3519, 7
  %v3521 = vsub.s32 %v2577, %v3520
  %v3522 = vrot.slane %v3167, %v3521
  %v3523 = vsel %vm2582, %v3522, %v3518
  %v3524 = vlaneseq
  %v3525 = vshrl.u32 %v3524, 7
  %v3526 = vsub.s32 %v2584, %v3525
  %v3527 = vrot.slane %v3170, %v3526
  %v3528 = vsel %vm2589, %v3527, %v3523
  %v3529 = vlaneseq
  %v3530 = vshrl.u32 %v3529, 7
  %v3531 = vsub.s32 %v2591, %v3530
  %v3532 = vrot.slane %v3173, %v3531
  %v3533 = vsel %vm2596, %v3532, %v3528
  %v3534 = vlaneseq
  %v3535 = vshrl.u32 %v3534, 7
  %v3536 = vsub.s32 %v2598, %v3535
  %v3537 = vrot.slane %v3176, %v3536
  %v3538 = vsel %vm2603, %v3537, %v3533
  %v3539 = vlaneseq
  %v3540 = vshrl.u32 %v3539, 7
  %v3541 = vsub.s32 %v2605, %v3540
  %v3542 = vrot.slane %v3179, %v3541
  %v3543 = vsel %vm2610, %v3542, %v3538
  %v3544 = vlaneseq
  %v3545 = vshrl.u32 %v3544, 7
  %v3546 = vsub.s32 %v2612, %v3545
  %v3547 = vrot.slane %v3182, %v3546
  %v3548 = vsel %vm2617, %v3547, %v3543
  %v3549 = vlaneseq
  %v3550 = vshrl.u32 %v3549, 7
  %v3551 = vsub.s32 %v2619, %v3550
  %v3552 = vrot.slane %v3185, %v3551
  %v3553 = vsel %vm2624, %v3552, %v3548
  %v3554 = vlaneseq
  %v3555 = vshrl.u32 %v3554, 7
  %v3556 = vsub.s32 %v2626, %v3555
  %v3557 = vrot.slane %v3188, %v3556
  %v3558 = vsel %vm2631, %v3557, %v3553
  %v3559 = vlaneseq
  %v3560 = vshrl.u32 %v3559, 7
  %v3561 = vsub.s32 %v2633, %v3560
  %v3562 = vrot.slane %v3191, %v3561
  %v3563 = vsel %vm2638, %v3562, %v3558
  %v3564 = vlaneseq
  %v3565 = vshrl.u32 %v3564, 7
  %v3566 = vsub.s32 %v2640, %v3565
  %v3567 = vrot.slane %v3194, %v3566
  %v3568 = vsel %vm2645, %v3567, %v3563
  %v3569 = vlaneseq
  %v3570 = vshrl.u32 %v3569, 7
  %v3571 = vsub.s32 %v2647, %v3570
  %v3572 = vrot.slane %v3197, %v3571
  %v3573 = vsel %vm2652, %v3572, %v3568
  %v3574 = vlaneseq
  %v3575 = vshrl.u32 %v3574, 7
  %v3576 = vsub.s32 %v2654, %v3575
  %v3577 = vrot.slane %v3200, %v3576
  %v3578 = vsel %vm2659, %v3577, %v3573
  %v3579 = vlaneseq
  %v3580 = vshrl.u32 %v3579, 7
  %v3581 = vsub.s32 %v2661, %v3580
  %v3582 = vrot.slane %v3203, %v3581
  %v3583 = vsel %vm2666, %v3582, %v3578
  %v3584 = vsel %vm2905, %v3504, %v3346
  %v3585 = vsel %vm2905, %v3583, %v3425
  %v3588 = vsel %vm1527, %v3584, 0.0
  %v3589 = vsel %vm1527, %v3585, 0.0
  %v3590 = vadd.f32 %v3588, %v3589
  %3591 = vadd.xlane.f32.xlu0 %v3590
  %v3592 = vpop.xlane.xlu0 %3591
  %s3593 = scalar_lea.vmem %s5, 512
  %v3594 = vld [vmem:[%s3593] sm:$0xff]
  %v3595 = vld [vmem:[%s3593 + $0x8] sm:$0xff]
  %v3596 = vld [vmem:[%s3593 + $0x10] sm:$0xff]
  %v3597 = vld [vmem:[%s3593 + $0x18] sm:$0xff]
  %v3598 = vld [vmem:[%s3593 + $0x20] sm:$0xff]
  %v3599 = vld [vmem:[%s3593 + $0x28] sm:$0xff]
  %v3600 = vld [vmem:[%s3593 + $0x30] sm:$0xff]
  %v3601 = vld [vmem:[%s3593 + $0x38] sm:$0xff]
  %v3602 = vld [vmem:[%s3593 + $0x40] sm:$0xff]
  %v3603 = vld [vmem:[%s3593 + $0x48] sm:$0xff]
  %v3604 = vld [vmem:[%s3593 + $0x50] sm:$0xff]
  %v3605 = vld [vmem:[%s3593 + $0x58] sm:$0xff]
  %v3606 = vld [vmem:[%s3593 + $0x60] sm:$0xff]
  %v3607 = vld [vmem:[%s3593 + $0x68] sm:$0xff]
  %v3608 = vld [vmem:[%s3593 + $0x70] sm:$0xff]
  %v3609 = vld [vmem:[%s3593 + $0x78] sm:$0xff]
  %v3610 = vld [vmem:[%s3593 + $0x80] sm:$0xff]
  %v3611 = vld [vmem:[%s3593 + $0x88] sm:$0xff]
  %v3612 = vld [vmem:[%s3593 + $0x90] sm:$0xff]
  %v3613 = vld [vmem:[%s3593 + $0x98] sm:$0xff]
  %v3614 = vld [vmem:[%s3593 + $0xa0] sm:$0xff]
  %v3615 = vld [vmem:[%s3593 + $0xa8] sm:$0xff]
  %v3616 = vld [vmem:[%s3593 + $0xb0] sm:$0xff]
  %v3617 = vld [vmem:[%s3593 + $0xb8] sm:$0xff]
  %v3618 = vld [vmem:[%s3593 + $0xc0] sm:$0xff]
  %v3619 = vld [vmem:[%s3593 + $0xc8] sm:$0xff]
  %v3620 = vld [vmem:[%s3593 + $0xd0] sm:$0xff]
  %v3621 = vld [vmem:[%s3593 + $0xd8] sm:$0xff]
  %v3622 = vld [vmem:[%s3593 + $0xe0] sm:$0xff]
  %v3623 = vld [vmem:[%s3593 + $0xe8] sm:$0xff]
  %v3624 = vld [vmem:[%s3593 + $0xf0] sm:$0xff]
  %v3625 = vld [vmem:[%s3593 + $0xf8] sm:$0xff]
  %v3626 = vmul.f32 %v2140, %v3594
  %v3627 = vmul.f32 %v2141, %v3595
  %v3628 = vmul.f32 %v2142, %v3596
  %v3629 = vmul.f32 %v2143, %v3597
  %v3630 = vmul.f32 %v2144, %v3598
  %v3631 = vmul.f32 %v2145, %v3599
  %v3632 = vmul.f32 %v2146, %v3600
  %v3633 = vmul.f32 %v2147, %v3601
  %v3634 = vmul.f32 %v2148, %v3602
  %v3635 = vmul.f32 %v2149, %v3603
  %v3636 = vmul.f32 %v2150, %v3604
  %v3637 = vmul.f32 %v2151, %v3605
  %v3638 = vmul.f32 %v2152, %v3606
  %v3639 = vmul.f32 %v2153, %v3607
  %v3640 = vmul.f32 %v2154, %v3608
  %v3641 = vmul.f32 %v2155, %v3609
  %v3642 = vmul.f32 %v2156, %v3610
  %v3643 = vmul.f32 %v2157, %v3611
  %v3644 = vmul.f32 %v2158, %v3612
  %v3645 = vmul.f32 %v2159, %v3613
  %v3646 = vmul.f32 %v2160, %v3614
  %v3647 = vmul.f32 %v2161, %v3615
  %v3648 = vmul.f32 %v2162, %v3616
  %v3649 = vmul.f32 %v2163, %v3617
  %v3650 = vmul.f32 %v2164, %v3618
  %v3651 = vmul.f32 %v2165, %v3619
  %v3652 = vmul.f32 %v2166, %v3620
  %v3653 = vmul.f32 %v2167, %v3621
  %v3654 = vmul.f32 %v2168, %v3622
  %v3655 = vmul.f32 %v2169, %v3623
  %v3656 = vmul.f32 %v2170, %v3624
  %v3657 = vmul.f32 %v2171, %v3625
  %v3658 = vmul.f32 %v2172, %v3594
  %v3659 = vmul.f32 %v2173, %v3595
  %v3660 = vmul.f32 %v2174, %v3596
  %v3661 = vmul.f32 %v2175, %v3597
  %v3662 = vmul.f32 %v2176, %v3598
  %v3663 = vmul.f32 %v2177, %v3599
  %v3664 = vmul.f32 %v2178, %v3600
  %v3665 = vmul.f32 %v2179, %v3601
  %v3666 = vmul.f32 %v2180, %v3602
  %v3667 = vmul.f32 %v2181, %v3603
  %v3668 = vmul.f32 %v2182, %v3604
  %v3669 = vmul.f32 %v2183, %v3605
  %v3670 = vmul.f32 %v2184, %v3606
  %v3671 = vmul.f32 %v2185, %v3607
  %v3672 = vmul.f32 %v2186, %v3608
  %v3673 = vmul.f32 %v2187, %v3609
  %v3674 = vmul.f32 %v2188, %v3610
  %v3675 = vmul.f32 %v2189, %v3611
  %v3676 = vmul.f32 %v2190, %v3612
  %v3677 = vmul.f32 %v2191, %v3613
  %v3678 = vmul.f32 %v2192, %v3614
  %v3679 = vmul.f32 %v2193, %v3615
  %v3680 = vmul.f32 %v2194, %v3616
  %v3681 = vmul.f32 %v2195, %v3617
  %v3682 = vmul.f32 %v2196, %v3618
  %v3683 = vmul.f32 %v2197, %v3619
  %v3684 = vmul.f32 %v2198, %v3620
  %v3685 = vmul.f32 %v2199, %v3621
  %v3686 = vmul.f32 %v2200, %v3622
  %v3687 = vmul.f32 %v2201, %v3623
  %v3688 = vmul.f32 %v2202, %v3624
  %v3689 = vmul.f32 %v2203, %v3625
  %v3690 = vsel %vm2300, %v3626, 0.0
  %3691 = vadd.xlane.f32.xlu0 %v3690
  %v3692 = vpop.xlane.xlu0 %3691
  %v3693 = vsel %vm2300, %v3627, 0.0
  %3694 = vadd.xlane.f32.xlu0 %v3693
  %v3695 = vpop.xlane.xlu0 %3694
  %v3696 = vsel %vm2300, %v3628, 0.0
  %3697 = vadd.xlane.f32.xlu0 %v3696
  %v3698 = vpop.xlane.xlu0 %3697
  %v3699 = vsel %vm2300, %v3629, 0.0
  %3700 = vadd.xlane.f32.xlu0 %v3699
  %v3701 = vpop.xlane.xlu0 %3700
  %v3702 = vsel %vm2300, %v3630, 0.0
  %3703 = vadd.xlane.f32.xlu0 %v3702
  %v3704 = vpop.xlane.xlu0 %3703
  %v3705 = vsel %vm2300, %v3631, 0.0
  %3706 = vadd.xlane.f32.xlu0 %v3705
  %v3707 = vpop.xlane.xlu0 %3706
  %v3708 = vsel %vm2300, %v3632, 0.0
  %3709 = vadd.xlane.f32.xlu0 %v3708
  %v3710 = vpop.xlane.xlu0 %3709
  %v3711 = vsel %vm2300, %v3633, 0.0
  %3712 = vadd.xlane.f32.xlu0 %v3711
  %v3713 = vpop.xlane.xlu0 %3712
  %v3714 = vsel %vm2300, %v3634, 0.0
  %3715 = vadd.xlane.f32.xlu0 %v3714
  %v3716 = vpop.xlane.xlu0 %3715
  %v3717 = vsel %vm2300, %v3635, 0.0
  %3718 = vadd.xlane.f32.xlu0 %v3717
  %v3719 = vpop.xlane.xlu0 %3718
  %v3720 = vsel %vm2300, %v3636, 0.0
  %3721 = vadd.xlane.f32.xlu0 %v3720
  %v3722 = vpop.xlane.xlu0 %3721
  %v3723 = vsel %vm2300, %v3637, 0.0
  %3724 = vadd.xlane.f32.xlu0 %v3723
  %v3725 = vpop.xlane.xlu0 %3724
  %v3726 = vsel %vm2300, %v3638, 0.0
  %3727 = vadd.xlane.f32.xlu0 %v3726
  %v3728 = vpop.xlane.xlu0 %3727
  %v3729 = vsel %vm2300, %v3639, 0.0
  %3730 = vadd.xlane.f32.xlu0 %v3729
  %v3731 = vpop.xlane.xlu0 %3730
  %v3732 = vsel %vm2300, %v3640, 0.0
  %3733 = vadd.xlane.f32.xlu0 %v3732
  %v3734 = vpop.xlane.xlu0 %3733
  %v3735 = vsel %vm2300, %v3641, 0.0
  %3736 = vadd.xlane.f32.xlu0 %v3735
  %v3737 = vpop.xlane.xlu0 %3736
  %v3738 = vsel %vm2300, %v3642, 0.0
  %3739 = vadd.xlane.f32.xlu0 %v3738
  %v3740 = vpop.xlane.xlu0 %3739
  %v3741 = vsel %vm2300, %v3643, 0.0
  %3742 = vadd.xlane.f32.xlu0 %v3741
  %v3743 = vpop.xlane.xlu0 %3742
  %v3744 = vsel %vm2300, %v3644, 0.0
  %3745 = vadd.xlane.f32.xlu0 %v3744
  %v3746 = vpop.xlane.xlu0 %3745
  %v3747 = vsel %vm2300, %v3645, 0.0
  %3748 = vadd.xlane.f32.xlu0 %v3747
  %v3749 = vpop.xlane.xlu0 %3748
  %v3750 = vsel %vm2300, %v3646, 0.0
  %3751 = vadd.xlane.f32.xlu0 %v3750
  %v3752 = vpop.xlane.xlu0 %3751
  %v3753 = vsel %vm2300, %v3647, 0.0
  %3754 = vadd.xlane.f32.xlu0 %v3753
  %v3755 = vpop.xlane.xlu0 %3754
  %v3756 = vsel %vm2300, %v3648, 0.0
  %3757 = vadd.xlane.f32.xlu0 %v3756
  %v3758 = vpop.xlane.xlu0 %3757
  %v3759 = vsel %vm2300, %v3649, 0.0
  %3760 = vadd.xlane.f32.xlu0 %v3759
  %v3761 = vpop.xlane.xlu0 %3760
  %v3762 = vsel %vm2300, %v3650, 0.0
  %3763 = vadd.xlane.f32.xlu0 %v3762
  %v3764 = vpop.xlane.xlu0 %3763
  %v3765 = vsel %vm2300, %v3651, 0.0
  %3766 = vadd.xlane.f32.xlu0 %v3765
  %v3767 = vpop.xlane.xlu0 %3766
  %v3768 = vsel %vm2300, %v3652, 0.0
  %3769 = vadd.xlane.f32.xlu0 %v3768
  %v3770 = vpop.xlane.xlu0 %3769
  %v3771 = vsel %vm2300, %v3653, 0.0
  %3772 = vadd.xlane.f32.xlu0 %v3771
  %v3773 = vpop.xlane.xlu0 %3772
  %v3774 = vsel %vm2300, %v3654, 0.0
  %3775 = vadd.xlane.f32.xlu0 %v3774
  %v3776 = vpop.xlane.xlu0 %3775
  %v3777 = vsel %vm2300, %v3655, 0.0
  %3778 = vadd.xlane.f32.xlu0 %v3777
  %v3779 = vpop.xlane.xlu0 %3778
  %v3780 = vsel %vm2300, %v3656, 0.0
  %3781 = vadd.xlane.f32.xlu0 %v3780
  %v3782 = vpop.xlane.xlu0 %3781
  %v3783 = vsel %vm2300, %v3657, 0.0
  %3784 = vadd.xlane.f32.xlu0 %v3783
  %v3785 = vpop.xlane.xlu0 %3784
  %v3786 = vsel %vm2300, %v3658, 0.0
  %3787 = vadd.xlane.f32.xlu0 %v3786
  %v3788 = vpop.xlane.xlu0 %3787
  %v3789 = vsel %vm2300, %v3659, 0.0
  %3790 = vadd.xlane.f32.xlu0 %v3789
  %v3791 = vpop.xlane.xlu0 %3790
  %v3792 = vsel %vm2300, %v3660, 0.0
  %3793 = vadd.xlane.f32.xlu0 %v3792
  %v3794 = vpop.xlane.xlu0 %3793
  %v3795 = vsel %vm2300, %v3661, 0.0
  %3796 = vadd.xlane.f32.xlu0 %v3795
  %v3797 = vpop.xlane.xlu0 %3796
  %v3798 = vsel %vm2300, %v3662, 0.0
  %3799 = vadd.xlane.f32.xlu0 %v3798
  %v3800 = vpop.xlane.xlu0 %3799
  %v3801 = vsel %vm2300, %v3663, 0.0
  %3802 = vadd.xlane.f32.xlu0 %v3801
  %v3803 = vpop.xlane.xlu0 %3802
  %v3804 = vsel %vm2300, %v3664, 0.0
  %3805 = vadd.xlane.f32.xlu0 %v3804
  %v3806 = vpop.xlane.xlu0 %3805
  %v3807 = vsel %vm2300, %v3665, 0.0
  %3808 = vadd.xlane.f32.xlu0 %v3807
  %v3809 = vpop.xlane.xlu0 %3808
  %v3810 = vsel %vm2300, %v3666, 0.0
  %3811 = vadd.xlane.f32.xlu0 %v3810
  %v3812 = vpop.xlane.xlu0 %3811
  %v3813 = vsel %vm2300, %v3667, 0.0
  %3814 = vadd.xlane.f32.xlu0 %v3813
  %v3815 = vpop.xlane.xlu0 %3814
  %v3816 = vsel %vm2300, %v3668, 0.0
  %3817 = vadd.xlane.f32.xlu0 %v3816
  %v3818 = vpop.xlane.xlu0 %3817
  %v3819 = vsel %vm2300, %v3669, 0.0
  %3820 = vadd.xlane.f32.xlu0 %v3819
  %v3821 = vpop.xlane.xlu0 %3820
  %v3822 = vsel %vm2300, %v3670, 0.0
  %3823 = vadd.xlane.f32.xlu0 %v3822
  %v3824 = vpop.xlane.xlu0 %3823
  %v3825 = vsel %vm2300, %v3671, 0.0
  %3826 = vadd.xlane.f32.xlu0 %v3825
  %v3827 = vpop.xlane.xlu0 %3826
  %v3828 = vsel %vm2300, %v3672, 0.0
  %3829 = vadd.xlane.f32.xlu0 %v3828
  %v3830 = vpop.xlane.xlu0 %3829
  %v3831 = vsel %vm2300, %v3673, 0.0
  %3832 = vadd.xlane.f32.xlu0 %v3831
  %v3833 = vpop.xlane.xlu0 %3832
  %v3834 = vsel %vm2300, %v3674, 0.0
  %3835 = vadd.xlane.f32.xlu0 %v3834
  %v3836 = vpop.xlane.xlu0 %3835
  %v3837 = vsel %vm2300, %v3675, 0.0
  %3838 = vadd.xlane.f32.xlu0 %v3837
  %v3839 = vpop.xlane.xlu0 %3838
  %v3840 = vsel %vm2300, %v3676, 0.0
  %3841 = vadd.xlane.f32.xlu0 %v3840
  %v3842 = vpop.xlane.xlu0 %3841
  %v3843 = vsel %vm2300, %v3677, 0.0
  %3844 = vadd.xlane.f32.xlu0 %v3843
  %v3845 = vpop.xlane.xlu0 %3844
  %v3846 = vsel %vm2300, %v3678, 0.0
  %3847 = vadd.xlane.f32.xlu0 %v3846
  %v3848 = vpop.xlane.xlu0 %3847
  %v3849 = vsel %vm2300, %v3679, 0.0
  %3850 = vadd.xlane.f32.xlu0 %v3849
  %v3851 = vpop.xlane.xlu0 %3850
  %v3852 = vsel %vm2300, %v3680, 0.0
  %3853 = vadd.xlane.f32.xlu0 %v3852
  %v3854 = vpop.xlane.xlu0 %3853
  %v3855 = vsel %vm2300, %v3681, 0.0
  %3856 = vadd.xlane.f32.xlu0 %v3855
  %v3857 = vpop.xlane.xlu0 %3856
  %v3858 = vsel %vm2300, %v3682, 0.0
  %3859 = vadd.xlane.f32.xlu0 %v3858
  %v3860 = vpop.xlane.xlu0 %3859
  %v3861 = vsel %vm2300, %v3683, 0.0
  %3862 = vadd.xlane.f32.xlu0 %v3861
  %v3863 = vpop.xlane.xlu0 %3862
  %v3864 = vsel %vm2300, %v3684, 0.0
  %3865 = vadd.xlane.f32.xlu0 %v3864
  %v3866 = vpop.xlane.xlu0 %3865
  %v3867 = vsel %vm2300, %v3685, 0.0
  %3868 = vadd.xlane.f32.xlu0 %v3867
  %v3869 = vpop.xlane.xlu0 %3868
  %v3870 = vsel %vm2300, %v3686, 0.0
  %3871 = vadd.xlane.f32.xlu0 %v3870
  %v3872 = vpop.xlane.xlu0 %3871
  %v3873 = vsel %vm2300, %v3687, 0.0
  %3874 = vadd.xlane.f32.xlu0 %v3873
  %v3875 = vpop.xlane.xlu0 %3874
  %v3876 = vsel %vm2300, %v3688, 0.0
  %3877 = vadd.xlane.f32.xlu0 %v3876
  %v3878 = vpop.xlane.xlu0 %3877
  %v3879 = vsel %vm2300, %v3689, 0.0
  %3880 = vadd.xlane.f32.xlu0 %v3879
  %v3881 = vpop.xlane.xlu0 %3880
  %v3946 = vlaneseq
  %v3947 = vshrl.u32 %v3946, 7
  %v3948 = vsub.s32 %v2558, %v3947
  %v3949 = vrot.slane %v3692, %v3948
  %v3950 = vlaneseq
  %v3951 = vshrl.u32 %v3950, 7
  %v3952 = vsub.s32 %v2563, %v3951
  %v3953 = vrot.slane %v3695, %v3952
  %v3954 = vsel %vm2568, %v3953, %v3949
  %v3955 = vlaneseq
  %v3956 = vshrl.u32 %v3955, 7
  %v3957 = vsub.s32 %v2570, %v3956
  %v3958 = vrot.slane %v3698, %v3957
  %v3959 = vsel %vm2575, %v3958, %v3954
  %v3960 = vlaneseq
  %v3961 = vshrl.u32 %v3960, 7
  %v3962 = vsub.s32 %v2577, %v3961
  %v3963 = vrot.slane %v3701, %v3962
  %v3964 = vsel %vm2582, %v3963, %v3959
  %v3965 = vlaneseq
  %v3966 = vshrl.u32 %v3965, 7
  %v3967 = vsub.s32 %v2584, %v3966
  %v3968 = vrot.slane %v3704, %v3967
  %v3969 = vsel %vm2589, %v3968, %v3964
  %v3970 = vlaneseq
  %v3971 = vshrl.u32 %v3970, 7
  %v3972 = vsub.s32 %v2591, %v3971
  %v3973 = vrot.slane %v3707, %v3972
  %v3974 = vsel %vm2596, %v3973, %v3969
  %v3975 = vlaneseq
  %v3976 = vshrl.u32 %v3975, 7
  %v3977 = vsub.s32 %v2598, %v3976
  %v3978 = vrot.slane %v3710, %v3977
  %v3979 = vsel %vm2603, %v3978, %v3974
  %v3980 = vlaneseq
  %v3981 = vshrl.u32 %v3980, 7
  %v3982 = vsub.s32 %v2605, %v3981
  %v3983 = vrot.slane %v3713, %v3982
  %v3984 = vsel %vm2610, %v3983, %v3979
  %v3985 = vlaneseq
  %v3986 = vshrl.u32 %v3985, 7
  %v3987 = vsub.s32 %v2612, %v3986
  %v3988 = vrot.slane %v3716, %v3987
  %v3989 = vsel %vm2617, %v3988, %v3984
  %v3990 = vlaneseq
  %v3991 = vshrl.u32 %v3990, 7
  %v3992 = vsub.s32 %v2619, %v3991
  %v3993 = vrot.slane %v3719, %v3992
  %v3994 = vsel %vm2624, %v3993, %v3989
  %v3995 = vlaneseq
  %v3996 = vshrl.u32 %v3995, 7
  %v3997 = vsub.s32 %v2626, %v3996
  %v3998 = vrot.slane %v3722, %v3997
  %v3999 = vsel %vm2631, %v3998, %v3994
  %v4000 = vlaneseq
  %v4001 = vshrl.u32 %v4000, 7
  %v4002 = vsub.s32 %v2633, %v4001
  %v4003 = vrot.slane %v3725, %v4002
  %v4004 = vsel %vm2638, %v4003, %v3999
  %v4005 = vlaneseq
  %v4006 = vshrl.u32 %v4005, 7
  %v4007 = vsub.s32 %v2640, %v4006
  %v4008 = vrot.slane %v3728, %v4007
  %v4009 = vsel %vm2645, %v4008, %v4004
  %v4010 = vlaneseq
  %v4011 = vshrl.u32 %v4010, 7
  %v4012 = vsub.s32 %v2647, %v4011
  %v4013 = vrot.slane %v3731, %v4012
  %v4014 = vsel %vm2652, %v4013, %v4009
  %v4015 = vlaneseq
  %v4016 = vshrl.u32 %v4015, 7
  %v4017 = vsub.s32 %v2654, %v4016
  %v4018 = vrot.slane %v3734, %v4017
  %v4019 = vsel %vm2659, %v4018, %v4014
  %v4020 = vlaneseq
  %v4021 = vshrl.u32 %v4020, 7
  %v4022 = vsub.s32 %v2661, %v4021
  %v4023 = vrot.slane %v3737, %v4022
  %v4024 = vsel %vm2666, %v4023, %v4019
  %v4025 = vlaneseq
  %v4026 = vshrl.u32 %v4025, 7
  %v4027 = vsub.s32 %v2558, %v4026
  %v4028 = vrot.slane %v3740, %v4027
  %v4029 = vlaneseq
  %v4030 = vshrl.u32 %v4029, 7
  %v4031 = vsub.s32 %v2563, %v4030
  %v4032 = vrot.slane %v3743, %v4031
  %v4033 = vsel %vm2568, %v4032, %v4028
  %v4034 = vlaneseq
  %v4035 = vshrl.u32 %v4034, 7
  %v4036 = vsub.s32 %v2570, %v4035
  %v4037 = vrot.slane %v3746, %v4036
  %v4038 = vsel %vm2575, %v4037, %v4033
  %v4039 = vlaneseq
  %v4040 = vshrl.u32 %v4039, 7
  %v4041 = vsub.s32 %v2577, %v4040
  %v4042 = vrot.slane %v3749, %v4041
  %v4043 = vsel %vm2582, %v4042, %v4038
  %v4044 = vlaneseq
  %v4045 = vshrl.u32 %v4044, 7
  %v4046 = vsub.s32 %v2584, %v4045
  %v4047 = vrot.slane %v3752, %v4046
  %v4048 = vsel %vm2589, %v4047, %v4043
  %v4049 = vlaneseq
  %v4050 = vshrl.u32 %v4049, 7
  %v4051 = vsub.s32 %v2591, %v4050
  %v4052 = vrot.slane %v3755, %v4051
  %v4053 = vsel %vm2596, %v4052, %v4048
  %v4054 = vlaneseq
  %v4055 = vshrl.u32 %v4054, 7
  %v4056 = vsub.s32 %v2598, %v4055
  %v4057 = vrot.slane %v3758, %v4056
  %v4058 = vsel %vm2603, %v4057, %v4053
  %v4059 = vlaneseq
  %v4060 = vshrl.u32 %v4059, 7
  %v4061 = vsub.s32 %v2605, %v4060
  %v4062 = vrot.slane %v3761, %v4061
  %v4063 = vsel %vm2610, %v4062, %v4058
  %v4064 = vlaneseq
  %v4065 = vshrl.u32 %v4064, 7
  %v4066 = vsub.s32 %v2612, %v4065
  %v4067 = vrot.slane %v3764, %v4066
  %v4068 = vsel %vm2617, %v4067, %v4063
  %v4069 = vlaneseq
  %v4070 = vshrl.u32 %v4069, 7
  %v4071 = vsub.s32 %v2619, %v4070
  %v4072 = vrot.slane %v3767, %v4071
  %v4073 = vsel %vm2624, %v4072, %v4068
  %v4074 = vlaneseq
  %v4075 = vshrl.u32 %v4074, 7
  %v4076 = vsub.s32 %v2626, %v4075
  %v4077 = vrot.slane %v3770, %v4076
  %v4078 = vsel %vm2631, %v4077, %v4073
  %v4079 = vlaneseq
  %v4080 = vshrl.u32 %v4079, 7
  %v4081 = vsub.s32 %v2633, %v4080
  %v4082 = vrot.slane %v3773, %v4081
  %v4083 = vsel %vm2638, %v4082, %v4078
  %v4084 = vlaneseq
  %v4085 = vshrl.u32 %v4084, 7
  %v4086 = vsub.s32 %v2640, %v4085
  %v4087 = vrot.slane %v3776, %v4086
  %v4088 = vsel %vm2645, %v4087, %v4083
  %v4089 = vlaneseq
  %v4090 = vshrl.u32 %v4089, 7
  %v4091 = vsub.s32 %v2647, %v4090
  %v4092 = vrot.slane %v3779, %v4091
  %v4093 = vsel %vm2652, %v4092, %v4088
  %v4094 = vlaneseq
  %v4095 = vshrl.u32 %v4094, 7
  %v4096 = vsub.s32 %v2654, %v4095
  %v4097 = vrot.slane %v3782, %v4096
  %v4098 = vsel %vm2659, %v4097, %v4093
  %v4099 = vlaneseq
  %v4100 = vshrl.u32 %v4099, 7
  %v4101 = vsub.s32 %v2661, %v4100
  %v4102 = vrot.slane %v3785, %v4101
  %v4103 = vsel %vm2666, %v4102, %v4098
  %v4104 = vlaneseq
  %v4105 = vshrl.u32 %v4104, 7
  %v4106 = vsub.s32 %v2558, %v4105
  %v4107 = vrot.slane %v3788, %v4106
  %v4108 = vlaneseq
  %v4109 = vshrl.u32 %v4108, 7
  %v4110 = vsub.s32 %v2563, %v4109
  %v4111 = vrot.slane %v3791, %v4110
  %v4112 = vsel %vm2568, %v4111, %v4107
  %v4113 = vlaneseq
  %v4114 = vshrl.u32 %v4113, 7
  %v4115 = vsub.s32 %v2570, %v4114
  %v4116 = vrot.slane %v3794, %v4115
  %v4117 = vsel %vm2575, %v4116, %v4112
  %v4118 = vlaneseq
  %v4119 = vshrl.u32 %v4118, 7
  %v4120 = vsub.s32 %v2577, %v4119
  %v4121 = vrot.slane %v3797, %v4120
  %v4122 = vsel %vm2582, %v4121, %v4117
  %v4123 = vlaneseq
  %v4124 = vshrl.u32 %v4123, 7
  %v4125 = vsub.s32 %v2584, %v4124
  %v4126 = vrot.slane %v3800, %v4125
  %v4127 = vsel %vm2589, %v4126, %v4122
  %v4128 = vlaneseq
  %v4129 = vshrl.u32 %v4128, 7
  %v4130 = vsub.s32 %v2591, %v4129
  %v4131 = vrot.slane %v3803, %v4130
  %v4132 = vsel %vm2596, %v4131, %v4127
  %v4133 = vlaneseq
  %v4134 = vshrl.u32 %v4133, 7
  %v4135 = vsub.s32 %v2598, %v4134
  %v4136 = vrot.slane %v3806, %v4135
  %v4137 = vsel %vm2603, %v4136, %v4132
  %v4138 = vlaneseq
  %v4139 = vshrl.u32 %v4138, 7
  %v4140 = vsub.s32 %v2605, %v4139
  %v4141 = vrot.slane %v3809, %v4140
  %v4142 = vsel %vm2610, %v4141, %v4137
  %v4143 = vlaneseq
  %v4144 = vshrl.u32 %v4143, 7
  %v4145 = vsub.s32 %v2612, %v4144
  %v4146 = vrot.slane %v3812, %v4145
  %v4147 = vsel %vm2617, %v4146, %v4142
  %v4148 = vlaneseq
  %v4149 = vshrl.u32 %v4148, 7
  %v4150 = vsub.s32 %v2619, %v4149
  %v4151 = vrot.slane %v3815, %v4150
  %v4152 = vsel %vm2624, %v4151, %v4147
  %v4153 = vlaneseq
  %v4154 = vshrl.u32 %v4153, 7
  %v4155 = vsub.s32 %v2626, %v4154
  %v4156 = vrot.slane %v3818, %v4155
  %v4157 = vsel %vm2631, %v4156, %v4152
  %v4158 = vlaneseq
  %v4159 = vshrl.u32 %v4158, 7
  %v4160 = vsub.s32 %v2633, %v4159
  %v4161 = vrot.slane %v3821, %v4160
  %v4162 = vsel %vm2638, %v4161, %v4157
  %v4163 = vlaneseq
  %v4164 = vshrl.u32 %v4163, 7
  %v4165 = vsub.s32 %v2640, %v4164
  %v4166 = vrot.slane %v3824, %v4165
  %v4167 = vsel %vm2645, %v4166, %v4162
  %v4168 = vlaneseq
  %v4169 = vshrl.u32 %v4168, 7
  %v4170 = vsub.s32 %v2647, %v4169
  %v4171 = vrot.slane %v3827, %v4170
  %v4172 = vsel %vm2652, %v4171, %v4167
  %v4173 = vlaneseq
  %v4174 = vshrl.u32 %v4173, 7
  %v4175 = vsub.s32 %v2654, %v4174
  %v4176 = vrot.slane %v3830, %v4175
  %v4177 = vsel %vm2659, %v4176, %v4172
  %v4178 = vlaneseq
  %v4179 = vshrl.u32 %v4178, 7
  %v4180 = vsub.s32 %v2661, %v4179
  %v4181 = vrot.slane %v3833, %v4180
  %v4182 = vsel %vm2666, %v4181, %v4177
  %v4183 = vlaneseq
  %v4184 = vshrl.u32 %v4183, 7
  %v4185 = vsub.s32 %v2558, %v4184
  %v4186 = vrot.slane %v3836, %v4185
  %v4187 = vlaneseq
  %v4188 = vshrl.u32 %v4187, 7
  %v4189 = vsub.s32 %v2563, %v4188
  %v4190 = vrot.slane %v3839, %v4189
  %v4191 = vsel %vm2568, %v4190, %v4186
  %v4192 = vlaneseq
  %v4193 = vshrl.u32 %v4192, 7
  %v4194 = vsub.s32 %v2570, %v4193
  %v4195 = vrot.slane %v3842, %v4194
  %v4196 = vsel %vm2575, %v4195, %v4191
  %v4197 = vlaneseq
  %v4198 = vshrl.u32 %v4197, 7
  %v4199 = vsub.s32 %v2577, %v4198
  %v4200 = vrot.slane %v3845, %v4199
  %v4201 = vsel %vm2582, %v4200, %v4196
  %v4202 = vlaneseq
  %v4203 = vshrl.u32 %v4202, 7
  %v4204 = vsub.s32 %v2584, %v4203
  %v4205 = vrot.slane %v3848, %v4204
  %v4206 = vsel %vm2589, %v4205, %v4201
  %v4207 = vlaneseq
  %v4208 = vshrl.u32 %v4207, 7
  %v4209 = vsub.s32 %v2591, %v4208
  %v4210 = vrot.slane %v3851, %v4209
  %v4211 = vsel %vm2596, %v4210, %v4206
  %v4212 = vlaneseq
  %v4213 = vshrl.u32 %v4212, 7
  %v4214 = vsub.s32 %v2598, %v4213
  %v4215 = vrot.slane %v3854, %v4214
  %v4216 = vsel %vm2603, %v4215, %v4211
  %v4217 = vlaneseq
  %v4218 = vshrl.u32 %v4217, 7
  %v4219 = vsub.s32 %v2605, %v4218
  %v4220 = vrot.slane %v3857, %v4219
  %v4221 = vsel %vm2610, %v4220, %v4216
  %v4222 = vlaneseq
  %v4223 = vshrl.u32 %v4222, 7
  %v4224 = vsub.s32 %v2612, %v4223
  %v4225 = vrot.slane %v3860, %v4224
  %v4226 = vsel %vm2617, %v4225, %v4221
  %v4227 = vlaneseq
  %v4228 = vshrl.u32 %v4227, 7
  %v4229 = vsub.s32 %v2619, %v4228
  %v4230 = vrot.slane %v3863, %v4229
  %v4231 = vsel %vm2624, %v4230, %v4226
  %v4232 = vlaneseq
  %v4233 = vshrl.u32 %v4232, 7
  %v4234 = vsub.s32 %v2626, %v4233
  %v4235 = vrot.slane %v3866, %v4234
  %v4236 = vsel %vm2631, %v4235, %v4231
  %v4237 = vlaneseq
  %v4238 = vshrl.u32 %v4237, 7
  %v4239 = vsub.s32 %v2633, %v4238
  %v4240 = vrot.slane %v3869, %v4239
  %v4241 = vsel %vm2638, %v4240, %v4236
  %v4242 = vlaneseq
  %v4243 = vshrl.u32 %v4242, 7
  %v4244 = vsub.s32 %v2640, %v4243
  %v4245 = vrot.slane %v3872, %v4244
  %v4246 = vsel %vm2645, %v4245, %v4241
  %v4247 = vlaneseq
  %v4248 = vshrl.u32 %v4247, 7
  %v4249 = vsub.s32 %v2647, %v4248
  %v4250 = vrot.slane %v3875, %v4249
  %v4251 = vsel %vm2652, %v4250, %v4246
  %v4252 = vlaneseq
  %v4253 = vshrl.u32 %v4252, 7
  %v4254 = vsub.s32 %v2654, %v4253
  %v4255 = vrot.slane %v3878, %v4254
  %v4256 = vsel %vm2659, %v4255, %v4251
  %v4257 = vlaneseq
  %v4258 = vshrl.u32 %v4257, 7
  %v4259 = vsub.s32 %v2661, %v4258
  %v4260 = vrot.slane %v3881, %v4259
  %v4261 = vsel %vm2666, %v4260, %v4256
  %v4262 = vsel %vm2905, %v4182, %v4024
  %v4263 = vsel %vm2905, %v4261, %v4103
  %v4266 = vsel %vm1527, %v4262, 0.0
  %v4267 = vsel %vm1527, %v4263, 0.0
  %v4268 = vadd.f32 %v4266, %v4267
  %4269 = vadd.xlane.f32.xlu0 %v4268
  %v4270 = vpop.xlane.xlu0 %4269
  %s4271 = scalar_lea.vmem %s5, 768
  %v4272 = vld [vmem:[%s4271] sm:$0xff]
  %v4273 = vld [vmem:[%s4271 + $0x8] sm:$0xff]
  %v4274 = vld [vmem:[%s4271 + $0x10] sm:$0xff]
  %v4275 = vld [vmem:[%s4271 + $0x18] sm:$0xff]
  %v4276 = vld [vmem:[%s4271 + $0x20] sm:$0xff]
  %v4277 = vld [vmem:[%s4271 + $0x28] sm:$0xff]
  %v4278 = vld [vmem:[%s4271 + $0x30] sm:$0xff]
  %v4279 = vld [vmem:[%s4271 + $0x38] sm:$0xff]
  %v4280 = vld [vmem:[%s4271 + $0x40] sm:$0xff]
  %v4281 = vld [vmem:[%s4271 + $0x48] sm:$0xff]
  %v4282 = vld [vmem:[%s4271 + $0x50] sm:$0xff]
  %v4283 = vld [vmem:[%s4271 + $0x58] sm:$0xff]
  %v4284 = vld [vmem:[%s4271 + $0x60] sm:$0xff]
  %v4285 = vld [vmem:[%s4271 + $0x68] sm:$0xff]
  %v4286 = vld [vmem:[%s4271 + $0x70] sm:$0xff]
  %v4287 = vld [vmem:[%s4271 + $0x78] sm:$0xff]
  %v4288 = vld [vmem:[%s4271 + $0x80] sm:$0xff]
  %v4289 = vld [vmem:[%s4271 + $0x88] sm:$0xff]
  %v4290 = vld [vmem:[%s4271 + $0x90] sm:$0xff]
  %v4291 = vld [vmem:[%s4271 + $0x98] sm:$0xff]
  %v4292 = vld [vmem:[%s4271 + $0xa0] sm:$0xff]
  %v4293 = vld [vmem:[%s4271 + $0xa8] sm:$0xff]
  %v4294 = vld [vmem:[%s4271 + $0xb0] sm:$0xff]
  %v4295 = vld [vmem:[%s4271 + $0xb8] sm:$0xff]
  %v4296 = vld [vmem:[%s4271 + $0xc0] sm:$0xff]
  %v4297 = vld [vmem:[%s4271 + $0xc8] sm:$0xff]
  %v4298 = vld [vmem:[%s4271 + $0xd0] sm:$0xff]
  %v4299 = vld [vmem:[%s4271 + $0xd8] sm:$0xff]
  %v4300 = vld [vmem:[%s4271 + $0xe0] sm:$0xff]
  %v4301 = vld [vmem:[%s4271 + $0xe8] sm:$0xff]
  %v4302 = vld [vmem:[%s4271 + $0xf0] sm:$0xff]
  %v4303 = vld [vmem:[%s4271 + $0xf8] sm:$0xff]
  %v4304 = vmul.f32 %v2140, %v4272
  %v4305 = vmul.f32 %v2141, %v4273
  %v4306 = vmul.f32 %v2142, %v4274
  %v4307 = vmul.f32 %v2143, %v4275
  %v4308 = vmul.f32 %v2144, %v4276
  %v4309 = vmul.f32 %v2145, %v4277
  %v4310 = vmul.f32 %v2146, %v4278
  %v4311 = vmul.f32 %v2147, %v4279
  %v4312 = vmul.f32 %v2148, %v4280
  %v4313 = vmul.f32 %v2149, %v4281
  %v4314 = vmul.f32 %v2150, %v4282
  %v4315 = vmul.f32 %v2151, %v4283
  %v4316 = vmul.f32 %v2152, %v4284
  %v4317 = vmul.f32 %v2153, %v4285
  %v4318 = vmul.f32 %v2154, %v4286
  %v4319 = vmul.f32 %v2155, %v4287
  %v4320 = vmul.f32 %v2156, %v4288
  %v4321 = vmul.f32 %v2157, %v4289
  %v4322 = vmul.f32 %v2158, %v4290
  %v4323 = vmul.f32 %v2159, %v4291
  %v4324 = vmul.f32 %v2160, %v4292
  %v4325 = vmul.f32 %v2161, %v4293
  %v4326 = vmul.f32 %v2162, %v4294
  %v4327 = vmul.f32 %v2163, %v4295
  %v4328 = vmul.f32 %v2164, %v4296
  %v4329 = vmul.f32 %v2165, %v4297
  %v4330 = vmul.f32 %v2166, %v4298
  %v4331 = vmul.f32 %v2167, %v4299
  %v4332 = vmul.f32 %v2168, %v4300
  %v4333 = vmul.f32 %v2169, %v4301
  %v4334 = vmul.f32 %v2170, %v4302
  %v4335 = vmul.f32 %v2171, %v4303
  %v4336 = vmul.f32 %v2172, %v4272
  %v4337 = vmul.f32 %v2173, %v4273
  %v4338 = vmul.f32 %v2174, %v4274
  %v4339 = vmul.f32 %v2175, %v4275
  %v4340 = vmul.f32 %v2176, %v4276
  %v4341 = vmul.f32 %v2177, %v4277
  %v4342 = vmul.f32 %v2178, %v4278
  %v4343 = vmul.f32 %v2179, %v4279
  %v4344 = vmul.f32 %v2180, %v4280
  %v4345 = vmul.f32 %v2181, %v4281
  %v4346 = vmul.f32 %v2182, %v4282
  %v4347 = vmul.f32 %v2183, %v4283
  %v4348 = vmul.f32 %v2184, %v4284
  %v4349 = vmul.f32 %v2185, %v4285
  %v4350 = vmul.f32 %v2186, %v4286
  %v4351 = vmul.f32 %v2187, %v4287
  %v4352 = vmul.f32 %v2188, %v4288
  %v4353 = vmul.f32 %v2189, %v4289
  %v4354 = vmul.f32 %v2190, %v4290
  %v4355 = vmul.f32 %v2191, %v4291
  %v4356 = vmul.f32 %v2192, %v4292
  %v4357 = vmul.f32 %v2193, %v4293
  %v4358 = vmul.f32 %v2194, %v4294
  %v4359 = vmul.f32 %v2195, %v4295
  %v4360 = vmul.f32 %v2196, %v4296
  %v4361 = vmul.f32 %v2197, %v4297
  %v4362 = vmul.f32 %v2198, %v4298
  %v4363 = vmul.f32 %v2199, %v4299
  %v4364 = vmul.f32 %v2200, %v4300
  %v4365 = vmul.f32 %v2201, %v4301
  %v4366 = vmul.f32 %v2202, %v4302
  %v4367 = vmul.f32 %v2203, %v4303
  %v4368 = vsel %vm2300, %v4304, 0.0
  %4369 = vadd.xlane.f32.xlu0 %v4368
  %v4370 = vpop.xlane.xlu0 %4369
  %v4371 = vsel %vm2300, %v4305, 0.0
  %4372 = vadd.xlane.f32.xlu0 %v4371
  %v4373 = vpop.xlane.xlu0 %4372
  %v4374 = vsel %vm2300, %v4306, 0.0
  %4375 = vadd.xlane.f32.xlu0 %v4374
  %v4376 = vpop.xlane.xlu0 %4375
  %v4377 = vsel %vm2300, %v4307, 0.0
  %4378 = vadd.xlane.f32.xlu0 %v4377
  %v4379 = vpop.xlane.xlu0 %4378
  %v4380 = vsel %vm2300, %v4308, 0.0
  %4381 = vadd.xlane.f32.xlu0 %v4380
  %v4382 = vpop.xlane.xlu0 %4381
  %v4383 = vsel %vm2300, %v4309, 0.0
  %4384 = vadd.xlane.f32.xlu0 %v4383
  %v4385 = vpop.xlane.xlu0 %4384
  %v4386 = vsel %vm2300, %v4310, 0.0
  %4387 = vadd.xlane.f32.xlu0 %v4386
  %v4388 = vpop.xlane.xlu0 %4387
  %v4389 = vsel %vm2300, %v4311, 0.0
  %4390 = vadd.xlane.f32.xlu0 %v4389
  %v4391 = vpop.xlane.xlu0 %4390
  %v4392 = vsel %vm2300, %v4312, 0.0
  %4393 = vadd.xlane.f32.xlu0 %v4392
  %v4394 = vpop.xlane.xlu0 %4393
  %v4395 = vsel %vm2300, %v4313, 0.0
  %4396 = vadd.xlane.f32.xlu0 %v4395
  %v4397 = vpop.xlane.xlu0 %4396
  %v4398 = vsel %vm2300, %v4314, 0.0
  %4399 = vadd.xlane.f32.xlu0 %v4398
  %v4400 = vpop.xlane.xlu0 %4399
  %v4401 = vsel %vm2300, %v4315, 0.0
  %4402 = vadd.xlane.f32.xlu0 %v4401
  %v4403 = vpop.xlane.xlu0 %4402
  %v4404 = vsel %vm2300, %v4316, 0.0
  %4405 = vadd.xlane.f32.xlu0 %v4404
  %v4406 = vpop.xlane.xlu0 %4405
  %v4407 = vsel %vm2300, %v4317, 0.0
  %4408 = vadd.xlane.f32.xlu0 %v4407
  %v4409 = vpop.xlane.xlu0 %4408
  %v4410 = vsel %vm2300, %v4318, 0.0
  %4411 = vadd.xlane.f32.xlu0 %v4410
  %v4412 = vpop.xlane.xlu0 %4411
  %v4413 = vsel %vm2300, %v4319, 0.0
  %4414 = vadd.xlane.f32.xlu0 %v4413
  %v4415 = vpop.xlane.xlu0 %4414
  %v4416 = vsel %vm2300, %v4320, 0.0
  %4417 = vadd.xlane.f32.xlu0 %v4416
  %v4418 = vpop.xlane.xlu0 %4417
  %v4419 = vsel %vm2300, %v4321, 0.0
  %4420 = vadd.xlane.f32.xlu0 %v4419
  %v4421 = vpop.xlane.xlu0 %4420
  %v4422 = vsel %vm2300, %v4322, 0.0
  %4423 = vadd.xlane.f32.xlu0 %v4422
  %v4424 = vpop.xlane.xlu0 %4423
  %v4425 = vsel %vm2300, %v4323, 0.0
  %4426 = vadd.xlane.f32.xlu0 %v4425
  %v4427 = vpop.xlane.xlu0 %4426
  %v4428 = vsel %vm2300, %v4324, 0.0
  %4429 = vadd.xlane.f32.xlu0 %v4428
  %v4430 = vpop.xlane.xlu0 %4429
  %v4431 = vsel %vm2300, %v4325, 0.0
  %4432 = vadd.xlane.f32.xlu0 %v4431
  %v4433 = vpop.xlane.xlu0 %4432
  %v4434 = vsel %vm2300, %v4326, 0.0
  %4435 = vadd.xlane.f32.xlu0 %v4434
  %v4436 = vpop.xlane.xlu0 %4435
  %v4437 = vsel %vm2300, %v4327, 0.0
  %4438 = vadd.xlane.f32.xlu0 %v4437
  %v4439 = vpop.xlane.xlu0 %4438
  %v4440 = vsel %vm2300, %v4328, 0.0
  %4441 = vadd.xlane.f32.xlu0 %v4440
  %v4442 = vpop.xlane.xlu0 %4441
  %v4443 = vsel %vm2300, %v4329, 0.0
  %4444 = vadd.xlane.f32.xlu0 %v4443
  %v4445 = vpop.xlane.xlu0 %4444
  %v4446 = vsel %vm2300, %v4330, 0.0
  %4447 = vadd.xlane.f32.xlu0 %v4446
  %v4448 = vpop.xlane.xlu0 %4447
  %v4449 = vsel %vm2300, %v4331, 0.0
  %4450 = vadd.xlane.f32.xlu0 %v4449
  %v4451 = vpop.xlane.xlu0 %4450
  %v4452 = vsel %vm2300, %v4332, 0.0
  %4453 = vadd.xlane.f32.xlu0 %v4452
  %v4454 = vpop.xlane.xlu0 %4453
  %v4455 = vsel %vm2300, %v4333, 0.0
  %4456 = vadd.xlane.f32.xlu0 %v4455
  %v4457 = vpop.xlane.xlu0 %4456
  %v4458 = vsel %vm2300, %v4334, 0.0
  %4459 = vadd.xlane.f32.xlu0 %v4458
  %v4460 = vpop.xlane.xlu0 %4459
  %v4461 = vsel %vm2300, %v4335, 0.0
  %4462 = vadd.xlane.f32.xlu0 %v4461
  %v4463 = vpop.xlane.xlu0 %4462
  %v4464 = vsel %vm2300, %v4336, 0.0
  %4465 = vadd.xlane.f32.xlu0 %v4464
  %v4466 = vpop.xlane.xlu0 %4465
  %v4467 = vsel %vm2300, %v4337, 0.0
  %4468 = vadd.xlane.f32.xlu0 %v4467
  %v4469 = vpop.xlane.xlu0 %4468
  %v4470 = vsel %vm2300, %v4338, 0.0
  %4471 = vadd.xlane.f32.xlu0 %v4470
  %v4472 = vpop.xlane.xlu0 %4471
  %v4473 = vsel %vm2300, %v4339, 0.0
  %4474 = vadd.xlane.f32.xlu0 %v4473
  %v4475 = vpop.xlane.xlu0 %4474
  %v4476 = vsel %vm2300, %v4340, 0.0
  %4477 = vadd.xlane.f32.xlu0 %v4476
  %v4478 = vpop.xlane.xlu0 %4477
  %v4479 = vsel %vm2300, %v4341, 0.0
  %4480 = vadd.xlane.f32.xlu0 %v4479
  %v4481 = vpop.xlane.xlu0 %4480
  %v4482 = vsel %vm2300, %v4342, 0.0
  %4483 = vadd.xlane.f32.xlu0 %v4482
  %v4484 = vpop.xlane.xlu0 %4483
  %v4485 = vsel %vm2300, %v4343, 0.0
  %4486 = vadd.xlane.f32.xlu0 %v4485
  %v4487 = vpop.xlane.xlu0 %4486
  %v4488 = vsel %vm2300, %v4344, 0.0
  %4489 = vadd.xlane.f32.xlu0 %v4488
  %v4490 = vpop.xlane.xlu0 %4489
  %v4491 = vsel %vm2300, %v4345, 0.0
  %4492 = vadd.xlane.f32.xlu0 %v4491
  %v4493 = vpop.xlane.xlu0 %4492
  %v4494 = vsel %vm2300, %v4346, 0.0
  %4495 = vadd.xlane.f32.xlu0 %v4494
  %v4496 = vpop.xlane.xlu0 %4495
  %v4497 = vsel %vm2300, %v4347, 0.0
  %4498 = vadd.xlane.f32.xlu0 %v4497
  %v4499 = vpop.xlane.xlu0 %4498
  %v4500 = vsel %vm2300, %v4348, 0.0
  %4501 = vadd.xlane.f32.xlu0 %v4500
  %v4502 = vpop.xlane.xlu0 %4501
  %v4503 = vsel %vm2300, %v4349, 0.0
  %4504 = vadd.xlane.f32.xlu0 %v4503
  %v4505 = vpop.xlane.xlu0 %4504
  %v4506 = vsel %vm2300, %v4350, 0.0
  %4507 = vadd.xlane.f32.xlu0 %v4506
  %v4508 = vpop.xlane.xlu0 %4507
  %v4509 = vsel %vm2300, %v4351, 0.0
  %4510 = vadd.xlane.f32.xlu0 %v4509
  %v4511 = vpop.xlane.xlu0 %4510
  %v4512 = vsel %vm2300, %v4352, 0.0
  %4513 = vadd.xlane.f32.xlu0 %v4512
  %v4514 = vpop.xlane.xlu0 %4513
  %v4515 = vsel %vm2300, %v4353, 0.0
  %4516 = vadd.xlane.f32.xlu0 %v4515
  %v4517 = vpop.xlane.xlu0 %4516
  %v4518 = vsel %vm2300, %v4354, 0.0
  %4519 = vadd.xlane.f32.xlu0 %v4518
  %v4520 = vpop.xlane.xlu0 %4519
  %v4521 = vsel %vm2300, %v4355, 0.0
  %4522 = vadd.xlane.f32.xlu0 %v4521
  %v4523 = vpop.xlane.xlu0 %4522
  %v4524 = vsel %vm2300, %v4356, 0.0
  %4525 = vadd.xlane.f32.xlu0 %v4524
  %v4526 = vpop.xlane.xlu0 %4525
  %v4527 = vsel %vm2300, %v4357, 0.0
  %4528 = vadd.xlane.f32.xlu0 %v4527
  %v4529 = vpop.xlane.xlu0 %4528
  %v4530 = vsel %vm2300, %v4358, 0.0
  %4531 = vadd.xlane.f32.xlu0 %v4530
  %v4532 = vpop.xlane.xlu0 %4531
  %v4533 = vsel %vm2300, %v4359, 0.0
  %4534 = vadd.xlane.f32.xlu0 %v4533
  %v4535 = vpop.xlane.xlu0 %4534
  %v4536 = vsel %vm2300, %v4360, 0.0
  %4537 = vadd.xlane.f32.xlu0 %v4536
  %v4538 = vpop.xlane.xlu0 %4537
  %v4539 = vsel %vm2300, %v4361, 0.0
  %4540 = vadd.xlane.f32.xlu0 %v4539
  %v4541 = vpop.xlane.xlu0 %4540
  %v4542 = vsel %vm2300, %v4362, 0.0
  %4543 = vadd.xlane.f32.xlu0 %v4542
  %v4544 = vpop.xlane.xlu0 %4543
  %v4545 = vsel %vm2300, %v4363, 0.0
  %4546 = vadd.xlane.f32.xlu0 %v4545
  %v4547 = vpop.xlane.xlu0 %4546
  %v4548 = vsel %vm2300, %v4364, 0.0
  %4549 = vadd.xlane.f32.xlu0 %v4548
  %v4550 = vpop.xlane.xlu0 %4549
  %v4551 = vsel %vm2300, %v4365, 0.0
  %4552 = vadd.xlane.f32.xlu0 %v4551
  %v4553 = vpop.xlane.xlu0 %4552
  %v4554 = vsel %vm2300, %v4366, 0.0
  %4555 = vadd.xlane.f32.xlu0 %v4554
  %v4556 = vpop.xlane.xlu0 %4555
  %v4557 = vsel %vm2300, %v4367, 0.0
  %4558 = vadd.xlane.f32.xlu0 %v4557
  %v4559 = vpop.xlane.xlu0 %4558
  %v4624 = vlaneseq
  %v4625 = vshrl.u32 %v4624, 7
  %v4626 = vsub.s32 %v2558, %v4625
  %v4627 = vrot.slane %v4370, %v4626
  %v4628 = vlaneseq
  %v4629 = vshrl.u32 %v4628, 7
  %v4630 = vsub.s32 %v2563, %v4629
  %v4631 = vrot.slane %v4373, %v4630
  %v4632 = vsel %vm2568, %v4631, %v4627
  %v4633 = vlaneseq
  %v4634 = vshrl.u32 %v4633, 7
  %v4635 = vsub.s32 %v2570, %v4634
  %v4636 = vrot.slane %v4376, %v4635
  %v4637 = vsel %vm2575, %v4636, %v4632
  %v4638 = vlaneseq
  %v4639 = vshrl.u32 %v4638, 7
  %v4640 = vsub.s32 %v2577, %v4639
  %v4641 = vrot.slane %v4379, %v4640
  %v4642 = vsel %vm2582, %v4641, %v4637
  %v4643 = vlaneseq
  %v4644 = vshrl.u32 %v4643, 7
  %v4645 = vsub.s32 %v2584, %v4644
  %v4646 = vrot.slane %v4382, %v4645
  %v4647 = vsel %vm2589, %v4646, %v4642
  %v4648 = vlaneseq
  %v4649 = vshrl.u32 %v4648, 7
  %v4650 = vsub.s32 %v2591, %v4649
  %v4651 = vrot.slane %v4385, %v4650
  %v4652 = vsel %vm2596, %v4651, %v4647
  %v4653 = vlaneseq
  %v4654 = vshrl.u32 %v4653, 7
  %v4655 = vsub.s32 %v2598, %v4654
  %v4656 = vrot.slane %v4388, %v4655
  %v4657 = vsel %vm2603, %v4656, %v4652
  %v4658 = vlaneseq
  %v4659 = vshrl.u32 %v4658, 7
  %v4660 = vsub.s32 %v2605, %v4659
  %v4661 = vrot.slane %v4391, %v4660
  %v4662 = vsel %vm2610, %v4661, %v4657
  %v4663 = vlaneseq
  %v4664 = vshrl.u32 %v4663, 7
  %v4665 = vsub.s32 %v2612, %v4664
  %v4666 = vrot.slane %v4394, %v4665
  %v4667 = vsel %vm2617, %v4666, %v4662
  %v4668 = vlaneseq
  %v4669 = vshrl.u32 %v4668, 7
  %v4670 = vsub.s32 %v2619, %v4669
  %v4671 = vrot.slane %v4397, %v4670
  %v4672 = vsel %vm2624, %v4671, %v4667
  %v4673 = vlaneseq
  %v4674 = vshrl.u32 %v4673, 7
  %v4675 = vsub.s32 %v2626, %v4674
  %v4676 = vrot.slane %v4400, %v4675
  %v4677 = vsel %vm2631, %v4676, %v4672
  %v4678 = vlaneseq
  %v4679 = vshrl.u32 %v4678, 7
  %v4680 = vsub.s32 %v2633, %v4679
  %v4681 = vrot.slane %v4403, %v4680
  %v4682 = vsel %vm2638, %v4681, %v4677
  %v4683 = vlaneseq
  %v4684 = vshrl.u32 %v4683, 7
  %v4685 = vsub.s32 %v2640, %v4684
  %v4686 = vrot.slane %v4406, %v4685
  %v4687 = vsel %vm2645, %v4686, %v4682
  %v4688 = vlaneseq
  %v4689 = vshrl.u32 %v4688, 7
  %v4690 = vsub.s32 %v2647, %v4689
  %v4691 = vrot.slane %v4409, %v4690
  %v4692 = vsel %vm2652, %v4691, %v4687
  %v4693 = vlaneseq
  %v4694 = vshrl.u32 %v4693, 7
  %v4695 = vsub.s32 %v2654, %v4694
  %v4696 = vrot.slane %v4412, %v4695
  %v4697 = vsel %vm2659, %v4696, %v4692
  %v4698 = vlaneseq
  %v4699 = vshrl.u32 %v4698, 7
  %v4700 = vsub.s32 %v2661, %v4699
  %v4701 = vrot.slane %v4415, %v4700
  %v4702 = vsel %vm2666, %v4701, %v4697
  %v4703 = vlaneseq
  %v4704 = vshrl.u32 %v4703, 7
  %v4705 = vsub.s32 %v2558, %v4704
  %v4706 = vrot.slane %v4418, %v4705
  %v4707 = vlaneseq
  %v4708 = vshrl.u32 %v4707, 7
  %v4709 = vsub.s32 %v2563, %v4708
  %v4710 = vrot.slane %v4421, %v4709
  %v4711 = vsel %vm2568, %v4710, %v4706
  %v4712 = vlaneseq
  %v4713 = vshrl.u32 %v4712, 7
  %v4714 = vsub.s32 %v2570, %v4713
  %v4715 = vrot.slane %v4424, %v4714
  %v4716 = vsel %vm2575, %v4715, %v4711
  %v4717 = vlaneseq
  %v4718 = vshrl.u32 %v4717, 7
  %v4719 = vsub.s32 %v2577, %v4718
  %v4720 = vrot.slane %v4427, %v4719
  %v4721 = vsel %vm2582, %v4720, %v4716
  %v4722 = vlaneseq
  %v4723 = vshrl.u32 %v4722, 7
  %v4724 = vsub.s32 %v2584, %v4723
  %v4725 = vrot.slane %v4430, %v4724
  %v4726 = vsel %vm2589, %v4725, %v4721
  %v4727 = vlaneseq
  %v4728 = vshrl.u32 %v4727, 7
  %v4729 = vsub.s32 %v2591, %v4728
  %v4730 = vrot.slane %v4433, %v4729
  %v4731 = vsel %vm2596, %v4730, %v4726
  %v4732 = vlaneseq
  %v4733 = vshrl.u32 %v4732, 7
  %v4734 = vsub.s32 %v2598, %v4733
  %v4735 = vrot.slane %v4436, %v4734
  %v4736 = vsel %vm2603, %v4735, %v4731
  %v4737 = vlaneseq
  %v4738 = vshrl.u32 %v4737, 7
  %v4739 = vsub.s32 %v2605, %v4738
  %v4740 = vrot.slane %v4439, %v4739
  %v4741 = vsel %vm2610, %v4740, %v4736
  %v4742 = vlaneseq
  %v4743 = vshrl.u32 %v4742, 7
  %v4744 = vsub.s32 %v2612, %v4743
  %v4745 = vrot.slane %v4442, %v4744
  %v4746 = vsel %vm2617, %v4745, %v4741
  %v4747 = vlaneseq
  %v4748 = vshrl.u32 %v4747, 7
  %v4749 = vsub.s32 %v2619, %v4748
  %v4750 = vrot.slane %v4445, %v4749
  %v4751 = vsel %vm2624, %v4750, %v4746
  %v4752 = vlaneseq
  %v4753 = vshrl.u32 %v4752, 7
  %v4754 = vsub.s32 %v2626, %v4753
  %v4755 = vrot.slane %v4448, %v4754
  %v4756 = vsel %vm2631, %v4755, %v4751
  %v4757 = vlaneseq
  %v4758 = vshrl.u32 %v4757, 7
  %v4759 = vsub.s32 %v2633, %v4758
  %v4760 = vrot.slane %v4451, %v4759
  %v4761 = vsel %vm2638, %v4760, %v4756
  %v4762 = vlaneseq
  %v4763 = vshrl.u32 %v4762, 7
  %v4764 = vsub.s32 %v2640, %v4763
  %v4765 = vrot.slane %v4454, %v4764
  %v4766 = vsel %vm2645, %v4765, %v4761
  %v4767 = vlaneseq
  %v4768 = vshrl.u32 %v4767, 7
  %v4769 = vsub.s32 %v2647, %v4768
  %v4770 = vrot.slane %v4457, %v4769
  %v4771 = vsel %vm2652, %v4770, %v4766
  %v4772 = vlaneseq
  %v4773 = vshrl.u32 %v4772, 7
  %v4774 = vsub.s32 %v2654, %v4773
  %v4775 = vrot.slane %v4460, %v4774
  %v4776 = vsel %vm2659, %v4775, %v4771
  %v4777 = vlaneseq
  %v4778 = vshrl.u32 %v4777, 7
  %v4779 = vsub.s32 %v2661, %v4778
  %v4780 = vrot.slane %v4463, %v4779
  %v4781 = vsel %vm2666, %v4780, %v4776
  %v4782 = vlaneseq
  %v4783 = vshrl.u32 %v4782, 7
  %v4784 = vsub.s32 %v2558, %v4783
  %v4785 = vrot.slane %v4466, %v4784
  %v4786 = vlaneseq
  %v4787 = vshrl.u32 %v4786, 7
  %v4788 = vsub.s32 %v2563, %v4787
  %v4789 = vrot.slane %v4469, %v4788
  %v4790 = vsel %vm2568, %v4789, %v4785
  %v4791 = vlaneseq
  %v4792 = vshrl.u32 %v4791, 7
  %v4793 = vsub.s32 %v2570, %v4792
  %v4794 = vrot.slane %v4472, %v4793
  %v4795 = vsel %vm2575, %v4794, %v4790
  %v4796 = vlaneseq
  %v4797 = vshrl.u32 %v4796, 7
  %v4798 = vsub.s32 %v2577, %v4797
  %v4799 = vrot.slane %v4475, %v4798
  %v4800 = vsel %vm2582, %v4799, %v4795
  %v4801 = vlaneseq
  %v4802 = vshrl.u32 %v4801, 7
  %v4803 = vsub.s32 %v2584, %v4802
  %v4804 = vrot.slane %v4478, %v4803
  %v4805 = vsel %vm2589, %v4804, %v4800
  %v4806 = vlaneseq
  %v4807 = vshrl.u32 %v4806, 7
  %v4808 = vsub.s32 %v2591, %v4807
  %v4809 = vrot.slane %v4481, %v4808
  %v4810 = vsel %vm2596, %v4809, %v4805
  %v4811 = vlaneseq
  %v4812 = vshrl.u32 %v4811, 7
  %v4813 = vsub.s32 %v2598, %v4812
  %v4814 = vrot.slane %v4484, %v4813
  %v4815 = vsel %vm2603, %v4814, %v4810
  %v4816 = vlaneseq
  %v4817 = vshrl.u32 %v4816, 7
  %v4818 = vsub.s32 %v2605, %v4817
  %v4819 = vrot.slane %v4487, %v4818
  %v4820 = vsel %vm2610, %v4819, %v4815
  %v4821 = vlaneseq
  %v4822 = vshrl.u32 %v4821, 7
  %v4823 = vsub.s32 %v2612, %v4822
  %v4824 = vrot.slane %v4490, %v4823
  %v4825 = vsel %vm2617, %v4824, %v4820
  %v4826 = vlaneseq
  %v4827 = vshrl.u32 %v4826, 7
  %v4828 = vsub.s32 %v2619, %v4827
  %v4829 = vrot.slane %v4493, %v4828
  %v4830 = vsel %vm2624, %v4829, %v4825
  %v4831 = vlaneseq
  %v4832 = vshrl.u32 %v4831, 7
  %v4833 = vsub.s32 %v2626, %v4832
  %v4834 = vrot.slane %v4496, %v4833
  %v4835 = vsel %vm2631, %v4834, %v4830
  %v4836 = vlaneseq
  %v4837 = vshrl.u32 %v4836, 7
  %v4838 = vsub.s32 %v2633, %v4837
  %v4839 = vrot.slane %v4499, %v4838
  %v4840 = vsel %vm2638, %v4839, %v4835
  %v4841 = vlaneseq
  %v4842 = vshrl.u32 %v4841, 7
  %v4843 = vsub.s32 %v2640, %v4842
  %v4844 = vrot.slane %v4502, %v4843
  %v4845 = vsel %vm2645, %v4844, %v4840
  %v4846 = vlaneseq
  %v4847 = vshrl.u32 %v4846, 7
  %v4848 = vsub.s32 %v2647, %v4847
  %v4849 = vrot.slane %v4505, %v4848
  %v4850 = vsel %vm2652, %v4849, %v4845
  %v4851 = vlaneseq
  %v4852 = vshrl.u32 %v4851, 7
  %v4853 = vsub.s32 %v2654, %v4852
  %v4854 = vrot.slane %v4508, %v4853
  %v4855 = vsel %vm2659, %v4854, %v4850
  %v4856 = vlaneseq
  %v4857 = vshrl.u32 %v4856, 7
  %v4858 = vsub.s32 %v2661, %v4857
  %v4859 = vrot.slane %v4511, %v4858
  %v4860 = vsel %vm2666, %v4859, %v4855
  %v4861 = vlaneseq
  %v4862 = vshrl.u32 %v4861, 7
  %v4863 = vsub.s32 %v2558, %v4862
  %v4864 = vrot.slane %v4514, %v4863
  %v4865 = vlaneseq
  %v4866 = vshrl.u32 %v4865, 7
  %v4867 = vsub.s32 %v2563, %v4866
  %v4868 = vrot.slane %v4517, %v4867
  %v4869 = vsel %vm2568, %v4868, %v4864
  %v4870 = vlaneseq
  %v4871 = vshrl.u32 %v4870, 7
  %v4872 = vsub.s32 %v2570, %v4871
  %v4873 = vrot.slane %v4520, %v4872
  %v4874 = vsel %vm2575, %v4873, %v4869
  %v4875 = vlaneseq
  %v4876 = vshrl.u32 %v4875, 7
  %v4877 = vsub.s32 %v2577, %v4876
  %v4878 = vrot.slane %v4523, %v4877
  %v4879 = vsel %vm2582, %v4878, %v4874
  %v4880 = vlaneseq
  %v4881 = vshrl.u32 %v4880, 7
  %v4882 = vsub.s32 %v2584, %v4881
  %v4883 = vrot.slane %v4526, %v4882
  %v4884 = vsel %vm2589, %v4883, %v4879
  %v4885 = vlaneseq
  %v4886 = vshrl.u32 %v4885, 7
  %v4887 = vsub.s32 %v2591, %v4886
  %v4888 = vrot.slane %v4529, %v4887
  %v4889 = vsel %vm2596, %v4888, %v4884
  %v4890 = vlaneseq
  %v4891 = vshrl.u32 %v4890, 7
  %v4892 = vsub.s32 %v2598, %v4891
  %v4893 = vrot.slane %v4532, %v4892
  %v4894 = vsel %vm2603, %v4893, %v4889
  %v4895 = vlaneseq
  %v4896 = vshrl.u32 %v4895, 7
  %v4897 = vsub.s32 %v2605, %v4896
  %v4898 = vrot.slane %v4535, %v4897
  %v4899 = vsel %vm2610, %v4898, %v4894
  %v4900 = vlaneseq
  %v4901 = vshrl.u32 %v4900, 7
  %v4902 = vsub.s32 %v2612, %v4901
  %v4903 = vrot.slane %v4538, %v4902
  %v4904 = vsel %vm2617, %v4903, %v4899
  %v4905 = vlaneseq
  %v4906 = vshrl.u32 %v4905, 7
  %v4907 = vsub.s32 %v2619, %v4906
  %v4908 = vrot.slane %v4541, %v4907
  %v4909 = vsel %vm2624, %v4908, %v4904
  %v4910 = vlaneseq
  %v4911 = vshrl.u32 %v4910, 7
  %v4912 = vsub.s32 %v2626, %v4911
  %v4913 = vrot.slane %v4544, %v4912
  %v4914 = vsel %vm2631, %v4913, %v4909
  %v4915 = vlaneseq
  %v4916 = vshrl.u32 %v4915, 7
  %v4917 = vsub.s32 %v2633, %v4916
  %v4918 = vrot.slane %v4547, %v4917
  %v4919 = vsel %vm2638, %v4918, %v4914
  %v4920 = vlaneseq
  %v4921 = vshrl.u32 %v4920, 7
  %v4922 = vsub.s32 %v2640, %v4921
  %v4923 = vrot.slane %v4550, %v4922
  %v4924 = vsel %vm2645, %v4923, %v4919
  %v4925 = vlaneseq
  %v4926 = vshrl.u32 %v4925, 7
  %v4927 = vsub.s32 %v2647, %v4926
  %v4928 = vrot.slane %v4553, %v4927
  %v4929 = vsel %vm2652, %v4928, %v4924
  %v4930 = vlaneseq
  %v4931 = vshrl.u32 %v4930, 7
  %v4932 = vsub.s32 %v2654, %v4931
  %v4933 = vrot.slane %v4556, %v4932
  %v4934 = vsel %vm2659, %v4933, %v4929
  %v4935 = vlaneseq
  %v4936 = vshrl.u32 %v4935, 7
  %v4937 = vsub.s32 %v2661, %v4936
  %v4938 = vrot.slane %v4559, %v4937
  %v4939 = vsel %vm2666, %v4938, %v4934
  %v4940 = vsel %vm2905, %v4860, %v4702
  %v4941 = vsel %vm2905, %v4939, %v4781
  %v4944 = vsel %vm1527, %v4940, 0.0
  %v4945 = vsel %vm1527, %v4941, 0.0
  %v4946 = vadd.f32 %v4944, %v4945
  %4947 = vadd.xlane.f32.xlu0 %v4946
  %v4948 = vpop.xlane.xlu0 %4947
  %vm4949 = vcmask 7168
  %v4950 = vsel %vm4949, %v2914, %v3592
  %vm4951 = vcmask 15360
  %v4952 = vsel %vm4951, %v4950, %v4270
  %vm4953 = vcmask 23552
  %v4954 = vsel %vm4953, %v4952, %v4948
  %vm4955 = vcmask 25600
  %4956 = vst.msk [vmem:[%s6] sm:$0x3] %vm4955, %v4954
  // Predicated region
  $region26: #{escnn_steerable_forward.1} parent=0 // pred_check
    _
  $region27: #{escnn_steerable_forward.1} parent=0 // pred_check_branch
    %4958 = sbr.rel (0) target = $region29
  $region28: #{escnn_steerable_forward.1} parent=0 // pred_region
    _
  $region29: #{escnn_steerable_forward.1} parent=0 // pred_fallthru
    _
  // Predicated region
  $region30: #{escnn_steerable_forward.1} parent=0 // pred_check
    _
  $region31: #{escnn_steerable_forward.1} parent=0 // pred_check_branch
    %4960 = sbr.rel (0) target = $region33
  $region32: #{escnn_steerable_forward.1} parent=0 // pred_region
    _
  $region33: #{escnn_steerable_forward.1} parent=0 // pred_fallthru
    _

</llo_original>
